<compile_context>
chip_gen: v7x
topology: tpu7x:2x2x1
jax: 0.10.0
libtpu: 0.0.40
codegen_flags: <defaults>
</compile_context>

<pallas_src>
import functools

import jax
import jax.numpy as jnp
from jax import lax
from jax.experimental import pallas as pl
from jax.experimental.pallas import tpu as pltpu


def _round_up(x, m):
    return ((x + m - 1) // m) * m


def _vmem_limit_bytes():
    """Generation-dependent scoped-VMEM limit (~60% of physical, capped)."""
    try:
        phys = pltpu.get_tpu_info().vmem_capacity_bytes
    except Exception:
        phys = 64 * 1024 * 1024          # conservative fallback (v7x physical)
    return max(32 * 1024 * 1024, min(int(phys * 0.6), 100 * 1024 * 1024))


def _conv_tile_kernel(xc_ref, w_ref, b_ref, o_ref, stack_ref, *, K, Cin_pad, Wp_pad, TH):
    """One (batch, row-tile) step of the dense stride-1 convolution.

    xc_ref:    (Cin_pad, (TH+K-1)*Wp_pad)  compute dtype -- row tile + halo, rows flattened
    w_ref:     (Cout_pad, K*K*Cin_pad)     compute dtype -- taps folded into contraction
    b_ref:     (Cout_pad, 1)               float32
    o_ref:     (Cout_pad, TH*Wp_pad)       out dtype     -- lane-dense flat output rows
    stack_ref: (K*K*Cin_pad, TH*Wp_pad)    compute dtype -- VMEM scratch (stacked taps)
    """
    Lt = TH * Wp_pad
    # Stage the stacked operand.  kh offsets are multiples of Wp_pad (lane-aligned, no
    # relayout); the kw lane shift goes through the XLU via pltpu.roll and overlaps MXU.
    for kh in range(K):
        lo = kh * Wp_pad
        for kw in range(K):
            t = kh * K + kw
            base = xc_ref[:, lo:lo + Lt]                       # (Cin_pad, Lt), aligned
            tap = base if kw == 0 else pltpu.roll(base, Lt - kw, axis=1)   # == shift by -kw
            stack_ref[t * Cin_pad:(t + 1) * Cin_pad, :] = tap  # sublane-aligned store
    # Single folded MXU matmul: contraction depth K*K*Cin_pad instead of Cin.
    acc = jnp.dot(w_ref[...], stack_ref[...], preferred_element_type=jnp.float32)
    o_ref[...] = (acc + b_ref[...]).astype(o_ref.dtype)        # f32 bias add, full-tile store


def upsample_conv_layer(x, weight, bias, *, kernel_size, stride, upsample=None,
                        compute_dtype=jnp.bfloat16, out_dtype=None):
    """Forward pass of UpsampleConvLayer.

    x:      (N, C_in, H, W)      float32
    weight: (C_out, C_in, K, K)  float32 (PyTorch OIHW layout)
    bias:   (C_out,)             float32
    returns (N, C_out, H_out, W_out) in `out_dtype` (default: x.dtype)
    """
    N, Cin, H, W = x.shape
    Cout = weight.shape[0]
    K = kernel_size
    out_dtype = x.dtype if out_dtype is None else out_dtype

    # 1) nearest-neighbor upsample via broadcast+reshape (no jnp.repeat)
    if upsample:
        u = int(upsample)
        x = jnp.broadcast_to(x[:, :, :, None, :, None],
                             (N, Cin, H, u, W, u)).reshape(N, Cin, H * u, W * u)
        H, W = H * u, W * u

    # 2) reflection padding (nn.ReflectionPad2d(kernel_size // 2))
    p = K // 2
    x = jnp.pad(x, ((0, 0), (0, 0), (p, p), (p, p)), mode="reflect")
    Hp, Wp = H + 2 * p, W + 2 * p

    H1 = Hp - K + 1          # dense (stride-1) output rows
    W1 = Wp - K + 1          # dense (stride-1) output cols

    # channel padding to the sublane-packing granularity of the compute dtype
    itemsize = jnp.dtype(compute_dtype).itemsize
    pack = 8 if itemsize == 4 else 16
    Cin_pad = _round_up(Cin, pack)
    Cout_pad = _round_up(Cout, 8)

    # spatial tiling: TH output rows per grid step; padded row width multiple of 128
    Wp_pad = _round_up(Wp, 128)
    stack_budget = 4 * 1024 * 1024                    # bytes for the stacked-tap scratch
    lane_budget = max(512, min(8192, stack_budget // (K * K * Cin_pad * itemsize)))
    TH = max(1, min(H1, lane_budget // Wp_pad))
    n_ht = pl.cdiv(H1, TH)
    Hp_pad = n_ht * TH + K - 1                        # >= Hp
    Lt = TH * Wp_pad                                  # output lanes per block
    CH = (TH + K - 1) * Wp_pad                        # input lanes per block (incl. halo)

    # 3) padded compute-dtype image and overlapping row chunks (halo ~ (K-1)/TH extra),
    #    produced by a single XLA fusion (pad + cast + gather).
    x4 = jnp.zeros((N, Cin_pad, Hp_pad, Wp_pad), compute_dtype)
    x4 = x4.at[:, :Cin, :Hp, :Wp].set(x.astype(compute_dtype))
    ridx = (jnp.arange(n_ht) * TH)[:, None] + jnp.arange(TH + K - 1)[None, :]
    xch = jnp.moveaxis(x4[:, :, ridx, :], 2, 1).reshape(N, n_ht, Cin_pad, CH)

    # folded weights: w_fold[co, (kh*K+kw)*Cin_pad + ci] = weight[co, ci, kh, kw]
    w_p = jnp.zeros((Cout_pad, Cin_pad, K, K), jnp.float32).at[:Cout, :Cin].set(weight)
    w_fold = jnp.transpose(w_p, (0, 2, 3, 1)).reshape(Cout_pad, K * K * Cin_pad)
    w_fold = w_fold.astype(compute_dtype)
    b_p = jnp.zeros((Cout_pad, 1), jnp.float32).at[:Cout, 0].set(bias)

    kernel = functools.partial(_conv_tile_kernel, K=K, Cin_pad=Cin_pad, Wp_pad=Wp_pad, TH=TH)

    out_flat = pl.pallas_call(
        kernel,
        out_shape=jax.ShapeDtypeStruct((N, Cout_pad, n_ht * Lt), out_dtype),
        grid_spec=pltpu.PrefetchScalarGridSpec(
            num_scalar_prefetch=0,
            grid=(N, n_ht),
            in_specs=[
                # one row-tile chunk (with halo) per step; double-buffered by the pipeline
                pl.BlockSpec((None, None, Cin_pad, CH), lambda n, t: (n, t, 0, 0)),
                # constant weights / bias (same block every step -> fetched once)
                pl.BlockSpec((Cout_pad, K * K * Cin_pad), lambda n, t: (0, 0)),
                pl.BlockSpec((Cout_pad, 1), lambda n, t: (0, 0)),
            ],
            out_specs=pl.BlockSpec((None, Cout_pad, Lt), lambda n, t: (n, 0, t)),
            scratch_shapes=[pltpu.VMEM((K * K * Cin_pad, Lt), compute_dtype)],
        ),
        compiler_params=pltpu.CompilerParams(
            # tiles are independent -> both axes parallel (uses both v7x TensorCores at N=1)
            dimension_semantics=("parallel", "parallel"),
            vmem_limit_bytes=_vmem_limit_bytes(),
        ),
    )(xch, w_fold, b_p)

    # free (contiguous) reshape, then one crop slice for channel/row/col padding + stride.
    dense = out_flat.reshape(N, Cout_pad, n_ht * TH, Wp_pad)
    out = dense[:, :Cout, :H1:stride, :W1:stride]
    return out


def _reference(x, weight, bias, *, kernel_size, stride, upsample=None):
    """Pure-JAX reference (mirrors the PyTorch forward)."""
    if upsample:
        x = jnp.repeat(jnp.repeat(x, upsample, axis=2), upsample, axis=3)
    p = kernel_size // 2
    x = jnp.pad(x, ((0, 0), (0, 0), (p, p), (p, p)), mode="reflect")
    y = lax.conv_general_dilated(
        x, weight, window_strides=(stride, stride), padding="VALID",
        dimension_numbers=("NCHW", "OIHW", "NCHW"))
    return y + bias[None, :, None, None]


if __name__ == "__main__":
    # module config
    in_channels, out_channels = 4, 8
    kernel_size, stride, upsample = 3, 1, 2

    key = jax.random.PRNGKey(0)
    kx, kw, kb = jax.random.split(key, 3)

    x = jax.random.normal(kx, (2, in_channels, 16, 16), dtype=jnp.float32)
    weight = jax.random.normal(
        kw, (out_channels, in_channels, kernel_size, kernel_size), dtype=jnp.float32) * 0.1
    bias = jax.random.normal(kb, (out_channels,), dtype=jnp.float32) * 0.1

    ref = _reference(
        x, weight, bias, kernel_size=kernel_size, stride=stride, upsample=upsample)

    # f32-streamed path: tight check against the conv reference
    out_f32 = upsample_conv_layer(
        x, weight, bias, kernel_size=kernel_size, stride=stride, upsample=upsample,
        compute_dtype=jnp.float32)
    out_f32 = jax.block_until_ready(out_f32)
    assert out_f32.shape == ref.shape, (out_f32.shape, ref.shape)
    assert jnp.allclose(out_f32, ref, atol=5e-4, rtol=5e-4), "f32 mismatch vs reference conv"

    # default bf16-streamed path (f32 MXU accumulation): looser tolerance
    out_bf16 = upsample_conv_layer(
        x, weight, bias, kernel_size=kernel_size, stride=stride, upsample=upsample)
    out_bf16 = jax.block_until_ready(out_bf16)
    assert out_bf16.shape == ref.shape, (out_bf16.shape, ref.shape)
    assert jnp.allclose(out_bf16, ref, atol=3e-2, rtol=3e-2), "bf16 mismatch vs reference conv"

    print("KERNEL_OK")
</pallas_src>

<mosaic_0001>
module attributes {stable_mosaic.version = 11 : i64} {
  func.func @_conv_tile_kernel(%arg0: i32, %arg1: i32, %arg2: memref<1x1x8x4352xf32, #tpu.memory_space<vmem>>, %arg3: memref<8x72xf32, #tpu.memory_space<vmem>>, %arg4: memref<8x1xf32, #tpu.memory_space<vmem>>, %arg5: memref<1x8x4096xf32, #tpu.memory_space<vmem>>, %arg6: memref<72x4096xf32, #tpu.memory_space<vmem>>) attributes {dimension_semantics = [#tpu.dimension_semantics<parallel>, #tpu.dimension_semantics<parallel>], iteration_bounds = array<i64: 2, 1>, scalar_prefetch = 0 : i64, scratch_operands = 1 : i64, tpu.core_type = #tpu.core_type<tc>, window_params = [{transform_indices = @transform_0, window_bounds = array<i64: 1, 1, 8, 4352>}, {pipeline_mode = #tpu.pipeline_mode<synchronous>, transform_indices = @transform_1, window_bounds = array<i64: 8, 72>}, {pipeline_mode = #tpu.pipeline_mode<synchronous>, transform_indices = @transform_2, window_bounds = array<i64: 8, 1>}, {transform_indices = @transform_3, window_bounds = array<i64: 1, 8, 4096>}]} {
    %c0 = arith.constant 0 : index
    %c0_0 = arith.constant 0 : index
    %c0_1 = arith.constant 0 : index
    %c0_2 = arith.constant 0 : index
    %0 = vector.load %arg2[%c0, %c0_0, %c0_1, %c0_2] : memref<1x1x8x4352xf32, #tpu.memory_space<vmem>>, vector<1x1x8x4096xf32>
    %1 = vector.shape_cast %0 : vector<1x1x8x4096xf32> to vector<8x4096xf32>
    %c0_3 = arith.constant 0 : index
    %c0_4 = arith.constant 0 : index
    %2 = vector.load %arg6[%c0_3, %c0_4] : memref<72x4096xf32, #tpu.memory_space<vmem>>, vector<8x4096xf32>
    tpu.vector_store %arg6[%c0_3, %c0_4], %1 {strides = array<i32>} : memref<72x4096xf32, #tpu.memory_space<vmem>>, vector<8x4096xf32>,
    %c0_5 = arith.constant 0 : index
    %c0_6 = arith.constant 0 : index
    %c0_7 = arith.constant 0 : index
    %c0_8 = arith.constant 0 : index
    %3 = vector.load %arg2[%c0_5, %c0_6, %c0_7, %c0_8] : memref<1x1x8x4352xf32, #tpu.memory_space<vmem>>, vector<1x1x8x4096xf32>
    %4 = vector.shape_cast %3 : vector<1x1x8x4096xf32> to vector<8x4096xf32>
    %c4095_i32 = arith.constant 4095 : i32
    %5 = tpu.dynamic_rotate %4 by %c4095_i32 dim 1 : vector<8x4096xf32>, i32 -> vector<8x4096xf32>
    %c8 = arith.constant 8 : index
    %c0_9 = arith.constant 0 : index
    %6 = vector.load %arg6[%c8, %c0_9] : memref<72x4096xf32, #tpu.memory_space<vmem>>, vector<8x4096xf32>
    tpu.vector_store %arg6[%c8, %c0_9], %5 {strides = array<i32>} : memref<72x4096xf32, #tpu.memory_space<vmem>>, vector<8x4096xf32>,
    %c0_10 = arith.constant 0 : index
    %c0_11 = arith.constant 0 : index
    %c0_12 = arith.constant 0 : index
    %c0_13 = arith.constant 0 : index
    %7 = vector.load %arg2[%c0_10, %c0_11, %c0_12, %c0_13] : memref<1x1x8x4352xf32, #tpu.memory_space<vmem>>, vector<1x1x8x4096xf32>
    %8 = vector.shape_cast %7 : vector<1x1x8x4096xf32> to vector<8x4096xf32>
    %c4094_i32 = arith.constant 4094 : i32
    %9 = tpu.dynamic_rotate %8 by %c4094_i32 dim 1 : vector<8x4096xf32>, i32 -> vector<8x4096xf32>
    %c16 = arith.constant 16 : index
    %c0_14 = arith.constant 0 : index
    %10 = vector.load %arg6[%c16, %c0_14] : memref<72x4096xf32, #tpu.memory_space<vmem>>, vector<8x4096xf32>
    tpu.vector_store %arg6[%c16, %c0_14], %9 {strides = array<i32>} : memref<72x4096xf32, #tpu.memory_space<vmem>>, vector<8x4096xf32>,
    %c0_15 = arith.constant 0 : index
    %c0_16 = arith.constant 0 : index
    %c0_17 = arith.constant 0 : index
    %c128 = arith.constant 128 : index
    %11 = vector.load %arg2[%c0_15, %c0_16, %c0_17, %c128] : memref<1x1x8x4352xf32, #tpu.memory_space<vmem>>, vector<1x1x8x4096xf32>
    %12 = vector.shape_cast %11 : vector<1x1x8x4096xf32> to vector<8x4096xf32>
    %c24 = arith.constant 24 : index
    %c0_18 = arith.constant 0 : index
    %13 = vector.load %arg6[%c24, %c0_18] : memref<72x4096xf32, #tpu.memory_space<vmem>>, vector<8x4096xf32>
    tpu.vector_store %arg6[%c24, %c0_18], %12 {strides = array<i32>} : memref<72x4096xf32, #tpu.memory_space<vmem>>, vector<8x4096xf32>,
    %c0_19 = arith.constant 0 : index
    %c0_20 = arith.constant 0 : index
    %c0_21 = arith.constant 0 : index
    %c128_22 = arith.constant 128 : index
    %14 = vector.load %arg2[%c0_19, %c0_20, %c0_21, %c128_22] : memref<1x1x8x4352xf32, #tpu.memory_space<vmem>>, vector<1x1x8x4096xf32>
    %15 = vector.shape_cast %14 : vector<1x1x8x4096xf32> to vector<8x4096xf32>
    %c4095_i32_23 = arith.constant 4095 : i32
    %16 = tpu.dynamic_rotate %15 by %c4095_i32_23 dim 1 : vector<8x4096xf32>, i32 -> vector<8x4096xf32>
    %c32 = arith.constant 32 : index
    %c0_24 = arith.constant 0 : index
    %17 = vector.load %arg6[%c32, %c0_24] : memref<72x4096xf32, #tpu.memory_space<vmem>>, vector<8x4096xf32>
    tpu.vector_store %arg6[%c32, %c0_24], %16 {strides = array<i32>} : memref<72x4096xf32, #tpu.memory_space<vmem>>, vector<8x4096xf32>,
    %c0_25 = arith.constant 0 : index
    %c0_26 = arith.constant 0 : index
    %c0_27 = arith.constant 0 : index
    %c128_28 = arith.constant 128 : index
    %18 = vector.load %arg2[%c0_25, %c0_26, %c0_27, %c128_28] : memref<1x1x8x4352xf32, #tpu.memory_space<vmem>>, vector<1x1x8x4096xf32>
    %19 = vector.shape_cast %18 : vector<1x1x8x4096xf32> to vector<8x4096xf32>
    %c4094_i32_29 = arith.constant 4094 : i32
    %20 = tpu.dynamic_rotate %19 by %c4094_i32_29 dim 1 : vector<8x4096xf32>, i32 -> vector<8x4096xf32>
    %c40 = arith.constant 40 : index
    %c0_30 = arith.constant 0 : index
    %21 = vector.load %arg6[%c40, %c0_30] : memref<72x4096xf32, #tpu.memory_space<vmem>>, vector<8x4096xf32>
    tpu.vector_store %arg6[%c40, %c0_30], %20 {strides = array<i32>} : memref<72x4096xf32, #tpu.memory_space<vmem>>, vector<8x4096xf32>,
    %c0_31 = arith.constant 0 : index
    %c0_32 = arith.constant 0 : index
    %c0_33 = arith.constant 0 : index
    %c256 = arith.constant 256 : index
    %22 = vector.load %arg2[%c0_31, %c0_32, %c0_33, %c256] : memref<1x1x8x4352xf32, #tpu.memory_space<vmem>>, vector<1x1x8x4096xf32>
    %23 = vector.shape_cast %22 : vector<1x1x8x4096xf32> to vector<8x4096xf32>
    %c48 = arith.constant 48 : index
    %c0_34 = arith.constant 0 : index
    %24 = vector.load %arg6[%c48, %c0_34] : memref<72x4096xf32, #tpu.memory_space<vmem>>, vector<8x4096xf32>
    tpu.vector_store %arg6[%c48, %c0_34], %23 {strides = array<i32>} : memref<72x4096xf32, #tpu.memory_space<vmem>>, vector<8x4096xf32>,
    %c0_35 = arith.constant 0 : index
    %c0_36 = arith.constant 0 : index
    %c0_37 = arith.constant 0 : index
    %c256_38 = arith.constant 256 : index
    %25 = vector.load %arg2[%c0_35, %c0_36, %c0_37, %c256_38] : memref<1x1x8x4352xf32, #tpu.memory_space<vmem>>, vector<1x1x8x4096xf32>
    %26 = vector.shape_cast %25 : vector<1x1x8x4096xf32> to vector<8x4096xf32>
    %c4095_i32_39 = arith.constant 4095 : i32
    %27 = tpu.dynamic_rotate %26 by %c4095_i32_39 dim 1 : vector<8x4096xf32>, i32 -> vector<8x4096xf32>
    %c56 = arith.constant 56 : index
    %c0_40 = arith.constant 0 : index
    %28 = vector.load %arg6[%c56, %c0_40] : memref<72x4096xf32, #tpu.memory_space<vmem>>, vector<8x4096xf32>
    tpu.vector_store %arg6[%c56, %c0_40], %27 {strides = array<i32>} : memref<72x4096xf32, #tpu.memory_space<vmem>>, vector<8x4096xf32>,
    %c0_41 = arith.constant 0 : index
    %c0_42 = arith.constant 0 : index
    %c0_43 = arith.constant 0 : index
    %c256_44 = arith.constant 256 : index
    %29 = vector.load %arg2[%c0_41, %c0_42, %c0_43, %c256_44] : memref<1x1x8x4352xf32, #tpu.memory_space<vmem>>, vector<1x1x8x4096xf32>
    %30 = vector.shape_cast %29 : vector<1x1x8x4096xf32> to vector<8x4096xf32>
    %c4094_i32_45 = arith.constant 4094 : i32
    %31 = tpu.dynamic_rotate %30 by %c4094_i32_45 dim 1 : vector<8x4096xf32>, i32 -> vector<8x4096xf32>
    %c64 = arith.constant 64 : index
    %c0_46 = arith.constant 0 : index
    %32 = vector.load %arg6[%c64, %c0_46] : memref<72x4096xf32, #tpu.memory_space<vmem>>, vector<8x4096xf32>
    tpu.vector_store %arg6[%c64, %c0_46], %31 {strides = array<i32>} : memref<72x4096xf32, #tpu.memory_space<vmem>>, vector<8x4096xf32>,
    %c0_47 = arith.constant 0 : index
    %c0_48 = arith.constant 0 : index
    %33 = vector.load %arg3[%c0_47, %c0_48] : memref<8x72xf32, #tpu.memory_space<vmem>>, vector<8x72xf32>
    %c0_49 = arith.constant 0 : index
    %c0_50 = arith.constant 0 : index
    %34 = vector.load %arg6[%c0_49, %c0_50] : memref<72x4096xf32, #tpu.memory_space<vmem>>, vector<72x4096xf32>
    %cst = arith.constant dense<0.000000e+00> : vector<8x4096xf32>
    %35 = tpu.matmul %33, %34, %cst {dimension_numbers = #tpu.dot_dimension_numbers<[1], [0], [0], [1], [0, 0, 1, 1], [], []>} : vector<8x72xf32>, vector<72x4096xf32>, vector<8x4096xf32> -> vector<8x4096xf32>
    %c0_51 = arith.constant 0 : index
    %c0_52 = arith.constant 0 : index
    %36 = vector.load %arg4[%c0_51, %c0_52] : memref<8x1xf32, #tpu.memory_space<vmem>>, vector<8x1xf32>
    %37 = vector.broadcast %36 : vector<8x1xf32> to vector<8x4096xf32>
    %38 = arith.addf %35, %37 : vector<8x4096xf32>
    %c0_53 = arith.constant 0 : index
    %c0_54 = arith.constant 0 : index
    %c0_55 = arith.constant 0 : index
    %39 = vector.load %arg5[%c0_53, %c0_54, %c0_55] : memref<1x8x4096xf32, #tpu.memory_space<vmem>>, vector<1x8x4096xf32>
    %40 = vector.shape_cast %39 : vector<1x8x4096xf32> to vector<8x4096xf32>
    %41 = vector.shape_cast %38 : vector<8x4096xf32> to vector<1x8x4096xf32>
    tpu.vector_store %arg5[%c0_53, %c0_54, %c0_55], %41 {strides = array<i32>} : memref<1x8x4096xf32, #tpu.memory_space<vmem>>, vector<1x8x4096xf32>,
    return
  }
  func.func @transform_0(%arg0: i32, %arg1: i32) -> (i32, i32, i32, i32) {
    %c0_i32 = arith.constant 0 : i32
    %c0_i32_0 = arith.constant 0 : i32
    %c0_i32_1 = arith.constant 0 : i32
    return %arg0, %arg1, %c0_i32, %c0_i32_0 : i32, i32, i32, i32
  }
  func.func @transform_1(%arg0: i32, %arg1: i32) -> (i32, i32) {
    %c0_i32 = arith.constant 0 : i32
    %c0_i32_0 = arith.constant 0 : i32
    %c0_i32_1 = arith.constant 0 : i32
    return %c0_i32, %c0_i32_0 : i32, i32
  }
  func.func @transform_2(%arg0: i32, %arg1: i32) -> (i32, i32) {
    %c0_i32 = arith.constant 0 : i32
    %c0_i32_0 = arith.constant 0 : i32
    %c0_i32_1 = arith.constant 0 : i32
    return %c0_i32, %c0_i32_0 : i32, i32
  }
  func.func @transform_3(%arg0: i32, %arg1: i32) -> (i32, i32, i32) {
    %c0_i32 = arith.constant 0 : i32
    %c0_i32_0 = arith.constant 0 : i32
    return %arg0, %c0_i32, %arg1 : i32, i32, i32
  }
}

</mosaic_0001>

<llo_original>
// kernel: tpu_custom_call.1
$region0: #{tpu_custom_call.1}
  #allocation0 [shape = 'u32[]', space=smem, size = 0x4, offset = 0x4, fixed_abs, tag = 'smem constant byte address 0x4 - core index']
  #allocation1 [shape = 'u32[144,128]{1,0:T(1,128)}', space=vmem, size = 0x12000, scoped, tag = 'internal scratch']
  #allocation2 [shape = 'f32[72,4096]{1,0:T(8,128)}', space=vmem, size = 0x120000, scoped, tag = 'scratch operand']
  %s0 = inlined_call_operand.hbm [shape: f32[2,1,8,4352], index: 0, kind: input, shape index: {}]
  %s1 = inlined_call_operand.vmem [shape: f32[8,72], index: 1, kind: input, shape index: {}]
  %s2 = inlined_call_operand.vmem [shape: f32[8,1], index: 2, kind: input, shape index: {}]
  %s3 = inlined_call_operand.hbm [shape: f32[2,8,4096], index: 3, kind: output, shape index: {}]
  %s4 = sld [smem:[#allocation0]]
  $region49: #{tpu_custom_call.1} parent=0
    _
  %s6 = ssub.s32 1, %s4
  %s7 = scalar_select 0, %s6, %s4
  $region1: #{tpu_custom_call.1} parent=0
    #allocation3 [shape = 'u8[278528]{0}', space=vmem, size = 0x44000, scoped, tag = 'input window, operand 0']
    #allocation4 [shape = 's32[2]{0}', space=sflag, size = 0x8, scoped, tag = 'scoped memory for tpu_custom_call.1']
    #allocation5 [shape = 's32[2]{0}', space=sflag, size = 0x8, scoped, tag = 'scoped memory for tpu_custom_call.1']
    #allocation6 [shape = 'u8[262144]{0}', space=vmem, size = 0x40000, scoped, tag = 'output window, operand 0']
    %8 = vsyncpa [#allocation4], 0
    %s9 = scalar_lea.sflag [#allocation4], 1
    %10 = vsyncpa %s9, 0
    %11 = vsyncpa [#allocation5], 0
    %s12 = scalar_lea.sflag [#allocation5], 1
    %13 = vsyncpa %s12, 0
    loop: start=0, step=1, limit=4
    $region2: #{tpu_custom_call.1} parent=1 // loop_pre_header
      _
    $region3: #{tpu_custom_call.1} parent=1 // loop_header
      %s15 = sphi 0, %s19
      %p16 = scmp.ge.s32.totalorder %s15, 4
      %s22 = sphi 0, %s34
      %s23 = sphi 0, %s30
      %s24 = sphi 0, %s22
      %s25 = sphi 0, %s23
      %s26 = sphi 0, %s24
      %s27 = sphi 0, %s25
      %s39 = sphi 0, %s41
      %s42 = sphi 0, %s39
      %s43 = sphi 0, %s42
      %s59 = sphi 0, %s43
      %s63 = sphi 0, %s63
      %s65 = sphi 0, %s63
      %s66 = sphi 0, %s65
      %s80 = sphi 0, %s66
      %s84 = sphi 0, %s84
      %s86 = sphi 0, %s84
      %s87 = sphi 0, %s86
      %s101 = sphi 0, %s87
      %s109 = sphi 0, %s111
      %s112 = sphi 0, %s109
      %s113 = sphi 0, %s112
      %s129 = sphi 0, %s113
    $region4: #{tpu_custom_call.1} parent=1 // loop_header_branch
      %18 = sbr.rel (%p16) target = $region8
    $region5: #{tpu_custom_call.1} parent=1 // loop_body
      %s20 = ssub.s32 %s15, 1
      %s21 = ssub.s32 %s15, 2
      %s28 = sadd.s32 1, %s23
      %p29 = scmp.ge.s32.totalorder %s28, 1
      %s30 = scalar_select %p29, 0, %s28
      %s31 = sadd.s32 1, %s22
      %s32 = scalar_select %p29, %s31, %s22
      %p33 = scmp.ge.s32.totalorder %s32, 2
      %s34 = scalar_select %p33, 0, %s32
      %s35 = ssub.s32 %s22, %s34
      %s36 = ssub.s32 %s23, %s30
      %s37 = sor.u32 %s35, %s36
      %p38 = scmp.eq.s32.totalorder %s37, 0
      %s40 = sadd.s32 %s39, 1
      %s41 = scalar_select %p38, %s39, %s40
      %p44 = pneg %p38
      %p45 = scmp.eq.s32.totalorder %s15, 1
      %p46 = por %p44, %p45
      %p47 = scmp.ne.s32.totalorder %s39, %s42
      %p48 = scmp.eq.s32.totalorder %s15, 0
      %p49 = por %p47, %p48
      %p50 = scmp.ne.s32.totalorder %s39, %s42
      %p51 = scmp.eq.s32.totalorder %s20, 1
      %p52 = por %p50, %p51
      %p53 = scmp.ne.s32.totalorder %s42, %s43
      %p54 = scmp.eq.s32.totalorder %s20, 0
      %p55 = por %p53, %p54
      %p56 = scmp.ne.s32.totalorder %s42, %s43
      %p57 = scmp.eq.s32.totalorder %s21, 1
      %p58 = por %p56, %p57
      %p60 = scmp.ne.s32.totalorder %s43, %s59
      %p61 = scmp.eq.s32.totalorder %s21, 0
      %p62 = por %p60, %p61
      %s64 = sadd.s32 %s63, 1
      %p67 = scmp.eq.s32.totalorder %s15, 1
      %p68 = scmp.ne.s32.totalorder %s63, %s65
      %p69 = scmp.eq.s32.totalorder %s15, 0
      %p70 = por %p68, %p69
      %p71 = scmp.ne.s32.totalorder %s63, %s65
      %p72 = scmp.eq.s32.totalorder %s20, 1
      %p73 = por %p71, %p72
      %p74 = scmp.ne.s32.totalorder %s65, %s66
      %p75 = scmp.eq.s32.totalorder %s20, 0
      %p76 = por %p74, %p75
      %p77 = scmp.ne.s32.totalorder %s65, %s66
      %p78 = scmp.eq.s32.totalorder %s21, 1
      %p79 = por %p77, %p78
      %p81 = scmp.ne.s32.totalorder %s66, %s80
      %p82 = scmp.eq.s32.totalorder %s21, 0
      %p83 = por %p81, %p82
      %s85 = sadd.s32 %s84, 1
      %p88 = scmp.eq.s32.totalorder %s15, 1
      %p89 = scmp.ne.s32.totalorder %s84, %s86
      %p90 = scmp.eq.s32.totalorder %s15, 0
      %p91 = por %p89, %p90
      %p92 = scmp.ne.s32.totalorder %s84, %s86
      %p93 = scmp.eq.s32.totalorder %s20, 1
      %p94 = por %p92, %p93
      %p95 = scmp.ne.s32.totalorder %s86, %s87
      %p96 = scmp.eq.s32.totalorder %s20, 0
      %p97 = por %p95, %p96
      %p98 = scmp.ne.s32.totalorder %s86, %s87
      %p99 = scmp.eq.s32.totalorder %s21, 1
      %p100 = por %p98, %p99
      %p102 = scmp.ne.s32.totalorder %s87, %s101
      %p103 = scmp.eq.s32.totalorder %s21, 0
      %p104 = por %p102, %p103
      %s105 = ssub.s32 %s22, %s34
      %s106 = ssub.s32 %s23, %s30
      %s107 = sor.u32 %s105, %s106
      %p108 = scmp.eq.s32.totalorder %s107, 0
      %s110 = sadd.s32 %s109, 1
      %s111 = scalar_select %p108, %s109, %s110
      %p114 = pneg %p108
      %p115 = scmp.eq.s32.totalorder %s15, 1
      %p116 = por %p114, %p115
      %p117 = scmp.ne.s32.totalorder %s109, %s112
      %p118 = scmp.eq.s32.totalorder %s15, 0
      %p119 = por %p117, %p118
      %p120 = scmp.ne.s32.totalorder %s109, %s112
      %p121 = scmp.eq.s32.totalorder %s20, 1
      %p122 = por %p120, %p121
      %p123 = scmp.ne.s32.totalorder %s112, %s113
      %p124 = scmp.eq.s32.totalorder %s20, 0
      %p125 = por %p123, %p124
      %p126 = scmp.ne.s32.totalorder %s112, %s113
      %p127 = scmp.eq.s32.totalorder %s21, 1
      %p128 = por %p126, %p127
      %p130 = scmp.ne.s32.totalorder %s113, %s129
      %p131 = scmp.eq.s32.totalorder %s21, 0
      %p132 = por %p130, %p131
      %p133 = scmp.le.s32.totalorder 1, %s15
      %p134 = scmp.lt.s32.totalorder %s15, 3
      %p135 = pnand %p133, %p134
      %p136 = pneg %p135
      // Predicated region
      $region9: #{tpu_custom_call.1} parent=5 // pred_check
        _
      $region10: #{tpu_custom_call.1} parent=5 // pred_check_branch
        %138 = sbr.rel (%p135) target = $region12
      $region11: #{tpu_custom_call.1} parent=5 // pred_region
        %s139 = ssub.s32 %s15, 1
        // Predicated region
        $region13: #{tpu_custom_call.1} parent=11 // pred_check
          %p140 = pneg %p76
        $region14: #{tpu_custom_call.1} parent=11 // pred_check_branch
          %142 = sbr.rel (%p140) target = $region16
        $region15: #{tpu_custom_call.1} parent=11 // pred_region
          _
        $region16: #{tpu_custom_call.1} parent=11 // pred_fallthru
          _
        // Predicated region
        $region17: #{tpu_custom_call.1} parent=11 // pred_check
          %p143 = pneg %p97
        $region18: #{tpu_custom_call.1} parent=11 // pred_check_branch
          %145 = sbr.rel (%p143) target = $region20
        $region19: #{tpu_custom_call.1} parent=11 // pred_region
          _
        $region20: #{tpu_custom_call.1} parent=11 // pred_fallthru
          _
      $region12: #{tpu_custom_call.1} parent=5 // pred_fallthru
        _
      %p146 = scmp.lt.s32.totalorder %s15, 2
      // Predicated region
      $region21: #{tpu_custom_call.1} parent=5 // pred_check
        %p147 = pneg %p146
      $region22: #{tpu_custom_call.1} parent=5 // pred_check_branch
        %149 = sbr.rel (%p147) target = $region24
      $region23: #{tpu_custom_call.1} parent=5 // pred_region
        // Predicated region
        $region25: #{tpu_custom_call.1} parent=23 // pred_check
          %p150 = pneg %p49
        $region26: #{tpu_custom_call.1} parent=23 // pred_check_branch
          %152 = sbr.rel (%p150) target = $region28
        $region27: #{tpu_custom_call.1} parent=23 // pred_region
          %s153 = sand.u32 %s39, 1
          %s154 = scalar_lea.sflag [#allocation4], %s153
          %s155 = sand.u32 %s39, 1
          %s156 = smul.addr %s155, 272
          %s157 = scalar_lea.vmem [#allocation3], %s156
          %s159 = ssub.s32 4352, 4352
          %160 = vsyncadd %s154, %s159
          %s161 = smul.addr %s23, 34
          %s162 = smul.addr %s22, 34
          %s163 = sadd.s32 %s161, %s162
          %s164 = smul.addr %s163, 128
          %s165 = scalar_lea.hbm %s0, %s164
          %s167 = sshll.u32 %s157, 4
          %s168 = int_to_ptr.vmem [resolvable:$true] %s167
          %170 = dma.hbm_to_vmem [thread:$0]  %s165, 4352, %s168, %s154
        $region28: #{tpu_custom_call.1} parent=23 // pred_fallthru
          _
      $region24: #{tpu_custom_call.1} parent=5 // pred_fallthru
        _
      %p171 = scmp.le.s32.totalorder 1, %s15
      %p172 = scmp.lt.s32.totalorder %s15, 3
      %p173 = pnand %p171, %p172
      %p174 = pneg %p173
      // Predicated region
      $region29: #{tpu_custom_call.1} parent=5 // pred_check
        _
      $region30: #{tpu_custom_call.1} parent=5 // pred_check_branch
        %176 = sbr.rel (%p173) target = $region32
      $region31: #{tpu_custom_call.1} parent=5 // pred_region
        %s177 = ssub.s32 %s15, 1
        %s178 = sand.u32 %s42, 1
        %s179 = scalar_lea.sflag [#allocation4], %s178
        %s180 = sand.u32 %s42, 1
        %s181 = smul.addr %s180, 272
        %s182 = scalar_lea.vmem [#allocation3], %s181
        // Predicated region
        $region33: #{tpu_custom_call.1} parent=31 // pred_check
          %p183 = pneg %p55
        $region34: #{tpu_custom_call.1} parent=31 // pred_check_branch
          %185 = sbr.rel (%p183) target = $region36
        $region35: #{tpu_custom_call.1} parent=31 // pred_region
          %186 = dma.done %s179, 4352
        $region36: #{tpu_custom_call.1} parent=31 // pred_fallthru
          _
        %s187 = sand.u32 %s42, 1
        %s188 = scalar_lea.sflag [#allocation4], %s187
        %s189 = sand.u32 %s42, 1
        %s190 = smul.addr %s189, 272
        %s191 = scalar_lea.vmem [#allocation3], %s190
        %p192 = pneg %p55
        %p193 = pneg %p52
        %p194 = pneg %p76
        %p195 = pneg %p73
        %p196 = pneg %p97
        %p197 = pneg %p94
        %p198 = pneg %p125
        %p199 = pneg %p122
        %s200 = sand.u32 %s112, 1
        %s201 = scalar_lea.sflag [#allocation5], %s200
        %s202 = sand.u32 %s112, 1
        %s203 = smul.addr %s202, 256
        %s204 = scalar_lea.vmem [#allocation6], %s203
        %s205 = smul.u32 32, %s25
        %v206 = vld [vmem:[%s182] sm:$0xff]
        %v207 = vld [vmem:[%s182 + $0x8] sm:$0xff]
        %v208 = vld [vmem:[%s182 + $0x10] sm:$0xff]
        %v209 = vld [vmem:[%s182 + $0x18] sm:$0xff]
        %v210 = vld [vmem:[%s182 + $0x20] sm:$0xff]
        %v211 = vld [vmem:[%s182 + $0x28] sm:$0xff]
        %v212 = vld [vmem:[%s182 + $0x30] sm:$0xff]
        %v213 = vld [vmem:[%s182 + $0x38] sm:$0xff]
        %v214 = vld [vmem:[%s182 + $0x40] sm:$0xff]
        %v215 = vld [vmem:[%s182 + $0x48] sm:$0xff]
        %v216 = vld [vmem:[%s182 + $0x50] sm:$0xff]
        %v217 = vld [vmem:[%s182 + $0x58] sm:$0xff]
        %v218 = vld [vmem:[%s182 + $0x60] sm:$0xff]
        %v219 = vld [vmem:[%s182 + $0x68] sm:$0xff]
        %v220 = vld [vmem:[%s182 + $0x70] sm:$0xff]
        %v221 = vld [vmem:[%s182 + $0x78] sm:$0xff]
        %v222 = vld [vmem:[%s182 + $0x80] sm:$0xff]
        %v223 = vld [vmem:[%s182 + $0x88] sm:$0xff]
        %v224 = vld [vmem:[%s182 + $0x90] sm:$0xff]
        %v225 = vld [vmem:[%s182 + $0x98] sm:$0xff]
        %v226 = vld [vmem:[%s182 + $0xa0] sm:$0xff]
        %v227 = vld [vmem:[%s182 + $0xa8] sm:$0xff]
        %v228 = vld [vmem:[%s182 + $0xb0] sm:$0xff]
        %v229 = vld [vmem:[%s182 + $0xb8] sm:$0xff]
        %v230 = vld [vmem:[%s182 + $0xc0] sm:$0xff]
        %v231 = vld [vmem:[%s182 + $0xc8] sm:$0xff]
        %v232 = vld [vmem:[%s182 + $0xd0] sm:$0xff]
        %v233 = vld [vmem:[%s182 + $0xd8] sm:$0xff]
        %v234 = vld [vmem:[%s182 + $0xe0] sm:$0xff]
        %v235 = vld [vmem:[%s182 + $0xe8] sm:$0xff]
        %v236 = vld [vmem:[%s182 + $0xf0] sm:$0xff]
        %v237 = vld [vmem:[%s182 + $0xf8] sm:$0xff]
        %238 = vst [vmem:[#allocation2] sm:$0xff] %v206
        %239 = vst [vmem:[#allocation2 + $0x8] sm:$0xff] %v207
        %240 = vst [vmem:[#allocation2 + $0x10] sm:$0xff] %v208
        %241 = vst [vmem:[#allocation2 + $0x18] sm:$0xff] %v209
        %242 = vst [vmem:[#allocation2 + $0x20] sm:$0xff] %v210
        %243 = vst [vmem:[#allocation2 + $0x28] sm:$0xff] %v211
        %244 = vst [vmem:[#allocation2 + $0x30] sm:$0xff] %v212
        %245 = vst [vmem:[#allocation2 + $0x38] sm:$0xff] %v213
        %246 = vst [vmem:[#allocation2 + $0x40] sm:$0xff] %v214
        %247 = vst [vmem:[#allocation2 + $0x48] sm:$0xff] %v215
        %248 = vst [vmem:[#allocation2 + $0x50] sm:$0xff] %v216
        %249 = vst [vmem:[#allocation2 + $0x58] sm:$0xff] %v217
        %250 = vst [vmem:[#allocation2 + $0x60] sm:$0xff] %v218
        %251 = vst [vmem:[#allocation2 + $0x68] sm:$0xff] %v219
        %252 = vst [vmem:[#allocation2 + $0x70] sm:$0xff] %v220
        %253 = vst [vmem:[#allocation2 + $0x78] sm:$0xff] %v221
        %254 = vst [vmem:[#allocation2 + $0x80] sm:$0xff] %v222
        %255 = vst [vmem:[#allocation2 + $0x88] sm:$0xff] %v223
        %256 = vst [vmem:[#allocation2 + $0x90] sm:$0xff] %v224
        %257 = vst [vmem:[#allocation2 + $0x98] sm:$0xff] %v225
        %258 = vst [vmem:[#allocation2 + $0xa0] sm:$0xff] %v226
        %259 = vst [vmem:[#allocation2 + $0xa8] sm:$0xff] %v227
        %260 = vst [vmem:[#allocation2 + $0xb0] sm:$0xff] %v228
        %261 = vst [vmem:[#allocation2 + $0xb8] sm:$0xff] %v229
        %262 = vst [vmem:[#allocation2 + $0xc0] sm:$0xff] %v230
        %263 = vst [vmem:[#allocation2 + $0xc8] sm:$0xff] %v231
        %264 = vst [vmem:[#allocation2 + $0xd0] sm:$0xff] %v232
        %265 = vst [vmem:[#allocation2 + $0xd8] sm:$0xff] %v233
        %266 = vst [vmem:[#allocation2 + $0xe0] sm:$0xff] %v234
        %267 = vst [vmem:[#allocation2 + $0xe8] sm:$0xff] %v235
        %268 = vst [vmem:[#allocation2 + $0xf0] sm:$0xff] %v236
        %269 = vst [vmem:[#allocation2 + $0xf8] sm:$0xff] %v237
        %v270 = vld [vmem:[%s182] sm:$0xff]
        %v271 = vld [vmem:[%s182 + $0x8] sm:$0xff]
        %v272 = vld [vmem:[%s182 + $0x10] sm:$0xff]
        %v273 = vld [vmem:[%s182 + $0x18] sm:$0xff]
        %v274 = vld [vmem:[%s182 + $0x20] sm:$0xff]
        %v275 = vld [vmem:[%s182 + $0x28] sm:$0xff]
        %v276 = vld [vmem:[%s182 + $0x30] sm:$0xff]
        %v277 = vld [vmem:[%s182 + $0x38] sm:$0xff]
        %v278 = vld [vmem:[%s182 + $0x40] sm:$0xff]
        %v279 = vld [vmem:[%s182 + $0x48] sm:$0xff]
        %v280 = vld [vmem:[%s182 + $0x50] sm:$0xff]
        %v281 = vld [vmem:[%s182 + $0x58] sm:$0xff]
        %v282 = vld [vmem:[%s182 + $0x60] sm:$0xff]
        %v283 = vld [vmem:[%s182 + $0x68] sm:$0xff]
        %v284 = vld [vmem:[%s182 + $0x70] sm:$0xff]
        %v285 = vld [vmem:[%s182 + $0x78] sm:$0xff]
        %v286 = vld [vmem:[%s182 + $0x80] sm:$0xff]
        %v287 = vld [vmem:[%s182 + $0x88] sm:$0xff]
        %v288 = vld [vmem:[%s182 + $0x90] sm:$0xff]
        %v289 = vld [vmem:[%s182 + $0x98] sm:$0xff]
        %v290 = vld [vmem:[%s182 + $0xa0] sm:$0xff]
        %v291 = vld [vmem:[%s182 + $0xa8] sm:$0xff]
        %v292 = vld [vmem:[%s182 + $0xb0] sm:$0xff]
        %v293 = vld [vmem:[%s182 + $0xb8] sm:$0xff]
        %v294 = vld [vmem:[%s182 + $0xc0] sm:$0xff]
        %v295 = vld [vmem:[%s182 + $0xc8] sm:$0xff]
        %v296 = vld [vmem:[%s182 + $0xd0] sm:$0xff]
        %v297 = vld [vmem:[%s182 + $0xd8] sm:$0xff]
        %v298 = vld [vmem:[%s182 + $0xe0] sm:$0xff]
        %v299 = vld [vmem:[%s182 + $0xe8] sm:$0xff]
        %v300 = vld [vmem:[%s182 + $0xf0] sm:$0xff]
        %v301 = vld [vmem:[%s182 + $0xf8] sm:$0xff]
        %302 = vrot.lane.b32.xlu0 %v270, 127
        %v303 = vpop.permute.xlu0 %302
        %304 = vrot.lane.b32.xlu0 %v271, 127
        %v305 = vpop.permute.xlu0 %304
        %306 = vrot.lane.b32.xlu0 %v272, 127
        %v307 = vpop.permute.xlu0 %306
        %308 = vrot.lane.b32.xlu0 %v273, 127
        %v309 = vpop.permute.xlu0 %308
        %310 = vrot.lane.b32.xlu0 %v274, 127
        %v311 = vpop.permute.xlu0 %310
        %312 = vrot.lane.b32.xlu0 %v275, 127
        %v313 = vpop.permute.xlu0 %312
        %314 = vrot.lane.b32.xlu0 %v276, 127
        %v315 = vpop.permute.xlu0 %314
        %316 = vrot.lane.b32.xlu0 %v277, 127
        %v317 = vpop.permute.xlu0 %316
        %318 = vrot.lane.b32.xlu0 %v278, 127
        %v319 = vpop.permute.xlu0 %318
        %320 = vrot.lane.b32.xlu0 %v279, 127
        %v321 = vpop.permute.xlu0 %320
        %322 = vrot.lane.b32.xlu0 %v280, 127
        %v323 = vpop.permute.xlu0 %322
        %324 = vrot.lane.b32.xlu0 %v281, 127
        %v325 = vpop.permute.xlu0 %324
        %326 = vrot.lane.b32.xlu0 %v282, 127
        %v327 = vpop.permute.xlu0 %326
        %328 = vrot.lane.b32.xlu0 %v283, 127
        %v329 = vpop.permute.xlu0 %328
        %330 = vrot.lane.b32.xlu0 %v284, 127
        %v331 = vpop.permute.xlu0 %330
        %332 = vrot.lane.b32.xlu0 %v285, 127
        %v333 = vpop.permute.xlu0 %332
        %334 = vrot.lane.b32.xlu0 %v286, 127
        %v335 = vpop.permute.xlu0 %334
        %336 = vrot.lane.b32.xlu0 %v287, 127
        %v337 = vpop.permute.xlu0 %336
        %338 = vrot.lane.b32.xlu0 %v288, 127
        %v339 = vpop.permute.xlu0 %338
        %340 = vrot.lane.b32.xlu0 %v289, 127
        %v341 = vpop.permute.xlu0 %340
        %342 = vrot.lane.b32.xlu0 %v290, 127
        %v343 = vpop.permute.xlu0 %342
        %344 = vrot.lane.b32.xlu0 %v291, 127
        %v345 = vpop.permute.xlu0 %344
        %346 = vrot.lane.b32.xlu0 %v292, 127
        %v347 = vpop.permute.xlu0 %346
        %348 = vrot.lane.b32.xlu0 %v293, 127
        %v349 = vpop.permute.xlu0 %348
        %350 = vrot.lane.b32.xlu0 %v294, 127
        %v351 = vpop.permute.xlu0 %350
        %352 = vrot.lane.b32.xlu0 %v295, 127
        %v353 = vpop.permute.xlu0 %352
        %354 = vrot.lane.b32.xlu0 %v296, 127
        %v355 = vpop.permute.xlu0 %354
        %356 = vrot.lane.b32.xlu0 %v297, 127
        %v357 = vpop.permute.xlu0 %356
        %358 = vrot.lane.b32.xlu0 %v298, 127
        %v359 = vpop.permute.xlu0 %358
        %360 = vrot.lane.b32.xlu0 %v299, 127
        %v361 = vpop.permute.xlu0 %360
        %362 = vrot.lane.b32.xlu0 %v300, 127
        %v363 = vpop.permute.xlu0 %362
        %364 = vrot.lane.b32.xlu0 %v301, 127
        %v365 = vpop.permute.xlu0 %364
        %v366 = vlaneseq
        %v367 = vand.u32 %v366, 127
        %vm368 = vcmp.lt.s32.totalorder %v367, 127
        %v369 = vsel %vm368, %v363, %v365
        %v370 = vsel %vm368, %v361, %v363
        %v371 = vsel %vm368, %v359, %v361
        %v372 = vsel %vm368, %v357, %v359
        %v373 = vsel %vm368, %v355, %v357
        %v374 = vsel %vm368, %v353, %v355
        %v375 = vsel %vm368, %v351, %v353
        %v376 = vsel %vm368, %v349, %v351
        %v377 = vsel %vm368, %v347, %v349
        %v378 = vsel %vm368, %v345, %v347
        %v379 = vsel %vm368, %v343, %v345
        %v380 = vsel %vm368, %v341, %v343
        %v381 = vsel %vm368, %v339, %v341
        %v382 = vsel %vm368, %v337, %v339
        %v383 = vsel %vm368, %v335, %v337
        %v384 = vsel %vm368, %v333, %v335
        %v385 = vsel %vm368, %v331, %v333
        %v386 = vsel %vm368, %v329, %v331
        %v387 = vsel %vm368, %v327, %v329
        %v388 = vsel %vm368, %v325, %v327
        %v389 = vsel %vm368, %v323, %v325
        %v390 = vsel %vm368, %v321, %v323
        %v391 = vsel %vm368, %v319, %v321
        %v392 = vsel %vm368, %v317, %v319
        %v393 = vsel %vm368, %v315, %v317
        %v394 = vsel %vm368, %v313, %v315
        %v395 = vsel %vm368, %v311, %v313
        %v396 = vsel %vm368, %v309, %v311
        %v397 = vsel %vm368, %v307, %v309
        %v398 = vsel %vm368, %v305, %v307
        %v399 = vsel %vm368, %v303, %v305
        %v400 = vsel %vm368, %v365, %v303
        %401 = vst [vmem:[#allocation2 + $0x100] sm:$0xff] %v399
        %402 = vst [vmem:[#allocation2 + $0x108] sm:$0xff] %v398
        %403 = vst [vmem:[#allocation2 + $0x110] sm:$0xff] %v397
        %404 = vst [vmem:[#allocation2 + $0x118] sm:$0xff] %v396
        %405 = vst [vmem:[#allocation2 + $0x120] sm:$0xff] %v395
        %406 = vst [vmem:[#allocation2 + $0x128] sm:$0xff] %v394
        %407 = vst [vmem:[#allocation2 + $0x130] sm:$0xff] %v393
        %408 = vst [vmem:[#allocation2 + $0x138] sm:$0xff] %v392
        %409 = vst [vmem:[#allocation2 + $0x140] sm:$0xff] %v391
        %410 = vst [vmem:[#allocation2 + $0x148] sm:$0xff] %v390
        %411 = vst [vmem:[#allocation2 + $0x150] sm:$0xff] %v389
        %412 = vst [vmem:[#allocation2 + $0x158] sm:$0xff] %v388
        %413 = vst [vmem:[#allocation2 + $0x160] sm:$0xff] %v387
        %414 = vst [vmem:[#allocation2 + $0x168] sm:$0xff] %v386
        %415 = vst [vmem:[#allocation2 + $0x170] sm:$0xff] %v385
        %416 = vst [vmem:[#allocation2 + $0x178] sm:$0xff] %v384
        %417 = vst [vmem:[#allocation2 + $0x180] sm:$0xff] %v383
        %418 = vst [vmem:[#allocation2 + $0x188] sm:$0xff] %v382
        %419 = vst [vmem:[#allocation2 + $0x190] sm:$0xff] %v381
        %420 = vst [vmem:[#allocation2 + $0x198] sm:$0xff] %v380
        %421 = vst [vmem:[#allocation2 + $0x1a0] sm:$0xff] %v379
        %422 = vst [vmem:[#allocation2 + $0x1a8] sm:$0xff] %v378
        %423 = vst [vmem:[#allocation2 + $0x1b0] sm:$0xff] %v377
        %424 = vst [vmem:[#allocation2 + $0x1b8] sm:$0xff] %v376
        %425 = vst [vmem:[#allocation2 + $0x1c0] sm:$0xff] %v375
        %426 = vst [vmem:[#allocation2 + $0x1c8] sm:$0xff] %v374
        %427 = vst [vmem:[#allocation2 + $0x1d0] sm:$0xff] %v373
        %428 = vst [vmem:[#allocation2 + $0x1d8] sm:$0xff] %v372
        %429 = vst [vmem:[#allocation2 + $0x1e0] sm:$0xff] %v371
        %430 = vst [vmem:[#allocation2 + $0x1e8] sm:$0xff] %v370
        %431 = vst [vmem:[#allocation2 + $0x1f0] sm:$0xff] %v369
        %432 = vst [vmem:[#allocation2 + $0x1f8] sm:$0xff] %v400
        %v433 = vld [vmem:[%s182] sm:$0xff]
        %v434 = vld [vmem:[%s182 + $0x8] sm:$0xff]
        %v435 = vld [vmem:[%s182 + $0x10] sm:$0xff]
        %v436 = vld [vmem:[%s182 + $0x18] sm:$0xff]
        %v437 = vld [vmem:[%s182 + $0x20] sm:$0xff]
        %v438 = vld [vmem:[%s182 + $0x28] sm:$0xff]
        %v439 = vld [vmem:[%s182 + $0x30] sm:$0xff]
        %v440 = vld [vmem:[%s182 + $0x38] sm:$0xff]
        %v441 = vld [vmem:[%s182 + $0x40] sm:$0xff]
        %v442 = vld [vmem:[%s182 + $0x48] sm:$0xff]
        %v443 = vld [vmem:[%s182 + $0x50] sm:$0xff]
        %v444 = vld [vmem:[%s182 + $0x58] sm:$0xff]
        %v445 = vld [vmem:[%s182 + $0x60] sm:$0xff]
        %v446 = vld [vmem:[%s182 + $0x68] sm:$0xff]
        %v447 = vld [vmem:[%s182 + $0x70] sm:$0xff]
        %v448 = vld [vmem:[%s182 + $0x78] sm:$0xff]
        %v449 = vld [vmem:[%s182 + $0x80] sm:$0xff]
        %v450 = vld [vmem:[%s182 + $0x88] sm:$0xff]
        %v451 = vld [vmem:[%s182 + $0x90] sm:$0xff]
        %v452 = vld [vmem:[%s182 + $0x98] sm:$0xff]
        %v453 = vld [vmem:[%s182 + $0xa0] sm:$0xff]
        %v454 = vld [vmem:[%s182 + $0xa8] sm:$0xff]
        %v455 = vld [vmem:[%s182 + $0xb0] sm:$0xff]
        %v456 = vld [vmem:[%s182 + $0xb8] sm:$0xff]
        %v457 = vld [vmem:[%s182 + $0xc0] sm:$0xff]
        %v458 = vld [vmem:[%s182 + $0xc8] sm:$0xff]
        %v459 = vld [vmem:[%s182 + $0xd0] sm:$0xff]
        %v460 = vld [vmem:[%s182 + $0xd8] sm:$0xff]
        %v461 = vld [vmem:[%s182 + $0xe0] sm:$0xff]
        %v462 = vld [vmem:[%s182 + $0xe8] sm:$0xff]
        %v463 = vld [vmem:[%s182 + $0xf0] sm:$0xff]
        %v464 = vld [vmem:[%s182 + $0xf8] sm:$0xff]
        %465 = vrot.lane.b32.xlu0 %v433, 126
        %v466 = vpop.permute.xlu0 %465
        %467 = vrot.lane.b32.xlu0 %v434, 126
        %v468 = vpop.permute.xlu0 %467
        %469 = vrot.lane.b32.xlu0 %v435, 126
        %v470 = vpop.permute.xlu0 %469
        %471 = vrot.lane.b32.xlu0 %v436, 126
        %v472 = vpop.permute.xlu0 %471
        %473 = vrot.lane.b32.xlu0 %v437, 126
        %v474 = vpop.permute.xlu0 %473
        %475 = vrot.lane.b32.xlu0 %v438, 126
        %v476 = vpop.permute.xlu0 %475
        %477 = vrot.lane.b32.xlu0 %v439, 126
        %v478 = vpop.permute.xlu0 %477
        %479 = vrot.lane.b32.xlu0 %v440, 126
        %v480 = vpop.permute.xlu0 %479
        %481 = vrot.lane.b32.xlu0 %v441, 126
        %v482 = vpop.permute.xlu0 %481
        %483 = vrot.lane.b32.xlu0 %v442, 126
        %v484 = vpop.permute.xlu0 %483
        %485 = vrot.lane.b32.xlu0 %v443, 126
        %v486 = vpop.permute.xlu0 %485
        %487 = vrot.lane.b32.xlu0 %v444, 126
        %v488 = vpop.permute.xlu0 %487
        %489 = vrot.lane.b32.xlu0 %v445, 126
        %v490 = vpop.permute.xlu0 %489
        %491 = vrot.lane.b32.xlu0 %v446, 126
        %v492 = vpop.permute.xlu0 %491
        %493 = vrot.lane.b32.xlu0 %v447, 126
        %v494 = vpop.permute.xlu0 %493
        %495 = vrot.lane.b32.xlu0 %v448, 126
        %v496 = vpop.permute.xlu0 %495
        %497 = vrot.lane.b32.xlu0 %v449, 126
        %v498 = vpop.permute.xlu0 %497
        %499 = vrot.lane.b32.xlu0 %v450, 126
        %v500 = vpop.permute.xlu0 %499
        %501 = vrot.lane.b32.xlu0 %v451, 126
        %v502 = vpop.permute.xlu0 %501
        %503 = vrot.lane.b32.xlu0 %v452, 126
        %v504 = vpop.permute.xlu0 %503
        %505 = vrot.lane.b32.xlu0 %v453, 126
        %v506 = vpop.permute.xlu0 %505
        %507 = vrot.lane.b32.xlu0 %v454, 126
        %v508 = vpop.permute.xlu0 %507
        %509 = vrot.lane.b32.xlu0 %v455, 126
        %v510 = vpop.permute.xlu0 %509
        %511 = vrot.lane.b32.xlu0 %v456, 126
        %v512 = vpop.permute.xlu0 %511
        %513 = vrot.lane.b32.xlu0 %v457, 126
        %v514 = vpop.permute.xlu0 %513
        %515 = vrot.lane.b32.xlu0 %v458, 126
        %v516 = vpop.permute.xlu0 %515
        %517 = vrot.lane.b32.xlu0 %v459, 126
        %v518 = vpop.permute.xlu0 %517
        %519 = vrot.lane.b32.xlu0 %v460, 126
        %v520 = vpop.permute.xlu0 %519
        %521 = vrot.lane.b32.xlu0 %v461, 126
        %v522 = vpop.permute.xlu0 %521
        %523 = vrot.lane.b32.xlu0 %v462, 126
        %v524 = vpop.permute.xlu0 %523
        %525 = vrot.lane.b32.xlu0 %v463, 126
        %v526 = vpop.permute.xlu0 %525
        %527 = vrot.lane.b32.xlu0 %v464, 126
        %v528 = vpop.permute.xlu0 %527
        %vm529 = vcmp.lt.s32.totalorder %v367, 126
        %v530 = vsel %vm529, %v526, %v528
        %v531 = vsel %vm529, %v524, %v526
        %v532 = vsel %vm529, %v522, %v524
        %v533 = vsel %vm529, %v520, %v522
        %v534 = vsel %vm529, %v518, %v520
        %v535 = vsel %vm529, %v516, %v518
        %v536 = vsel %vm529, %v514, %v516
        %v537 = vsel %vm529, %v512, %v514
        %v538 = vsel %vm529, %v510, %v512
        %v539 = vsel %vm529, %v508, %v510
        %v540 = vsel %vm529, %v506, %v508
        %v541 = vsel %vm529, %v504, %v506
        %v542 = vsel %vm529, %v502, %v504
        %v543 = vsel %vm529, %v500, %v502
        %v544 = vsel %vm529, %v498, %v500
        %v545 = vsel %vm529, %v496, %v498
        %v546 = vsel %vm529, %v494, %v496
        %v547 = vsel %vm529, %v492, %v494
        %v548 = vsel %vm529, %v490, %v492
        %v549 = vsel %vm529, %v488, %v490
        %v550 = vsel %vm529, %v486, %v488
        %v551 = vsel %vm529, %v484, %v486
        %v552 = vsel %vm529, %v482, %v484
        %v553 = vsel %vm529, %v480, %v482
        %v554 = vsel %vm529, %v478, %v480
        %v555 = vsel %vm529, %v476, %v478
        %v556 = vsel %vm529, %v474, %v476
        %v557 = vsel %vm529, %v472, %v474
        %v558 = vsel %vm529, %v470, %v472
        %v559 = vsel %vm529, %v468, %v470
        %v560 = vsel %vm529, %v466, %v468
        %v561 = vsel %vm529, %v528, %v466
        %562 = vst [vmem:[#allocation2 + $0x200] sm:$0xff] %v560
        %563 = vst [vmem:[#allocation2 + $0x208] sm:$0xff] %v559
        %564 = vst [vmem:[#allocation2 + $0x210] sm:$0xff] %v558
        %565 = vst [vmem:[#allocation2 + $0x218] sm:$0xff] %v557
        %566 = vst [vmem:[#allocation2 + $0x220] sm:$0xff] %v556
        %567 = vst [vmem:[#allocation2 + $0x228] sm:$0xff] %v555
        %568 = vst [vmem:[#allocation2 + $0x230] sm:$0xff] %v554
        %569 = vst [vmem:[#allocation2 + $0x238] sm:$0xff] %v553
        %570 = vst [vmem:[#allocation2 + $0x240] sm:$0xff] %v552
        %571 = vst [vmem:[#allocation2 + $0x248] sm:$0xff] %v551
        %572 = vst [vmem:[#allocation2 + $0x250] sm:$0xff] %v550
        %573 = vst [vmem:[#allocation2 + $0x258] sm:$0xff] %v549
        %574 = vst [vmem:[#allocation2 + $0x260] sm:$0xff] %v548
        %575 = vst [vmem:[#allocation2 + $0x268] sm:$0xff] %v547
        %576 = vst [vmem:[#allocation2 + $0x270] sm:$0xff] %v546
        %577 = vst [vmem:[#allocation2 + $0x278] sm:$0xff] %v545
        %578 = vst [vmem:[#allocation2 + $0x280] sm:$0xff] %v544
        %579 = vst [vmem:[#allocation2 + $0x288] sm:$0xff] %v543
        %580 = vst [vmem:[#allocation2 + $0x290] sm:$0xff] %v542
        %581 = vst [vmem:[#allocation2 + $0x298] sm:$0xff] %v541
        %582 = vst [vmem:[#allocation2 + $0x2a0] sm:$0xff] %v540
        %583 = vst [vmem:[#allocation2 + $0x2a8] sm:$0xff] %v539
        %584 = vst [vmem:[#allocation2 + $0x2b0] sm:$0xff] %v538
        %585 = vst [vmem:[#allocation2 + $0x2b8] sm:$0xff] %v537
        %586 = vst [vmem:[#allocation2 + $0x2c0] sm:$0xff] %v536
        %587 = vst [vmem:[#allocation2 + $0x2c8] sm:$0xff] %v535
        %588 = vst [vmem:[#allocation2 + $0x2d0] sm:$0xff] %v534
        %589 = vst [vmem:[#allocation2 + $0x2d8] sm:$0xff] %v533
        %590 = vst [vmem:[#allocation2 + $0x2e0] sm:$0xff] %v532
        %591 = vst [vmem:[#allocation2 + $0x2e8] sm:$0xff] %v531
        %592 = vst [vmem:[#allocation2 + $0x2f0] sm:$0xff] %v530
        %593 = vst [vmem:[#allocation2 + $0x2f8] sm:$0xff] %v561
        %v594 = vld [vmem:[%s182 + $0x8] sm:$0xff]
        %v595 = vld [vmem:[%s182 + $0x10] sm:$0xff]
        %v596 = vld [vmem:[%s182 + $0x18] sm:$0xff]
        %v597 = vld [vmem:[%s182 + $0x20] sm:$0xff]
        %v598 = vld [vmem:[%s182 + $0x28] sm:$0xff]
        %v599 = vld [vmem:[%s182 + $0x30] sm:$0xff]
        %v600 = vld [vmem:[%s182 + $0x38] sm:$0xff]
        %v601 = vld [vmem:[%s182 + $0x40] sm:$0xff]
        %v602 = vld [vmem:[%s182 + $0x48] sm:$0xff]
        %v603 = vld [vmem:[%s182 + $0x50] sm:$0xff]
        %v604 = vld [vmem:[%s182 + $0x58] sm:$0xff]
        %v605 = vld [vmem:[%s182 + $0x60] sm:$0xff]
        %v606 = vld [vmem:[%s182 + $0x68] sm:$0xff]
        %v607 = vld [vmem:[%s182 + $0x70] sm:$0xff]
        %v608 = vld [vmem:[%s182 + $0x78] sm:$0xff]
        %v609 = vld [vmem:[%s182 + $0x80] sm:$0xff]
        %v610 = vld [vmem:[%s182 + $0x88] sm:$0xff]
        %v611 = vld [vmem:[%s182 + $0x90] sm:$0xff]
        %v612 = vld [vmem:[%s182 + $0x98] sm:$0xff]
        %v613 = vld [vmem:[%s182 + $0xa0] sm:$0xff]
        %v614 = vld [vmem:[%s182 + $0xa8] sm:$0xff]
        %v615 = vld [vmem:[%s182 + $0xb0] sm:$0xff]
        %v616 = vld [vmem:[%s182 + $0xb8] sm:$0xff]
        %v617 = vld [vmem:[%s182 + $0xc0] sm:$0xff]
        %v618 = vld [vmem:[%s182 + $0xc8] sm:$0xff]
        %v619 = vld [vmem:[%s182 + $0xd0] sm:$0xff]
        %v620 = vld [vmem:[%s182 + $0xd8] sm:$0xff]
        %v621 = vld [vmem:[%s182 + $0xe0] sm:$0xff]
        %v622 = vld [vmem:[%s182 + $0xe8] sm:$0xff]
        %v623 = vld [vmem:[%s182 + $0xf0] sm:$0xff]
        %v624 = vld [vmem:[%s182 + $0xf8] sm:$0xff]
        %v625 = vld [vmem:[%s182 + $0x100] sm:$0xff]
        %626 = vst [vmem:[#allocation2 + $0x300] sm:$0xff] %v594
        %627 = vst [vmem:[#allocation2 + $0x308] sm:$0xff] %v595
        %628 = vst [vmem:[#allocation2 + $0x310] sm:$0xff] %v596
        %629 = vst [vmem:[#allocation2 + $0x318] sm:$0xff] %v597
        %630 = vst [vmem:[#allocation2 + $0x320] sm:$0xff] %v598
        %631 = vst [vmem:[#allocation2 + $0x328] sm:$0xff] %v599
        %632 = vst [vmem:[#allocation2 + $0x330] sm:$0xff] %v600
        %633 = vst [vmem:[#allocation2 + $0x338] sm:$0xff] %v601
        %634 = vst [vmem:[#allocation2 + $0x340] sm:$0xff] %v602
        %635 = vst [vmem:[#allocation2 + $0x348] sm:$0xff] %v603
        %636 = vst [vmem:[#allocation2 + $0x350] sm:$0xff] %v604
        %637 = vst [vmem:[#allocation2 + $0x358] sm:$0xff] %v605
        %638 = vst [vmem:[#allocation2 + $0x360] sm:$0xff] %v606
        %639 = vst [vmem:[#allocation2 + $0x368] sm:$0xff] %v607
        %640 = vst [vmem:[#allocation2 + $0x370] sm:$0xff] %v608
        %641 = vst [vmem:[#allocation2 + $0x378] sm:$0xff] %v609
        %642 = vst [vmem:[#allocation2 + $0x380] sm:$0xff] %v610
        %643 = vst [vmem:[#allocation2 + $0x388] sm:$0xff] %v611
        %644 = vst [vmem:[#allocation2 + $0x390] sm:$0xff] %v612
        %645 = vst [vmem:[#allocation2 + $0x398] sm:$0xff] %v613
        %646 = vst [vmem:[#allocation2 + $0x3a0] sm:$0xff] %v614
        %647 = vst [vmem:[#allocation2 + $0x3a8] sm:$0xff] %v615
        %648 = vst [vmem:[#allocation2 + $0x3b0] sm:$0xff] %v616
        %649 = vst [vmem:[#allocation2 + $0x3b8] sm:$0xff] %v617
        %650 = vst [vmem:[#allocation2 + $0x3c0] sm:$0xff] %v618
        %651 = vst [vmem:[#allocation2 + $0x3c8] sm:$0xff] %v619
        %652 = vst [vmem:[#allocation2 + $0x3d0] sm:$0xff] %v620
        %653 = vst [vmem:[#allocation2 + $0x3d8] sm:$0xff] %v621
        %654 = vst [vmem:[#allocation2 + $0x3e0] sm:$0xff] %v622
        %655 = vst [vmem:[#allocation2 + $0x3e8] sm:$0xff] %v623
        %656 = vst [vmem:[#allocation2 + $0x3f0] sm:$0xff] %v624
        %657 = vst [vmem:[#allocation2 + $0x3f8] sm:$0xff] %v625
        %v658 = vld [vmem:[%s182 + $0x8] sm:$0xff]
        %v659 = vld [vmem:[%s182 + $0x10] sm:$0xff]
        %v660 = vld [vmem:[%s182 + $0x18] sm:$0xff]
        %v661 = vld [vmem:[%s182 + $0x20] sm:$0xff]
        %v662 = vld [vmem:[%s182 + $0x28] sm:$0xff]
        %v663 = vld [vmem:[%s182 + $0x30] sm:$0xff]
        %v664 = vld [vmem:[%s182 + $0x38] sm:$0xff]
        %v665 = vld [vmem:[%s182 + $0x40] sm:$0xff]
        %v666 = vld [vmem:[%s182 + $0x48] sm:$0xff]
        %v667 = vld [vmem:[%s182 + $0x50] sm:$0xff]
        %v668 = vld [vmem:[%s182 + $0x58] sm:$0xff]
        %v669 = vld [vmem:[%s182 + $0x60] sm:$0xff]
        %v670 = vld [vmem:[%s182 + $0x68] sm:$0xff]
        %v671 = vld [vmem:[%s182 + $0x70] sm:$0xff]
        %v672 = vld [vmem:[%s182 + $0x78] sm:$0xff]
        %v673 = vld [vmem:[%s182 + $0x80] sm:$0xff]
        %v674 = vld [vmem:[%s182 + $0x88] sm:$0xff]
        %v675 = vld [vmem:[%s182 + $0x90] sm:$0xff]
        %v676 = vld [vmem:[%s182 + $0x98] sm:$0xff]
        %v677 = vld [vmem:[%s182 + $0xa0] sm:$0xff]
        %v678 = vld [vmem:[%s182 + $0xa8] sm:$0xff]
        %v679 = vld [vmem:[%s182 + $0xb0] sm:$0xff]
        %v680 = vld [vmem:[%s182 + $0xb8] sm:$0xff]
        %v681 = vld [vmem:[%s182 + $0xc0] sm:$0xff]
        %v682 = vld [vmem:[%s182 + $0xc8] sm:$0xff]
        %v683 = vld [vmem:[%s182 + $0xd0] sm:$0xff]
        %v684 = vld [vmem:[%s182 + $0xd8] sm:$0xff]
        %v685 = vld [vmem:[%s182 + $0xe0] sm:$0xff]
        %v686 = vld [vmem:[%s182 + $0xe8] sm:$0xff]
        %v687 = vld [vmem:[%s182 + $0xf0] sm:$0xff]
        %v688 = vld [vmem:[%s182 + $0xf8] sm:$0xff]
        %v689 = vld [vmem:[%s182 + $0x100] sm:$0xff]
        %690 = vrot.lane.b32.xlu0 %v658, 127
        %v691 = vpop.permute.xlu0 %690
        %692 = vrot.lane.b32.xlu0 %v659, 127
        %v693 = vpop.permute.xlu0 %692
        %694 = vrot.lane.b32.xlu0 %v660, 127
        %v695 = vpop.permute.xlu0 %694
        %696 = vrot.lane.b32.xlu0 %v661, 127
        %v697 = vpop.permute.xlu0 %696
        %698 = vrot.lane.b32.xlu0 %v662, 127
        %v699 = vpop.permute.xlu0 %698
        %700 = vrot.lane.b32.xlu0 %v663, 127
        %v701 = vpop.permute.xlu0 %700
        %702 = vrot.lane.b32.xlu0 %v664, 127
        %v703 = vpop.permute.xlu0 %702
        %704 = vrot.lane.b32.xlu0 %v665, 127
        %v705 = vpop.permute.xlu0 %704
        %706 = vrot.lane.b32.xlu0 %v666, 127
        %v707 = vpop.permute.xlu0 %706
        %708 = vrot.lane.b32.xlu0 %v667, 127
        %v709 = vpop.permute.xlu0 %708
        %710 = vrot.lane.b32.xlu0 %v668, 127
        %v711 = vpop.permute.xlu0 %710
        %712 = vrot.lane.b32.xlu0 %v669, 127
        %v713 = vpop.permute.xlu0 %712
        %714 = vrot.lane.b32.xlu0 %v670, 127
        %v715 = vpop.permute.xlu0 %714
        %716 = vrot.lane.b32.xlu0 %v671, 127
        %v717 = vpop.permute.xlu0 %716
        %718 = vrot.lane.b32.xlu0 %v672, 127
        %v719 = vpop.permute.xlu0 %718
        %720 = vrot.lane.b32.xlu0 %v673, 127
        %v721 = vpop.permute.xlu0 %720
        %722 = vrot.lane.b32.xlu0 %v674, 127
        %v723 = vpop.permute.xlu0 %722
        %724 = vrot.lane.b32.xlu0 %v675, 127
        %v725 = vpop.permute.xlu0 %724
        %726 = vrot.lane.b32.xlu0 %v676, 127
        %v727 = vpop.permute.xlu0 %726
        %728 = vrot.lane.b32.xlu0 %v677, 127
        %v729 = vpop.permute.xlu0 %728
        %730 = vrot.lane.b32.xlu0 %v678, 127
        %v731 = vpop.permute.xlu0 %730
        %732 = vrot.lane.b32.xlu0 %v679, 127
        %v733 = vpop.permute.xlu0 %732
        %734 = vrot.lane.b32.xlu0 %v680, 127
        %v735 = vpop.permute.xlu0 %734
        %736 = vrot.lane.b32.xlu0 %v681, 127
        %v737 = vpop.permute.xlu0 %736
        %738 = vrot.lane.b32.xlu0 %v682, 127
        %v739 = vpop.permute.xlu0 %738
        %740 = vrot.lane.b32.xlu0 %v683, 127
        %v741 = vpop.permute.xlu0 %740
        %742 = vrot.lane.b32.xlu0 %v684, 127
        %v743 = vpop.permute.xlu0 %742
        %744 = vrot.lane.b32.xlu0 %v685, 127
        %v745 = vpop.permute.xlu0 %744
        %746 = vrot.lane.b32.xlu0 %v686, 127
        %v747 = vpop.permute.xlu0 %746
        %748 = vrot.lane.b32.xlu0 %v687, 127
        %v749 = vpop.permute.xlu0 %748
        %750 = vrot.lane.b32.xlu0 %v688, 127
        %v751 = vpop.permute.xlu0 %750
        %752 = vrot.lane.b32.xlu0 %v689, 127
        %v753 = vpop.permute.xlu0 %752
        %v754 = vsel %vm368, %v751, %v753
        %v755 = vsel %vm368, %v749, %v751
        %v756 = vsel %vm368, %v747, %v749
        %v757 = vsel %vm368, %v745, %v747
        %v758 = vsel %vm368, %v743, %v745
        %v759 = vsel %vm368, %v741, %v743
        %v760 = vsel %vm368, %v739, %v741
        %v761 = vsel %vm368, %v737, %v739
        %v762 = vsel %vm368, %v735, %v737
        %v763 = vsel %vm368, %v733, %v735
        %v764 = vsel %vm368, %v731, %v733
        %v765 = vsel %vm368, %v729, %v731
        %v766 = vsel %vm368, %v727, %v729
        %v767 = vsel %vm368, %v725, %v727
        %v768 = vsel %vm368, %v723, %v725
        %v769 = vsel %vm368, %v721, %v723
        %v770 = vsel %vm368, %v719, %v721
        %v771 = vsel %vm368, %v717, %v719
        %v772 = vsel %vm368, %v715, %v717
        %v773 = vsel %vm368, %v713, %v715
        %v774 = vsel %vm368, %v711, %v713
        %v775 = vsel %vm368, %v709, %v711
        %v776 = vsel %vm368, %v707, %v709
        %v777 = vsel %vm368, %v705, %v707
        %v778 = vsel %vm368, %v703, %v705
        %v779 = vsel %vm368, %v701, %v703
        %v780 = vsel %vm368, %v699, %v701
        %v781 = vsel %vm368, %v697, %v699
        %v782 = vsel %vm368, %v695, %v697
        %v783 = vsel %vm368, %v693, %v695
        %v784 = vsel %vm368, %v691, %v693
        %v785 = vsel %vm368, %v753, %v691
        %786 = vst [vmem:[#allocation2 + $0x400] sm:$0xff] %v784
        %787 = vst [vmem:[#allocation2 + $0x408] sm:$0xff] %v783
        %788 = vst [vmem:[#allocation2 + $0x410] sm:$0xff] %v782
        %789 = vst [vmem:[#allocation2 + $0x418] sm:$0xff] %v781
        %790 = vst [vmem:[#allocation2 + $0x420] sm:$0xff] %v780
        %791 = vst [vmem:[#allocation2 + $0x428] sm:$0xff] %v779
        %792 = vst [vmem:[#allocation2 + $0x430] sm:$0xff] %v778
        %793 = vst [vmem:[#allocation2 + $0x438] sm:$0xff] %v777
        %794 = vst [vmem:[#allocation2 + $0x440] sm:$0xff] %v776
        %795 = vst [vmem:[#allocation2 + $0x448] sm:$0xff] %v775
        %796 = vst [vmem:[#allocation2 + $0x450] sm:$0xff] %v774
        %797 = vst [vmem:[#allocation2 + $0x458] sm:$0xff] %v773
        %798 = vst [vmem:[#allocation2 + $0x460] sm:$0xff] %v772
        %799 = vst [vmem:[#allocation2 + $0x468] sm:$0xff] %v771
        %800 = vst [vmem:[#allocation2 + $0x470] sm:$0xff] %v770
        %801 = vst [vmem:[#allocation2 + $0x478] sm:$0xff] %v769
        %802 = vst [vmem:[#allocation2 + $0x480] sm:$0xff] %v768
        %803 = vst [vmem:[#allocation2 + $0x488] sm:$0xff] %v767
        %804 = vst [vmem:[#allocation2 + $0x490] sm:$0xff] %v766
        %805 = vst [vmem:[#allocation2 + $0x498] sm:$0xff] %v765
        %806 = vst [vmem:[#allocation2 + $0x4a0] sm:$0xff] %v764
        %807 = vst [vmem:[#allocation2 + $0x4a8] sm:$0xff] %v763
        %808 = vst [vmem:[#allocation2 + $0x4b0] sm:$0xff] %v762
        %809 = vst [vmem:[#allocation2 + $0x4b8] sm:$0xff] %v761
        %810 = vst [vmem:[#allocation2 + $0x4c0] sm:$0xff] %v760
        %811 = vst [vmem:[#allocation2 + $0x4c8] sm:$0xff] %v759
        %812 = vst [vmem:[#allocation2 + $0x4d0] sm:$0xff] %v758
        %813 = vst [vmem:[#allocation2 + $0x4d8] sm:$0xff] %v757
        %814 = vst [vmem:[#allocation2 + $0x4e0] sm:$0xff] %v756
        %815 = vst [vmem:[#allocation2 + $0x4e8] sm:$0xff] %v755
        %816 = vst [vmem:[#allocation2 + $0x4f0] sm:$0xff] %v754
        %817 = vst [vmem:[#allocation2 + $0x4f8] sm:$0xff] %v785
        %v818 = vld [vmem:[%s182 + $0x8] sm:$0xff]
        %v819 = vld [vmem:[%s182 + $0x10] sm:$0xff]
        %v820 = vld [vmem:[%s182 + $0x18] sm:$0xff]
        %v821 = vld [vmem:[%s182 + $0x20] sm:$0xff]
        %v822 = vld [vmem:[%s182 + $0x28] sm:$0xff]
        %v823 = vld [vmem:[%s182 + $0x30] sm:$0xff]
        %v824 = vld [vmem:[%s182 + $0x38] sm:$0xff]
        %v825 = vld [vmem:[%s182 + $0x40] sm:$0xff]
        %v826 = vld [vmem:[%s182 + $0x48] sm:$0xff]
        %v827 = vld [vmem:[%s182 + $0x50] sm:$0xff]
        %v828 = vld [vmem:[%s182 + $0x58] sm:$0xff]
        %v829 = vld [vmem:[%s182 + $0x60] sm:$0xff]
        %v830 = vld [vmem:[%s182 + $0x68] sm:$0xff]
        %v831 = vld [vmem:[%s182 + $0x70] sm:$0xff]
        %v832 = vld [vmem:[%s182 + $0x78] sm:$0xff]
        %v833 = vld [vmem:[%s182 + $0x80] sm:$0xff]
        %v834 = vld [vmem:[%s182 + $0x88] sm:$0xff]
        %v835 = vld [vmem:[%s182 + $0x90] sm:$0xff]
        %v836 = vld [vmem:[%s182 + $0x98] sm:$0xff]
        %v837 = vld [vmem:[%s182 + $0xa0] sm:$0xff]
        %v838 = vld [vmem:[%s182 + $0xa8] sm:$0xff]
        %v839 = vld [vmem:[%s182 + $0xb0] sm:$0xff]
        %v840 = vld [vmem:[%s182 + $0xb8] sm:$0xff]
        %v841 = vld [vmem:[%s182 + $0xc0] sm:$0xff]
        %v842 = vld [vmem:[%s182 + $0xc8] sm:$0xff]
        %v843 = vld [vmem:[%s182 + $0xd0] sm:$0xff]
        %v844 = vld [vmem:[%s182 + $0xd8] sm:$0xff]
        %v845 = vld [vmem:[%s182 + $0xe0] sm:$0xff]
        %v846 = vld [vmem:[%s182 + $0xe8] sm:$0xff]
        %v847 = vld [vmem:[%s182 + $0xf0] sm:$0xff]
        %v848 = vld [vmem:[%s182 + $0xf8] sm:$0xff]
        %v849 = vld [vmem:[%s182 + $0x100] sm:$0xff]
        %850 = vrot.lane.b32.xlu0 %v818, 126
        %v851 = vpop.permute.xlu0 %850
        %852 = vrot.lane.b32.xlu0 %v819, 126
        %v853 = vpop.permute.xlu0 %852
        %854 = vrot.lane.b32.xlu0 %v820, 126
        %v855 = vpop.permute.xlu0 %854
        %856 = vrot.lane.b32.xlu0 %v821, 126
        %v857 = vpop.permute.xlu0 %856
        %858 = vrot.lane.b32.xlu0 %v822, 126
        %v859 = vpop.permute.xlu0 %858
        %860 = vrot.lane.b32.xlu0 %v823, 126
        %v861 = vpop.permute.xlu0 %860
        %862 = vrot.lane.b32.xlu0 %v824, 126
        %v863 = vpop.permute.xlu0 %862
        %864 = vrot.lane.b32.xlu0 %v825, 126
        %v865 = vpop.permute.xlu0 %864
        %866 = vrot.lane.b32.xlu0 %v826, 126
        %v867 = vpop.permute.xlu0 %866
        %868 = vrot.lane.b32.xlu0 %v827, 126
        %v869 = vpop.permute.xlu0 %868
        %870 = vrot.lane.b32.xlu0 %v828, 126
        %v871 = vpop.permute.xlu0 %870
        %872 = vrot.lane.b32.xlu0 %v829, 126
        %v873 = vpop.permute.xlu0 %872
        %874 = vrot.lane.b32.xlu0 %v830, 126
        %v875 = vpop.permute.xlu0 %874
        %876 = vrot.lane.b32.xlu0 %v831, 126
        %v877 = vpop.permute.xlu0 %876
        %878 = vrot.lane.b32.xlu0 %v832, 126
        %v879 = vpop.permute.xlu0 %878
        %880 = vrot.lane.b32.xlu0 %v833, 126
        %v881 = vpop.permute.xlu0 %880
        %882 = vrot.lane.b32.xlu0 %v834, 126
        %v883 = vpop.permute.xlu0 %882
        %884 = vrot.lane.b32.xlu0 %v835, 126
        %v885 = vpop.permute.xlu0 %884
        %886 = vrot.lane.b32.xlu0 %v836, 126
        %v887 = vpop.permute.xlu0 %886
        %888 = vrot.lane.b32.xlu0 %v837, 126
        %v889 = vpop.permute.xlu0 %888
        %890 = vrot.lane.b32.xlu0 %v838, 126
        %v891 = vpop.permute.xlu0 %890
        %892 = vrot.lane.b32.xlu0 %v839, 126
        %v893 = vpop.permute.xlu0 %892
        %894 = vrot.lane.b32.xlu0 %v840, 126
        %v895 = vpop.permute.xlu0 %894
        %896 = vrot.lane.b32.xlu0 %v841, 126
        %v897 = vpop.permute.xlu0 %896
        %898 = vrot.lane.b32.xlu0 %v842, 126
        %v899 = vpop.permute.xlu0 %898
        %900 = vrot.lane.b32.xlu0 %v843, 126
        %v901 = vpop.permute.xlu0 %900
        %902 = vrot.lane.b32.xlu0 %v844, 126
        %v903 = vpop.permute.xlu0 %902
        %904 = vrot.lane.b32.xlu0 %v845, 126
        %v905 = vpop.permute.xlu0 %904
        %906 = vrot.lane.b32.xlu0 %v846, 126
        %v907 = vpop.permute.xlu0 %906
        %908 = vrot.lane.b32.xlu0 %v847, 126
        %v909 = vpop.permute.xlu0 %908
        %910 = vrot.lane.b32.xlu0 %v848, 126
        %v911 = vpop.permute.xlu0 %910
        %912 = vrot.lane.b32.xlu0 %v849, 126
        %v913 = vpop.permute.xlu0 %912
        %v914 = vsel %vm529, %v911, %v913
        %v915 = vsel %vm529, %v909, %v911
        %v916 = vsel %vm529, %v907, %v909
        %v917 = vsel %vm529, %v905, %v907
        %v918 = vsel %vm529, %v903, %v905
        %v919 = vsel %vm529, %v901, %v903
        %v920 = vsel %vm529, %v899, %v901
        %v921 = vsel %vm529, %v897, %v899
        %v922 = vsel %vm529, %v895, %v897
        %v923 = vsel %vm529, %v893, %v895
        %v924 = vsel %vm529, %v891, %v893
        %v925 = vsel %vm529, %v889, %v891
        %v926 = vsel %vm529, %v887, %v889
        %v927 = vsel %vm529, %v885, %v887
        %v928 = vsel %vm529, %v883, %v885
        %v929 = vsel %vm529, %v881, %v883
        %v930 = vsel %vm529, %v879, %v881
        %v931 = vsel %vm529, %v877, %v879
        %v932 = vsel %vm529, %v875, %v877
        %v933 = vsel %vm529, %v873, %v875
        %v934 = vsel %vm529, %v871, %v873
        %v935 = vsel %vm529, %v869, %v871
        %v936 = vsel %vm529, %v867, %v869
        %v937 = vsel %vm529, %v865, %v867
        %v938 = vsel %vm529, %v863, %v865
        %v939 = vsel %vm529, %v861, %v863
        %v940 = vsel %vm529, %v859, %v861
        %v941 = vsel %vm529, %v857, %v859
        %v942 = vsel %vm529, %v855, %v857
        %v943 = vsel %vm529, %v853, %v855
        %v944 = vsel %vm529, %v851, %v853
        %v945 = vsel %vm529, %v913, %v851
        %946 = vst [vmem:[#allocation2 + $0x500] sm:$0xff] %v944
        %947 = vst [vmem:[#allocation2 + $0x508] sm:$0xff] %v943
        %948 = vst [vmem:[#allocation2 + $0x510] sm:$0xff] %v942
        %949 = vst [vmem:[#allocation2 + $0x518] sm:$0xff] %v941
        %950 = vst [vmem:[#allocation2 + $0x520] sm:$0xff] %v940
        %951 = vst [vmem:[#allocation2 + $0x528] sm:$0xff] %v939
        %952 = vst [vmem:[#allocation2 + $0x530] sm:$0xff] %v938
        %953 = vst [vmem:[#allocation2 + $0x538] sm:$0xff] %v937
        %954 = vst [vmem:[#allocation2 + $0x540] sm:$0xff] %v936
        %955 = vst [vmem:[#allocation2 + $0x548] sm:$0xff] %v935
        %956 = vst [vmem:[#allocation2 + $0x550] sm:$0xff] %v934
        %957 = vst [vmem:[#allocation2 + $0x558] sm:$0xff] %v933
        %958 = vst [vmem:[#allocation2 + $0x560] sm:$0xff] %v932
        %959 = vst [vmem:[#allocation2 + $0x568] sm:$0xff] %v931
        %960 = vst [vmem:[#allocation2 + $0x570] sm:$0xff] %v930
        %961 = vst [vmem:[#allocation2 + $0x578] sm:$0xff] %v929
        %962 = vst [vmem:[#allocation2 + $0x580] sm:$0xff] %v928
        %963 = vst [vmem:[#allocation2 + $0x588] sm:$0xff] %v927
        %964 = vst [vmem:[#allocation2 + $0x590] sm:$0xff] %v926
        %965 = vst [vmem:[#allocation2 + $0x598] sm:$0xff] %v925
        %966 = vst [vmem:[#allocation2 + $0x5a0] sm:$0xff] %v924
        %967 = vst [vmem:[#allocation2 + $0x5a8] sm:$0xff] %v923
        %968 = vst [vmem:[#allocation2 + $0x5b0] sm:$0xff] %v922
        %969 = vst [vmem:[#allocation2 + $0x5b8] sm:$0xff] %v921
        %970 = vst [vmem:[#allocation2 + $0x5c0] sm:$0xff] %v920
        %971 = vst [vmem:[#allocation2 + $0x5c8] sm:$0xff] %v919
        %972 = vst [vmem:[#allocation2 + $0x5d0] sm:$0xff] %v918
        %973 = vst [vmem:[#allocation2 + $0x5d8] sm:$0xff] %v917
        %974 = vst [vmem:[#allocation2 + $0x5e0] sm:$0xff] %v916
        %975 = vst [vmem:[#allocation2 + $0x5e8] sm:$0xff] %v915
        %976 = vst [vmem:[#allocation2 + $0x5f0] sm:$0xff] %v914
        %977 = vst [vmem:[#allocation2 + $0x5f8] sm:$0xff] %v945
        %v978 = vld [vmem:[%s182 + $0x10] sm:$0xff]
        %v979 = vld [vmem:[%s182 + $0x18] sm:$0xff]
        %v980 = vld [vmem:[%s182 + $0x20] sm:$0xff]
        %v981 = vld [vmem:[%s182 + $0x28] sm:$0xff]
        %v982 = vld [vmem:[%s182 + $0x30] sm:$0xff]
        %v983 = vld [vmem:[%s182 + $0x38] sm:$0xff]
        %v984 = vld [vmem:[%s182 + $0x40] sm:$0xff]
        %v985 = vld [vmem:[%s182 + $0x48] sm:$0xff]
        %v986 = vld [vmem:[%s182 + $0x50] sm:$0xff]
        %v987 = vld [vmem:[%s182 + $0x58] sm:$0xff]
        %v988 = vld [vmem:[%s182 + $0x60] sm:$0xff]
        %v989 = vld [vmem:[%s182 + $0x68] sm:$0xff]
        %v990 = vld [vmem:[%s182 + $0x70] sm:$0xff]
        %v991 = vld [vmem:[%s182 + $0x78] sm:$0xff]
        %v992 = vld [vmem:[%s182 + $0x80] sm:$0xff]
        %v993 = vld [vmem:[%s182 + $0x88] sm:$0xff]
        %v994 = vld [vmem:[%s182 + $0x90] sm:$0xff]
        %v995 = vld [vmem:[%s182 + $0x98] sm:$0xff]
        %v996 = vld [vmem:[%s182 + $0xa0] sm:$0xff]
        %v997 = vld [vmem:[%s182 + $0xa8] sm:$0xff]
        %v998 = vld [vmem:[%s182 + $0xb0] sm:$0xff]
        %v999 = vld [vmem:[%s182 + $0xb8] sm:$0xff]
        %v1000 = vld [vmem:[%s182 + $0xc0] sm:$0xff]
        %v1001 = vld [vmem:[%s182 + $0xc8] sm:$0xff]
        %v1002 = vld [vmem:[%s182 + $0xd0] sm:$0xff]
        %v1003 = vld [vmem:[%s182 + $0xd8] sm:$0xff]
        %v1004 = vld [vmem:[%s182 + $0xe0] sm:$0xff]
        %v1005 = vld [vmem:[%s182 + $0xe8] sm:$0xff]
        %v1006 = vld [vmem:[%s182 + $0xf0] sm:$0xff]
        %v1007 = vld [vmem:[%s182 + $0xf8] sm:$0xff]
        %v1008 = vld [vmem:[%s182 + $0x100] sm:$0xff]
        %v1009 = vld [vmem:[%s182 + $0x108] sm:$0xff]
        %1010 = vst [vmem:[#allocation2 + $0x600] sm:$0xff] %v978
        %1011 = vst [vmem:[#allocation2 + $0x608] sm:$0xff] %v979
        %1012 = vst [vmem:[#allocation2 + $0x610] sm:$0xff] %v980
        %1013 = vst [vmem:[#allocation2 + $0x618] sm:$0xff] %v981
        %1014 = vst [vmem:[#allocation2 + $0x620] sm:$0xff] %v982
        %1015 = vst [vmem:[#allocation2 + $0x628] sm:$0xff] %v983
        %1016 = vst [vmem:[#allocation2 + $0x630] sm:$0xff] %v984
        %1017 = vst [vmem:[#allocation2 + $0x638] sm:$0xff] %v985
        %1018 = vst [vmem:[#allocation2 + $0x640] sm:$0xff] %v986
        %1019 = vst [vmem:[#allocation2 + $0x648] sm:$0xff] %v987
        %1020 = vst [vmem:[#allocation2 + $0x650] sm:$0xff] %v988
        %1021 = vst [vmem:[#allocation2 + $0x658] sm:$0xff] %v989
        %1022 = vst [vmem:[#allocation2 + $0x660] sm:$0xff] %v990
        %1023 = vst [vmem:[#allocation2 + $0x668] sm:$0xff] %v991
        %1024 = vst [vmem:[#allocation2 + $0x670] sm:$0xff] %v992
        %1025 = vst [vmem:[#allocation2 + $0x678] sm:$0xff] %v993
        %1026 = vst [vmem:[#allocation2 + $0x680] sm:$0xff] %v994
        %1027 = vst [vmem:[#allocation2 + $0x688] sm:$0xff] %v995
        %1028 = vst [vmem:[#allocation2 + $0x690] sm:$0xff] %v996
        %1029 = vst [vmem:[#allocation2 + $0x698] sm:$0xff] %v997
        %1030 = vst [vmem:[#allocation2 + $0x6a0] sm:$0xff] %v998
        %1031 = vst [vmem:[#allocation2 + $0x6a8] sm:$0xff] %v999
        %1032 = vst [vmem:[#allocation2 + $0x6b0] sm:$0xff] %v1000
        %1033 = vst [vmem:[#allocation2 + $0x6b8] sm:$0xff] %v1001
        %1034 = vst [vmem:[#allocation2 + $0x6c0] sm:$0xff] %v1002
        %1035 = vst [vmem:[#allocation2 + $0x6c8] sm:$0xff] %v1003
        %1036 = vst [vmem:[#allocation2 + $0x6d0] sm:$0xff] %v1004
        %1037 = vst [vmem:[#allocation2 + $0x6d8] sm:$0xff] %v1005
        %1038 = vst [vmem:[#allocation2 + $0x6e0] sm:$0xff] %v1006
        %1039 = vst [vmem:[#allocation2 + $0x6e8] sm:$0xff] %v1007
        %1040 = vst [vmem:[#allocation2 + $0x6f0] sm:$0xff] %v1008
        %1041 = vst [vmem:[#allocation2 + $0x6f8] sm:$0xff] %v1009
        %v1042 = vld [vmem:[%s182 + $0x10] sm:$0xff]
        %v1043 = vld [vmem:[%s182 + $0x18] sm:$0xff]
        %v1044 = vld [vmem:[%s182 + $0x20] sm:$0xff]
        %v1045 = vld [vmem:[%s182 + $0x28] sm:$0xff]
        %v1046 = vld [vmem:[%s182 + $0x30] sm:$0xff]
        %v1047 = vld [vmem:[%s182 + $0x38] sm:$0xff]
        %v1048 = vld [vmem:[%s182 + $0x40] sm:$0xff]
        %v1049 = vld [vmem:[%s182 + $0x48] sm:$0xff]
        %v1050 = vld [vmem:[%s182 + $0x50] sm:$0xff]
        %v1051 = vld [vmem:[%s182 + $0x58] sm:$0xff]
        %v1052 = vld [vmem:[%s182 + $0x60] sm:$0xff]
        %v1053 = vld [vmem:[%s182 + $0x68] sm:$0xff]
        %v1054 = vld [vmem:[%s182 + $0x70] sm:$0xff]
        %v1055 = vld [vmem:[%s182 + $0x78] sm:$0xff]
        %v1056 = vld [vmem:[%s182 + $0x80] sm:$0xff]
        %v1057 = vld [vmem:[%s182 + $0x88] sm:$0xff]
        %v1058 = vld [vmem:[%s182 + $0x90] sm:$0xff]
        %v1059 = vld [vmem:[%s182 + $0x98] sm:$0xff]
        %v1060 = vld [vmem:[%s182 + $0xa0] sm:$0xff]
        %v1061 = vld [vmem:[%s182 + $0xa8] sm:$0xff]
        %v1062 = vld [vmem:[%s182 + $0xb0] sm:$0xff]
        %v1063 = vld [vmem:[%s182 + $0xb8] sm:$0xff]
        %v1064 = vld [vmem:[%s182 + $0xc0] sm:$0xff]
        %v1065 = vld [vmem:[%s182 + $0xc8] sm:$0xff]
        %v1066 = vld [vmem:[%s182 + $0xd0] sm:$0xff]
        %v1067 = vld [vmem:[%s182 + $0xd8] sm:$0xff]
        %v1068 = vld [vmem:[%s182 + $0xe0] sm:$0xff]
        %v1069 = vld [vmem:[%s182 + $0xe8] sm:$0xff]
        %v1070 = vld [vmem:[%s182 + $0xf0] sm:$0xff]
        %v1071 = vld [vmem:[%s182 + $0xf8] sm:$0xff]
        %v1072 = vld [vmem:[%s182 + $0x100] sm:$0xff]
        %v1073 = vld [vmem:[%s182 + $0x108] sm:$0xff]
        %1074 = vrot.lane.b32.xlu0 %v1042, 127
        %v1075 = vpop.permute.xlu0 %1074
        %1076 = vrot.lane.b32.xlu0 %v1043, 127
        %v1077 = vpop.permute.xlu0 %1076
        %1078 = vrot.lane.b32.xlu0 %v1044, 127
        %v1079 = vpop.permute.xlu0 %1078
        %1080 = vrot.lane.b32.xlu0 %v1045, 127
        %v1081 = vpop.permute.xlu0 %1080
        %1082 = vrot.lane.b32.xlu0 %v1046, 127
        %v1083 = vpop.permute.xlu0 %1082
        %1084 = vrot.lane.b32.xlu0 %v1047, 127
        %v1085 = vpop.permute.xlu0 %1084
        %1086 = vrot.lane.b32.xlu0 %v1048, 127
        %v1087 = vpop.permute.xlu0 %1086
        %1088 = vrot.lane.b32.xlu0 %v1049, 127
        %v1089 = vpop.permute.xlu0 %1088
        %1090 = vrot.lane.b32.xlu0 %v1050, 127
        %v1091 = vpop.permute.xlu0 %1090
        %1092 = vrot.lane.b32.xlu0 %v1051, 127
        %v1093 = vpop.permute.xlu0 %1092
        %1094 = vrot.lane.b32.xlu0 %v1052, 127
        %v1095 = vpop.permute.xlu0 %1094
        %1096 = vrot.lane.b32.xlu0 %v1053, 127
        %v1097 = vpop.permute.xlu0 %1096
        %1098 = vrot.lane.b32.xlu0 %v1054, 127
        %v1099 = vpop.permute.xlu0 %1098
        %1100 = vrot.lane.b32.xlu0 %v1055, 127
        %v1101 = vpop.permute.xlu0 %1100
        %1102 = vrot.lane.b32.xlu0 %v1056, 127
        %v1103 = vpop.permute.xlu0 %1102
        %1104 = vrot.lane.b32.xlu0 %v1057, 127
        %v1105 = vpop.permute.xlu0 %1104
        %1106 = vrot.lane.b32.xlu0 %v1058, 127
        %v1107 = vpop.permute.xlu0 %1106
        %1108 = vrot.lane.b32.xlu0 %v1059, 127
        %v1109 = vpop.permute.xlu0 %1108
        %1110 = vrot.lane.b32.xlu0 %v1060, 127
        %v1111 = vpop.permute.xlu0 %1110
        %1112 = vrot.lane.b32.xlu0 %v1061, 127
        %v1113 = vpop.permute.xlu0 %1112
        %1114 = vrot.lane.b32.xlu0 %v1062, 127
        %v1115 = vpop.permute.xlu0 %1114
        %1116 = vrot.lane.b32.xlu0 %v1063, 127
        %v1117 = vpop.permute.xlu0 %1116
        %1118 = vrot.lane.b32.xlu0 %v1064, 127
        %v1119 = vpop.permute.xlu0 %1118
        %1120 = vrot.lane.b32.xlu0 %v1065, 127
        %v1121 = vpop.permute.xlu0 %1120
        %1122 = vrot.lane.b32.xlu0 %v1066, 127
        %v1123 = vpop.permute.xlu0 %1122
        %1124 = vrot.lane.b32.xlu0 %v1067, 127
        %v1125 = vpop.permute.xlu0 %1124
        %1126 = vrot.lane.b32.xlu0 %v1068, 127
        %v1127 = vpop.permute.xlu0 %1126
        %1128 = vrot.lane.b32.xlu0 %v1069, 127
        %v1129 = vpop.permute.xlu0 %1128
        %1130 = vrot.lane.b32.xlu0 %v1070, 127
        %v1131 = vpop.permute.xlu0 %1130
        %1132 = vrot.lane.b32.xlu0 %v1071, 127
        %v1133 = vpop.permute.xlu0 %1132
        %1134 = vrot.lane.b32.xlu0 %v1072, 127
        %v1135 = vpop.permute.xlu0 %1134
        %1136 = vrot.lane.b32.xlu0 %v1073, 127
        %v1137 = vpop.permute.xlu0 %1136
        %v1138 = vsel %vm368, %v1135, %v1137
        %v1139 = vsel %vm368, %v1133, %v1135
        %v1140 = vsel %vm368, %v1131, %v1133
        %v1141 = vsel %vm368, %v1129, %v1131
        %v1142 = vsel %vm368, %v1127, %v1129
        %v1143 = vsel %vm368, %v1125, %v1127
        %v1144 = vsel %vm368, %v1123, %v1125
        %v1145 = vsel %vm368, %v1121, %v1123
        %v1146 = vsel %vm368, %v1119, %v1121
        %v1147 = vsel %vm368, %v1117, %v1119
        %v1148 = vsel %vm368, %v1115, %v1117
        %v1149 = vsel %vm368, %v1113, %v1115
        %v1150 = vsel %vm368, %v1111, %v1113
        %v1151 = vsel %vm368, %v1109, %v1111
        %v1152 = vsel %vm368, %v1107, %v1109
        %v1153 = vsel %vm368, %v1105, %v1107
        %v1154 = vsel %vm368, %v1103, %v1105
        %v1155 = vsel %vm368, %v1101, %v1103
        %v1156 = vsel %vm368, %v1099, %v1101
        %v1157 = vsel %vm368, %v1097, %v1099
        %v1158 = vsel %vm368, %v1095, %v1097
        %v1159 = vsel %vm368, %v1093, %v1095
        %v1160 = vsel %vm368, %v1091, %v1093
        %v1161 = vsel %vm368, %v1089, %v1091
        %v1162 = vsel %vm368, %v1087, %v1089
        %v1163 = vsel %vm368, %v1085, %v1087
        %v1164 = vsel %vm368, %v1083, %v1085
        %v1165 = vsel %vm368, %v1081, %v1083
        %v1166 = vsel %vm368, %v1079, %v1081
        %v1167 = vsel %vm368, %v1077, %v1079
        %v1168 = vsel %vm368, %v1075, %v1077
        %v1169 = vsel %vm368, %v1137, %v1075
        %1170 = vst [vmem:[#allocation2 + $0x700] sm:$0xff] %v1168
        %1171 = vst [vmem:[#allocation2 + $0x708] sm:$0xff] %v1167
        %1172 = vst [vmem:[#allocation2 + $0x710] sm:$0xff] %v1166
        %1173 = vst [vmem:[#allocation2 + $0x718] sm:$0xff] %v1165
        %1174 = vst [vmem:[#allocation2 + $0x720] sm:$0xff] %v1164
        %1175 = vst [vmem:[#allocation2 + $0x728] sm:$0xff] %v1163
        %1176 = vst [vmem:[#allocation2 + $0x730] sm:$0xff] %v1162
        %1177 = vst [vmem:[#allocation2 + $0x738] sm:$0xff] %v1161
        %1178 = vst [vmem:[#allocation2 + $0x740] sm:$0xff] %v1160
        %1179 = vst [vmem:[#allocation2 + $0x748] sm:$0xff] %v1159
        %1180 = vst [vmem:[#allocation2 + $0x750] sm:$0xff] %v1158
        %1181 = vst [vmem:[#allocation2 + $0x758] sm:$0xff] %v1157
        %1182 = vst [vmem:[#allocation2 + $0x760] sm:$0xff] %v1156
        %1183 = vst [vmem:[#allocation2 + $0x768] sm:$0xff] %v1155
        %1184 = vst [vmem:[#allocation2 + $0x770] sm:$0xff] %v1154
        %1185 = vst [vmem:[#allocation2 + $0x778] sm:$0xff] %v1153
        %1186 = vst [vmem:[#allocation2 + $0x780] sm:$0xff] %v1152
        %1187 = vst [vmem:[#allocation2 + $0x788] sm:$0xff] %v1151
        %1188 = vst [vmem:[#allocation2 + $0x790] sm:$0xff] %v1150
        %1189 = vst [vmem:[#allocation2 + $0x798] sm:$0xff] %v1149
        %1190 = vst [vmem:[#allocation2 + $0x7a0] sm:$0xff] %v1148
        %1191 = vst [vmem:[#allocation2 + $0x7a8] sm:$0xff] %v1147
        %1192 = vst [vmem:[#allocation2 + $0x7b0] sm:$0xff] %v1146
        %1193 = vst [vmem:[#allocation2 + $0x7b8] sm:$0xff] %v1145
        %1194 = vst [vmem:[#allocation2 + $0x7c0] sm:$0xff] %v1144
        %1195 = vst [vmem:[#allocation2 + $0x7c8] sm:$0xff] %v1143
        %1196 = vst [vmem:[#allocation2 + $0x7d0] sm:$0xff] %v1142
        %1197 = vst [vmem:[#allocation2 + $0x7d8] sm:$0xff] %v1141
        %1198 = vst [vmem:[#allocation2 + $0x7e0] sm:$0xff] %v1140
        %1199 = vst [vmem:[#allocation2 + $0x7e8] sm:$0xff] %v1139
        %1200 = vst [vmem:[#allocation2 + $0x7f0] sm:$0xff] %v1138
        %1201 = vst [vmem:[#allocation2 + $0x7f8] sm:$0xff] %v1169
        %v1202 = vld [vmem:[%s182 + $0x10] sm:$0xff]
        %v1203 = vld [vmem:[%s182 + $0x18] sm:$0xff]
        %v1204 = vld [vmem:[%s182 + $0x20] sm:$0xff]
        %v1205 = vld [vmem:[%s182 + $0x28] sm:$0xff]
        %v1206 = vld [vmem:[%s182 + $0x30] sm:$0xff]
        %v1207 = vld [vmem:[%s182 + $0x38] sm:$0xff]
        %v1208 = vld [vmem:[%s182 + $0x40] sm:$0xff]
        %v1209 = vld [vmem:[%s182 + $0x48] sm:$0xff]
        %v1210 = vld [vmem:[%s182 + $0x50] sm:$0xff]
        %v1211 = vld [vmem:[%s182 + $0x58] sm:$0xff]
        %v1212 = vld [vmem:[%s182 + $0x60] sm:$0xff]
        %v1213 = vld [vmem:[%s182 + $0x68] sm:$0xff]
        %v1214 = vld [vmem:[%s182 + $0x70] sm:$0xff]
        %v1215 = vld [vmem:[%s182 + $0x78] sm:$0xff]
        %v1216 = vld [vmem:[%s182 + $0x80] sm:$0xff]
        %v1217 = vld [vmem:[%s182 + $0x88] sm:$0xff]
        %v1218 = vld [vmem:[%s182 + $0x90] sm:$0xff]
        %v1219 = vld [vmem:[%s182 + $0x98] sm:$0xff]
        %v1220 = vld [vmem:[%s182 + $0xa0] sm:$0xff]
        %v1221 = vld [vmem:[%s182 + $0xa8] sm:$0xff]
        %v1222 = vld [vmem:[%s182 + $0xb0] sm:$0xff]
        %v1223 = vld [vmem:[%s182 + $0xb8] sm:$0xff]
        %v1224 = vld [vmem:[%s182 + $0xc0] sm:$0xff]
        %v1225 = vld [vmem:[%s182 + $0xc8] sm:$0xff]
        %v1226 = vld [vmem:[%s182 + $0xd0] sm:$0xff]
        %v1227 = vld [vmem:[%s182 + $0xd8] sm:$0xff]
        %v1228 = vld [vmem:[%s182 + $0xe0] sm:$0xff]
        %v1229 = vld [vmem:[%s182 + $0xe8] sm:$0xff]
        %v1230 = vld [vmem:[%s182 + $0xf0] sm:$0xff]
        %v1231 = vld [vmem:[%s182 + $0xf8] sm:$0xff]
        %v1232 = vld [vmem:[%s182 + $0x100] sm:$0xff]
        %v1233 = vld [vmem:[%s182 + $0x108] sm:$0xff]
        %1234 = vrot.lane.b32.xlu0 %v1202, 126
        %v1235 = vpop.permute.xlu0 %1234
        %1236 = vrot.lane.b32.xlu0 %v1203, 126
        %v1237 = vpop.permute.xlu0 %1236
        %1238 = vrot.lane.b32.xlu0 %v1204, 126
        %v1239 = vpop.permute.xlu0 %1238
        %1240 = vrot.lane.b32.xlu0 %v1205, 126
        %v1241 = vpop.permute.xlu0 %1240
        %1242 = vrot.lane.b32.xlu0 %v1206, 126
        %v1243 = vpop.permute.xlu0 %1242
        %1244 = vrot.lane.b32.xlu0 %v1207, 126
        %v1245 = vpop.permute.xlu0 %1244
        %1246 = vrot.lane.b32.xlu0 %v1208, 126
        %v1247 = vpop.permute.xlu0 %1246
        %1248 = vrot.lane.b32.xlu0 %v1209, 126
        %v1249 = vpop.permute.xlu0 %1248
        %1250 = vrot.lane.b32.xlu0 %v1210, 126
        %v1251 = vpop.permute.xlu0 %1250
        %1252 = vrot.lane.b32.xlu0 %v1211, 126
        %v1253 = vpop.permute.xlu0 %1252
        %1254 = vrot.lane.b32.xlu0 %v1212, 126
        %v1255 = vpop.permute.xlu0 %1254
        %1256 = vrot.lane.b32.xlu0 %v1213, 126
        %v1257 = vpop.permute.xlu0 %1256
        %1258 = vrot.lane.b32.xlu0 %v1214, 126
        %v1259 = vpop.permute.xlu0 %1258
        %1260 = vrot.lane.b32.xlu0 %v1215, 126
        %v1261 = vpop.permute.xlu0 %1260
        %1262 = vrot.lane.b32.xlu0 %v1216, 126
        %v1263 = vpop.permute.xlu0 %1262
        %1264 = vrot.lane.b32.xlu0 %v1217, 126
        %v1265 = vpop.permute.xlu0 %1264
        %1266 = vrot.lane.b32.xlu0 %v1218, 126
        %v1267 = vpop.permute.xlu0 %1266
        %1268 = vrot.lane.b32.xlu0 %v1219, 126
        %v1269 = vpop.permute.xlu0 %1268
        %1270 = vrot.lane.b32.xlu0 %v1220, 126
        %v1271 = vpop.permute.xlu0 %1270
        %1272 = vrot.lane.b32.xlu0 %v1221, 126
        %v1273 = vpop.permute.xlu0 %1272
        %1274 = vrot.lane.b32.xlu0 %v1222, 126
        %v1275 = vpop.permute.xlu0 %1274
        %1276 = vrot.lane.b32.xlu0 %v1223, 126
        %v1277 = vpop.permute.xlu0 %1276
        %1278 = vrot.lane.b32.xlu0 %v1224, 126
        %v1279 = vpop.permute.xlu0 %1278
        %1280 = vrot.lane.b32.xlu0 %v1225, 126
        %v1281 = vpop.permute.xlu0 %1280
        %1282 = vrot.lane.b32.xlu0 %v1226, 126
        %v1283 = vpop.permute.xlu0 %1282
        %1284 = vrot.lane.b32.xlu0 %v1227, 126
        %v1285 = vpop.permute.xlu0 %1284
        %1286 = vrot.lane.b32.xlu0 %v1228, 126
        %v1287 = vpop.permute.xlu0 %1286
        %1288 = vrot.lane.b32.xlu0 %v1229, 126
        %v1289 = vpop.permute.xlu0 %1288
        %1290 = vrot.lane.b32.xlu0 %v1230, 126
        %v1291 = vpop.permute.xlu0 %1290
        %1292 = vrot.lane.b32.xlu0 %v1231, 126
        %v1293 = vpop.permute.xlu0 %1292
        %1294 = vrot.lane.b32.xlu0 %v1232, 126
        %v1295 = vpop.permute.xlu0 %1294
        %1296 = vrot.lane.b32.xlu0 %v1233, 126
        %v1297 = vpop.permute.xlu0 %1296
        %v1298 = vsel %vm529, %v1295, %v1297
        %v1299 = vsel %vm529, %v1293, %v1295
        %v1300 = vsel %vm529, %v1291, %v1293
        %v1301 = vsel %vm529, %v1289, %v1291
        %v1302 = vsel %vm529, %v1287, %v1289
        %v1303 = vsel %vm529, %v1285, %v1287
        %v1304 = vsel %vm529, %v1283, %v1285
        %v1305 = vsel %vm529, %v1281, %v1283
        %v1306 = vsel %vm529, %v1279, %v1281
        %v1307 = vsel %vm529, %v1277, %v1279
        %v1308 = vsel %vm529, %v1275, %v1277
        %v1309 = vsel %vm529, %v1273, %v1275
        %v1310 = vsel %vm529, %v1271, %v1273
        %v1311 = vsel %vm529, %v1269, %v1271
        %v1312 = vsel %vm529, %v1267, %v1269
        %v1313 = vsel %vm529, %v1265, %v1267
        %v1314 = vsel %vm529, %v1263, %v1265
        %v1315 = vsel %vm529, %v1261, %v1263
        %v1316 = vsel %vm529, %v1259, %v1261
        %v1317 = vsel %vm529, %v1257, %v1259
        %v1318 = vsel %vm529, %v1255, %v1257
        %v1319 = vsel %vm529, %v1253, %v1255
        %v1320 = vsel %vm529, %v1251, %v1253
        %v1321 = vsel %vm529, %v1249, %v1251
        %v1322 = vsel %vm529, %v1247, %v1249
        %v1323 = vsel %vm529, %v1245, %v1247
        %v1324 = vsel %vm529, %v1243, %v1245
        %v1325 = vsel %vm529, %v1241, %v1243
        %v1326 = vsel %vm529, %v1239, %v1241
        %v1327 = vsel %vm529, %v1237, %v1239
        %v1328 = vsel %vm529, %v1235, %v1237
        %v1329 = vsel %vm529, %v1297, %v1235
        %1330 = vst [vmem:[#allocation2 + $0x800] sm:$0xff] %v1328
        %1331 = vst [vmem:[#allocation2 + $0x808] sm:$0xff] %v1327
        %1332 = vst [vmem:[#allocation2 + $0x810] sm:$0xff] %v1326
        %1333 = vst [vmem:[#allocation2 + $0x818] sm:$0xff] %v1325
        %1334 = vst [vmem:[#allocation2 + $0x820] sm:$0xff] %v1324
        %1335 = vst [vmem:[#allocation2 + $0x828] sm:$0xff] %v1323
        %1336 = vst [vmem:[#allocation2 + $0x830] sm:$0xff] %v1322
        %1337 = vst [vmem:[#allocation2 + $0x838] sm:$0xff] %v1321
        %1338 = vst [vmem:[#allocation2 + $0x840] sm:$0xff] %v1320
        %1339 = vst [vmem:[#allocation2 + $0x848] sm:$0xff] %v1319
        %1340 = vst [vmem:[#allocation2 + $0x850] sm:$0xff] %v1318
        %1341 = vst [vmem:[#allocation2 + $0x858] sm:$0xff] %v1317
        %1342 = vst [vmem:[#allocation2 + $0x860] sm:$0xff] %v1316
        %1343 = vst [vmem:[#allocation2 + $0x868] sm:$0xff] %v1315
        %1344 = vst [vmem:[#allocation2 + $0x870] sm:$0xff] %v1314
        %1345 = vst [vmem:[#allocation2 + $0x878] sm:$0xff] %v1313
        %1346 = vst [vmem:[#allocation2 + $0x880] sm:$0xff] %v1312
        %1347 = vst [vmem:[#allocation2 + $0x888] sm:$0xff] %v1311
        %1348 = vst [vmem:[#allocation2 + $0x890] sm:$0xff] %v1310
        %1349 = vst [vmem:[#allocation2 + $0x898] sm:$0xff] %v1309
        %1350 = vst [vmem:[#allocation2 + $0x8a0] sm:$0xff] %v1308
        %1351 = vst [vmem:[#allocation2 + $0x8a8] sm:$0xff] %v1307
        %1352 = vst [vmem:[#allocation2 + $0x8b0] sm:$0xff] %v1306
        %1353 = vst [vmem:[#allocation2 + $0x8b8] sm:$0xff] %v1305
        %1354 = vst [vmem:[#allocation2 + $0x8c0] sm:$0xff] %v1304
        %1355 = vst [vmem:[#allocation2 + $0x8c8] sm:$0xff] %v1303
        %1356 = vst [vmem:[#allocation2 + $0x8d0] sm:$0xff] %v1302
        %1357 = vst [vmem:[#allocation2 + $0x8d8] sm:$0xff] %v1301
        %1358 = vst [vmem:[#allocation2 + $0x8e0] sm:$0xff] %v1300
        %1359 = vst [vmem:[#allocation2 + $0x8e8] sm:$0xff] %v1299
        %1360 = vst [vmem:[#allocation2 + $0x8f0] sm:$0xff] %v1298
        %1361 = vst [vmem:[#allocation2 + $0x8f8] sm:$0xff] %v1329
        %v1362 = vld [vmem:[%s1] sm:$0xff]
        %v1363 = vld [vmem:[#allocation2] sm:$0xff]
        %v1364 = vld [vmem:[#allocation2 + $0x8] sm:$0xff]
        %v1365 = vld [vmem:[#allocation2 + $0x10] sm:$0xff]
        %v1366 = vld [vmem:[#allocation2 + $0x18] sm:$0xff]
        %v1367 = vld [vmem:[#allocation2 + $0x20] sm:$0xff]
        %v1368 = vld [vmem:[#allocation2 + $0x28] sm:$0xff]
        %v1369 = vld [vmem:[#allocation2 + $0x30] sm:$0xff]
        %v1370 = vld [vmem:[#allocation2 + $0x38] sm:$0xff]
        %v1371 = vld [vmem:[#allocation2 + $0x40] sm:$0xff]
        %v1372 = vld [vmem:[#allocation2 + $0x48] sm:$0xff]
        %v1373 = vld [vmem:[#allocation2 + $0x50] sm:$0xff]
        %v1374 = vld [vmem:[#allocation2 + $0x58] sm:$0xff]
        %v1375 = vld [vmem:[#allocation2 + $0x60] sm:$0xff]
        %v1376 = vld [vmem:[#allocation2 + $0x68] sm:$0xff]
        %v1377 = vld [vmem:[#allocation2 + $0x70] sm:$0xff]
        %v1378 = vld [vmem:[#allocation2 + $0x78] sm:$0xff]
        %v1379 = vld [vmem:[#allocation2 + $0x80] sm:$0xff]
        %v1380 = vld [vmem:[#allocation2 + $0x88] sm:$0xff]
        %v1381 = vld [vmem:[#allocation2 + $0x90] sm:$0xff]
        %v1382 = vld [vmem:[#allocation2 + $0x98] sm:$0xff]
        %v1383 = vld [vmem:[#allocation2 + $0xa0] sm:$0xff]
        %v1384 = vld [vmem:[#allocation2 + $0xa8] sm:$0xff]
        %v1385 = vld [vmem:[#allocation2 + $0xb0] sm:$0xff]
        %v1386 = vld [vmem:[#allocation2 + $0xb8] sm:$0xff]
        %v1387 = vld [vmem:[#allocation2 + $0xc0] sm:$0xff]
        %v1388 = vld [vmem:[#allocation2 + $0xc8] sm:$0xff]
        %v1389 = vld [vmem:[#allocation2 + $0xd0] sm:$0xff]
        %v1390 = vld [vmem:[#allocation2 + $0xd8] sm:$0xff]
        %v1391 = vld [vmem:[#allocation2 + $0xe0] sm:$0xff]
        %v1392 = vld [vmem:[#allocation2 + $0xe8] sm:$0xff]
        %v1393 = vld [vmem:[#allocation2 + $0xf0] sm:$0xff]
        %v1394 = vld [vmem:[#allocation2 + $0xf8] sm:$0xff]
        %v1395 = vld [vmem:[#allocation2 + $0x100] sm:$0xff]
        %v1396 = vld [vmem:[#allocation2 + $0x108] sm:$0xff]
        %v1397 = vld [vmem:[#allocation2 + $0x110] sm:$0xff]
        %v1398 = vld [vmem:[#allocation2 + $0x118] sm:$0xff]
        %v1399 = vld [vmem:[#allocation2 + $0x120] sm:$0xff]
        %v1400 = vld [vmem:[#allocation2 + $0x128] sm:$0xff]
        %v1401 = vld [vmem:[#allocation2 + $0x130] sm:$0xff]
        %v1402 = vld [vmem:[#allocation2 + $0x138] sm:$0xff]
        %v1403 = vld [vmem:[#allocation2 + $0x140] sm:$0xff]
        %v1404 = vld [vmem:[#allocation2 + $0x148] sm:$0xff]
        %v1405 = vld [vmem:[#allocation2 + $0x150] sm:$0xff]
        %v1406 = vld [vmem:[#allocation2 + $0x158] sm:$0xff]
        %v1407 = vld [vmem:[#allocation2 + $0x160] sm:$0xff]
        %v1408 = vld [vmem:[#allocation2 + $0x168] sm:$0xff]
        %v1409 = vld [vmem:[#allocation2 + $0x170] sm:$0xff]
        %v1410 = vld [vmem:[#allocation2 + $0x178] sm:$0xff]
        %v1411 = vld [vmem:[#allocation2 + $0x180] sm:$0xff]
        %v1412 = vld [vmem:[#allocation2 + $0x188] sm:$0xff]
        %v1413 = vld [vmem:[#allocation2 + $0x190] sm:$0xff]
        %v1414 = vld [vmem:[#allocation2 + $0x198] sm:$0xff]
        %v1415 = vld [vmem:[#allocation2 + $0x1a0] sm:$0xff]
        %v1416 = vld [vmem:[#allocation2 + $0x1a8] sm:$0xff]
        %v1417 = vld [vmem:[#allocation2 + $0x1b0] sm:$0xff]
        %v1418 = vld [vmem:[#allocation2 + $0x1b8] sm:$0xff]
        %v1419 = vld [vmem:[#allocation2 + $0x1c0] sm:$0xff]
        %v1420 = vld [vmem:[#allocation2 + $0x1c8] sm:$0xff]
        %v1421 = vld [vmem:[#allocation2 + $0x1d0] sm:$0xff]
        %v1422 = vld [vmem:[#allocation2 + $0x1d8] sm:$0xff]
        %v1423 = vld [vmem:[#allocation2 + $0x1e0] sm:$0xff]
        %v1424 = vld [vmem:[#allocation2 + $0x1e8] sm:$0xff]
        %v1425 = vld [vmem:[#allocation2 + $0x1f0] sm:$0xff]
        %v1426 = vld [vmem:[#allocation2 + $0x1f8] sm:$0xff]
        %v1427 = vld [vmem:[#allocation2 + $0x200] sm:$0xff]
        %v1428 = vld [vmem:[#allocation2 + $0x208] sm:$0xff]
        %v1429 = vld [vmem:[#allocation2 + $0x210] sm:$0xff]
        %v1430 = vld [vmem:[#allocation2 + $0x218] sm:$0xff]
        %v1431 = vld [vmem:[#allocation2 + $0x220] sm:$0xff]
        %v1432 = vld [vmem:[#allocation2 + $0x228] sm:$0xff]
        %v1433 = vld [vmem:[#allocation2 + $0x230] sm:$0xff]
        %v1434 = vld [vmem:[#allocation2 + $0x238] sm:$0xff]
        %v1435 = vld [vmem:[#allocation2 + $0x240] sm:$0xff]
        %v1436 = vld [vmem:[#allocation2 + $0x248] sm:$0xff]
        %v1437 = vld [vmem:[#allocation2 + $0x250] sm:$0xff]
        %v1438 = vld [vmem:[#allocation2 + $0x258] sm:$0xff]
        %v1439 = vld [vmem:[#allocation2 + $0x260] sm:$0xff]
        %v1440 = vld [vmem:[#allocation2 + $0x268] sm:$0xff]
        %v1441 = vld [vmem:[#allocation2 + $0x270] sm:$0xff]
        %v1442 = vld [vmem:[#allocation2 + $0x278] sm:$0xff]
        %v1443 = vld [vmem:[#allocation2 + $0x280] sm:$0xff]
        %v1444 = vld [vmem:[#allocation2 + $0x288] sm:$0xff]
        %v1445 = vld [vmem:[#allocation2 + $0x290] sm:$0xff]
        %v1446 = vld [vmem:[#allocation2 + $0x298] sm:$0xff]
        %v1447 = vld [vmem:[#allocation2 + $0x2a0] sm:$0xff]
        %v1448 = vld [vmem:[#allocation2 + $0x2a8] sm:$0xff]
        %v1449 = vld [vmem:[#allocation2 + $0x2b0] sm:$0xff]
        %v1450 = vld [vmem:[#allocation2 + $0x2b8] sm:$0xff]
        %v1451 = vld [vmem:[#allocation2 + $0x2c0] sm:$0xff]
        %v1452 = vld [vmem:[#allocation2 + $0x2c8] sm:$0xff]
        %v1453 = vld [vmem:[#allocation2 + $0x2d0] sm:$0xff]
        %v1454 = vld [vmem:[#allocation2 + $0x2d8] sm:$0xff]
        %v1455 = vld [vmem:[#allocation2 + $0x2e0] sm:$0xff]
        %v1456 = vld [vmem:[#allocation2 + $0x2e8] sm:$0xff]
        %v1457 = vld [vmem:[#allocation2 + $0x2f0] sm:$0xff]
        %v1458 = vld [vmem:[#allocation2 + $0x2f8] sm:$0xff]
        %v1459 = vld [vmem:[#allocation2 + $0x300] sm:$0xff]
        %v1460 = vld [vmem:[#allocation2 + $0x308] sm:$0xff]
        %v1461 = vld [vmem:[#allocation2 + $0x310] sm:$0xff]
        %v1462 = vld [vmem:[#allocation2 + $0x318] sm:$0xff]
        %v1463 = vld [vmem:[#allocation2 + $0x320] sm:$0xff]
        %v1464 = vld [vmem:[#allocation2 + $0x328] sm:$0xff]
        %v1465 = vld [vmem:[#allocation2 + $0x330] sm:$0xff]
        %v1466 = vld [vmem:[#allocation2 + $0x338] sm:$0xff]
        %v1467 = vld [vmem:[#allocation2 + $0x340] sm:$0xff]
        %v1468 = vld [vmem:[#allocation2 + $0x348] sm:$0xff]
        %v1469 = vld [vmem:[#allocation2 + $0x350] sm:$0xff]
        %v1470 = vld [vmem:[#allocation2 + $0x358] sm:$0xff]
        %v1471 = vld [vmem:[#allocation2 + $0x360] sm:$0xff]
        %v1472 = vld [vmem:[#allocation2 + $0x368] sm:$0xff]
        %v1473 = vld [vmem:[#allocation2 + $0x370] sm:$0xff]
        %v1474 = vld [vmem:[#allocation2 + $0x378] sm:$0xff]
        %v1475 = vld [vmem:[#allocation2 + $0x380] sm:$0xff]
        %v1476 = vld [vmem:[#allocation2 + $0x388] sm:$0xff]
        %v1477 = vld [vmem:[#allocation2 + $0x390] sm:$0xff]
        %v1478 = vld [vmem:[#allocation2 + $0x398] sm:$0xff]
        %v1479 = vld [vmem:[#allocation2 + $0x3a0] sm:$0xff]
        %v1480 = vld [vmem:[#allocation2 + $0x3a8] sm:$0xff]
        %v1481 = vld [vmem:[#allocation2 + $0x3b0] sm:$0xff]
        %v1482 = vld [vmem:[#allocation2 + $0x3b8] sm:$0xff]
        %v1483 = vld [vmem:[#allocation2 + $0x3c0] sm:$0xff]
        %v1484 = vld [vmem:[#allocation2 + $0x3c8] sm:$0xff]
        %v1485 = vld [vmem:[#allocation2 + $0x3d0] sm:$0xff]
        %v1486 = vld [vmem:[#allocation2 + $0x3d8] sm:$0xff]
        %v1487 = vld [vmem:[#allocation2 + $0x3e0] sm:$0xff]
        %v1488 = vld [vmem:[#allocation2 + $0x3e8] sm:$0xff]
        %v1489 = vld [vmem:[#allocation2 + $0x3f0] sm:$0xff]
        %v1490 = vld [vmem:[#allocation2 + $0x3f8] sm:$0xff]
        %v1491 = vld [vmem:[#allocation2 + $0x400] sm:$0xff]
        %v1492 = vld [vmem:[#allocation2 + $0x408] sm:$0xff]
        %v1493 = vld [vmem:[#allocation2 + $0x410] sm:$0xff]
        %v1494 = vld [vmem:[#allocation2 + $0x418] sm:$0xff]
        %v1495 = vld [vmem:[#allocation2 + $0x420] sm:$0xff]
        %v1496 = vld [vmem:[#allocation2 + $0x428] sm:$0xff]
        %v1497 = vld [vmem:[#allocation2 + $0x430] sm:$0xff]
        %v1498 = vld [vmem:[#allocation2 + $0x438] sm:$0xff]
        %v1499 = vld [vmem:[#allocation2 + $0x440] sm:$0xff]
        %v1500 = vld [vmem:[#allocation2 + $0x448] sm:$0xff]
        %v1501 = vld [vmem:[#allocation2 + $0x450] sm:$0xff]
        %v1502 = vld [vmem:[#allocation2 + $0x458] sm:$0xff]
        %v1503 = vld [vmem:[#allocation2 + $0x460] sm:$0xff]
        %v1504 = vld [vmem:[#allocation2 + $0x468] sm:$0xff]
        %v1505 = vld [vmem:[#allocation2 + $0x470] sm:$0xff]
        %v1506 = vld [vmem:[#allocation2 + $0x478] sm:$0xff]
        %v1507 = vld [vmem:[#allocation2 + $0x480] sm:$0xff]
        %v1508 = vld [vmem:[#allocation2 + $0x488] sm:$0xff]
        %v1509 = vld [vmem:[#allocation2 + $0x490] sm:$0xff]
        %v1510 = vld [vmem:[#allocation2 + $0x498] sm:$0xff]
        %v1511 = vld [vmem:[#allocation2 + $0x4a0] sm:$0xff]
        %v1512 = vld [vmem:[#allocation2 + $0x4a8] sm:$0xff]
        %v1513 = vld [vmem:[#allocation2 + $0x4b0] sm:$0xff]
        %v1514 = vld [vmem:[#allocation2 + $0x4b8] sm:$0xff]
        %v1515 = vld [vmem:[#allocation2 + $0x4c0] sm:$0xff]
        %v1516 = vld [vmem:[#allocation2 + $0x4c8] sm:$0xff]
        %v1517 = vld [vmem:[#allocation2 + $0x4d0] sm:$0xff]
        %v1518 = vld [vmem:[#allocation2 + $0x4d8] sm:$0xff]
        %v1519 = vld [vmem:[#allocation2 + $0x4e0] sm:$0xff]
        %v1520 = vld [vmem:[#allocation2 + $0x4e8] sm:$0xff]
        %v1521 = vld [vmem:[#allocation2 + $0x4f0] sm:$0xff]
        %v1522 = vld [vmem:[#allocation2 + $0x4f8] sm:$0xff]
        %v1523 = vld [vmem:[#allocation2 + $0x500] sm:$0xff]
        %v1524 = vld [vmem:[#allocation2 + $0x508] sm:$0xff]
        %v1525 = vld [vmem:[#allocation2 + $0x510] sm:$0xff]
        %v1526 = vld [vmem:[#allocation2 + $0x518] sm:$0xff]
        %v1527 = vld [vmem:[#allocation2 + $0x520] sm:$0xff]
        %v1528 = vld [vmem:[#allocation2 + $0x528] sm:$0xff]
        %v1529 = vld [vmem:[#allocation2 + $0x530] sm:$0xff]
        %v1530 = vld [vmem:[#allocation2 + $0x538] sm:$0xff]
        %v1531 = vld [vmem:[#allocation2 + $0x540] sm:$0xff]
        %v1532 = vld [vmem:[#allocation2 + $0x548] sm:$0xff]
        %v1533 = vld [vmem:[#allocation2 + $0x550] sm:$0xff]
        %v1534 = vld [vmem:[#allocation2 + $0x558] sm:$0xff]
        %v1535 = vld [vmem:[#allocation2 + $0x560] sm:$0xff]
        %v1536 = vld [vmem:[#allocation2 + $0x568] sm:$0xff]
        %v1537 = vld [vmem:[#allocation2 + $0x570] sm:$0xff]
        %v1538 = vld [vmem:[#allocation2 + $0x578] sm:$0xff]
        %v1539 = vld [vmem:[#allocation2 + $0x580] sm:$0xff]
        %v1540 = vld [vmem:[#allocation2 + $0x588] sm:$0xff]
        %v1541 = vld [vmem:[#allocation2 + $0x590] sm:$0xff]
        %v1542 = vld [vmem:[#allocation2 + $0x598] sm:$0xff]
        %v1543 = vld [vmem:[#allocation2 + $0x5a0] sm:$0xff]
        %v1544 = vld [vmem:[#allocation2 + $0x5a8] sm:$0xff]
        %v1545 = vld [vmem:[#allocation2 + $0x5b0] sm:$0xff]
        %v1546 = vld [vmem:[#allocation2 + $0x5b8] sm:$0xff]
        %v1547 = vld [vmem:[#allocation2 + $0x5c0] sm:$0xff]
        %v1548 = vld [vmem:[#allocation2 + $0x5c8] sm:$0xff]
        %v1549 = vld [vmem:[#allocation2 + $0x5d0] sm:$0xff]
        %v1550 = vld [vmem:[#allocation2 + $0x5d8] sm:$0xff]
        %v1551 = vld [vmem:[#allocation2 + $0x5e0] sm:$0xff]
        %v1552 = vld [vmem:[#allocation2 + $0x5e8] sm:$0xff]
        %v1553 = vld [vmem:[#allocation2 + $0x5f0] sm:$0xff]
        %v1554 = vld [vmem:[#allocation2 + $0x5f8] sm:$0xff]
        %v1555 = vld [vmem:[#allocation2 + $0x600] sm:$0xff]
        %v1556 = vld [vmem:[#allocation2 + $0x608] sm:$0xff]
        %v1557 = vld [vmem:[#allocation2 + $0x610] sm:$0xff]
        %v1558 = vld [vmem:[#allocation2 + $0x618] sm:$0xff]
        %v1559 = vld [vmem:[#allocation2 + $0x620] sm:$0xff]
        %v1560 = vld [vmem:[#allocation2 + $0x628] sm:$0xff]
        %v1561 = vld [vmem:[#allocation2 + $0x630] sm:$0xff]
        %v1562 = vld [vmem:[#allocation2 + $0x638] sm:$0xff]
        %v1563 = vld [vmem:[#allocation2 + $0x640] sm:$0xff]
        %v1564 = vld [vmem:[#allocation2 + $0x648] sm:$0xff]
        %v1565 = vld [vmem:[#allocation2 + $0x650] sm:$0xff]
        %v1566 = vld [vmem:[#allocation2 + $0x658] sm:$0xff]
        %v1567 = vld [vmem:[#allocation2 + $0x660] sm:$0xff]
        %v1568 = vld [vmem:[#allocation2 + $0x668] sm:$0xff]
        %v1569 = vld [vmem:[#allocation2 + $0x670] sm:$0xff]
        %v1570 = vld [vmem:[#allocation2 + $0x678] sm:$0xff]
        %v1571 = vld [vmem:[#allocation2 + $0x680] sm:$0xff]
        %v1572 = vld [vmem:[#allocation2 + $0x688] sm:$0xff]
        %v1573 = vld [vmem:[#allocation2 + $0x690] sm:$0xff]
        %v1574 = vld [vmem:[#allocation2 + $0x698] sm:$0xff]
        %v1575 = vld [vmem:[#allocation2 + $0x6a0] sm:$0xff]
        %v1576 = vld [vmem:[#allocation2 + $0x6a8] sm:$0xff]
        %v1577 = vld [vmem:[#allocation2 + $0x6b0] sm:$0xff]
        %v1578 = vld [vmem:[#allocation2 + $0x6b8] sm:$0xff]
        %v1579 = vld [vmem:[#allocation2 + $0x6c0] sm:$0xff]
        %v1580 = vld [vmem:[#allocation2 + $0x6c8] sm:$0xff]
        %v1581 = vld [vmem:[#allocation2 + $0x6d0] sm:$0xff]
        %v1582 = vld [vmem:[#allocation2 + $0x6d8] sm:$0xff]
        %v1583 = vld [vmem:[#allocation2 + $0x6e0] sm:$0xff]
        %v1584 = vld [vmem:[#allocation2 + $0x6e8] sm:$0xff]
        %v1585 = vld [vmem:[#allocation2 + $0x6f0] sm:$0xff]
        %v1586 = vld [vmem:[#allocation2 + $0x6f8] sm:$0xff]
        %v1587 = vld [vmem:[#allocation2 + $0x700] sm:$0xff]
        %v1588 = vld [vmem:[#allocation2 + $0x708] sm:$0xff]
        %v1589 = vld [vmem:[#allocation2 + $0x710] sm:$0xff]
        %v1590 = vld [vmem:[#allocation2 + $0x718] sm:$0xff]
        %v1591 = vld [vmem:[#allocation2 + $0x720] sm:$0xff]
        %v1592 = vld [vmem:[#allocation2 + $0x728] sm:$0xff]
        %v1593 = vld [vmem:[#allocation2 + $0x730] sm:$0xff]
        %v1594 = vld [vmem:[#allocation2 + $0x738] sm:$0xff]
        %v1595 = vld [vmem:[#allocation2 + $0x740] sm:$0xff]
        %v1596 = vld [vmem:[#allocation2 + $0x748] sm:$0xff]
        %v1597 = vld [vmem:[#allocation2 + $0x750] sm:$0xff]
        %v1598 = vld [vmem:[#allocation2 + $0x758] sm:$0xff]
        %v1599 = vld [vmem:[#allocation2 + $0x760] sm:$0xff]
        %v1600 = vld [vmem:[#allocation2 + $0x768] sm:$0xff]
        %v1601 = vld [vmem:[#allocation2 + $0x770] sm:$0xff]
        %v1602 = vld [vmem:[#allocation2 + $0x778] sm:$0xff]
        %v1603 = vld [vmem:[#allocation2 + $0x780] sm:$0xff]
        %v1604 = vld [vmem:[#allocation2 + $0x788] sm:$0xff]
        %v1605 = vld [vmem:[#allocation2 + $0x790] sm:$0xff]
        %v1606 = vld [vmem:[#allocation2 + $0x798] sm:$0xff]
        %v1607 = vld [vmem:[#allocation2 + $0x7a0] sm:$0xff]
        %v1608 = vld [vmem:[#allocation2 + $0x7a8] sm:$0xff]
        %v1609 = vld [vmem:[#allocation2 + $0x7b0] sm:$0xff]
        %v1610 = vld [vmem:[#allocation2 + $0x7b8] sm:$0xff]
        %v1611 = vld [vmem:[#allocation2 + $0x7c0] sm:$0xff]
        %v1612 = vld [vmem:[#allocation2 + $0x7c8] sm:$0xff]
        %v1613 = vld [vmem:[#allocation2 + $0x7d0] sm:$0xff]
        %v1614 = vld [vmem:[#allocation2 + $0x7d8] sm:$0xff]
        %v1615 = vld [vmem:[#allocation2 + $0x7e0] sm:$0xff]
        %v1616 = vld [vmem:[#allocation2 + $0x7e8] sm:$0xff]
        %v1617 = vld [vmem:[#allocation2 + $0x7f0] sm:$0xff]
        %v1618 = vld [vmem:[#allocation2 + $0x7f8] sm:$0xff]
        %v1619 = vld [vmem:[#allocation2 + $0x800] sm:$0xff]
        %v1620 = vld [vmem:[#allocation2 + $0x808] sm:$0xff]
        %v1621 = vld [vmem:[#allocation2 + $0x810] sm:$0xff]
        %v1622 = vld [vmem:[#allocation2 + $0x818] sm:$0xff]
        %v1623 = vld [vmem:[#allocation2 + $0x820] sm:$0xff]
        %v1624 = vld [vmem:[#allocation2 + $0x828] sm:$0xff]
        %v1625 = vld [vmem:[#allocation2 + $0x830] sm:$0xff]
        %v1626 = vld [vmem:[#allocation2 + $0x838] sm:$0xff]
        %v1627 = vld [vmem:[#allocation2 + $0x840] sm:$0xff]
        %v1628 = vld [vmem:[#allocation2 + $0x848] sm:$0xff]
        %v1629 = vld [vmem:[#allocation2 + $0x850] sm:$0xff]
        %v1630 = vld [vmem:[#allocation2 + $0x858] sm:$0xff]
        %v1631 = vld [vmem:[#allocation2 + $0x860] sm:$0xff]
        %v1632 = vld [vmem:[#allocation2 + $0x868] sm:$0xff]
        %v1633 = vld [vmem:[#allocation2 + $0x870] sm:$0xff]
        %v1634 = vld [vmem:[#allocation2 + $0x878] sm:$0xff]
        %v1635 = vld [vmem:[#allocation2 + $0x880] sm:$0xff]
        %v1636 = vld [vmem:[#allocation2 + $0x888] sm:$0xff]
        %v1637 = vld [vmem:[#allocation2 + $0x890] sm:$0xff]
        %v1638 = vld [vmem:[#allocation2 + $0x898] sm:$0xff]
        %v1639 = vld [vmem:[#allocation2 + $0x8a0] sm:$0xff]
        %v1640 = vld [vmem:[#allocation2 + $0x8a8] sm:$0xff]
        %v1641 = vld [vmem:[#allocation2 + $0x8b0] sm:$0xff]
        %v1642 = vld [vmem:[#allocation2 + $0x8b8] sm:$0xff]
        %v1643 = vld [vmem:[#allocation2 + $0x8c0] sm:$0xff]
        %v1644 = vld [vmem:[#allocation2 + $0x8c8] sm:$0xff]
        %v1645 = vld [vmem:[#allocation2 + $0x8d0] sm:$0xff]
        %v1646 = vld [vmem:[#allocation2 + $0x8d8] sm:$0xff]
        %v1647 = vld [vmem:[#allocation2 + $0x8e0] sm:$0xff]
        %v1648 = vld [vmem:[#allocation2 + $0x8e8] sm:$0xff]
        %v1649 = vld [vmem:[#allocation2 + $0x8f0] sm:$0xff]
        %v1650 = vld [vmem:[#allocation2 + $0x8f8] sm:$0xff]
        %v1651 = vld [vmem:[%s2] sm:$0xff]
        %1653 = vset.pattern.permute.xlu0 0
        %1654 = vperm.xlu0 %1653, %v1651
        %v1655 = vpop.permute.xlu0 %1654
        %vm1657 = vcmask 588800
        %v1659 = vsel %vm1657, %v1362, 0
        %1661 = vmatprep.subr.mxu0 %v1364
        %1662 = vmatpush1.msra.mxu0 %v1363
        %1663 = vmatprep.subr.mxu0 %v1396
        %1664 = vmatpush1.msra.mxu0 %v1395
        %1665 = vmatprep.subr.mxu0 %v1428
        %1666 = vmatpush1.msra.mxu0 %v1427
        %1667 = vmatprep.subr.mxu0 %v1460
        %1668 = vmatpush1.msra.mxu0 %v1459
        %1669 = vmatprep.subr.mxu0 %v1492
        %1670 = vmatpush1.msra.mxu0 %v1491
        %1671 = vmatprep.subr.mxu0 %v1524
        %1672 = vmatpush1.msra.mxu0 %v1523
        %1673 = vmatprep.subr.mxu0 %v1556
        %1674 = vmatpush1.msra.mxu0 %v1555
        %1675 = vmatprep.subr.mxu0 %v1588
        %1676 = vmatpush1.msra.mxu0 %v1587
        %1677 = vmatprep.subr.mxu0 %v1620
        %1678 = vmatpush1.msra.mxu0 %v1619
        %1679 = vmatprep.subr.mxu0 0.0
        %1680 = vmatpush1.msra.mxu0 0.0
        %1681 = vmatprep.subr.mxu0 0.0
        %1682 = vmatpush1.msra.mxu0 0.0
        %1683 = vmatprep.subr.mxu0 0.0
        %1684 = vmatpush1.msra.mxu0 0.0
        %1685 = vmatprep.subr.mxu0 0.0
        %1686 = vmatpush1.msra.mxu0 0.0
        %1687 = vmatprep.subr.mxu0 0.0
        %1688 = vmatpush1.msra.mxu0 0.0
        %1689 = vmatprep.subr.mxu0 0.0
        %1690 = vmatpush1.msra.mxu0 0.0
        %1691 = vmatprep.subr.mxu0 0.0
        %1692 = vmatpush1.msra.mxu0 0.0
        %1693 = vmatprep.subr.mxu0 0.0
        %1694 = vmatpush1.msra.mxu0 0.0
        %1695 = vmatprep.subr.mxu0 0.0
        %1696 = vmatpush1.msra.mxu0 0.0
        %1697 = vmatprep.subr.mxu0 0.0
        %1698 = vmatpush1.msra.mxu0 0.0
        %1699 = vmatprep.subr.mxu0 0.0
        %1700 = vmatpush1.msra.mxu0 0.0
        %1701 = vmatprep.subr.mxu0 0.0
        %1702 = vmatpush1.msra.mxu0 0.0
        %1703 = vmatprep.subr.mxu0 0.0
        %1704 = vmatpush1.msra.mxu0 0.0
        %1705 = vmatprep.subr.mxu0 0.0
        %1706 = vmatpush1.msra.mxu0 0.0
        %1707 = vmatprep.subr.mxu0 0.0
        %1708 = vmatpush1.msra.mxu0 0.0
        %1709 = vmatprep.subr.mxu0 0.0
        %1710 = vmatpush1.msra.mxu0 0.0
        %1711 = vmatprep.subr.mxu0 0.0
        %1712 = vmatpush1.msra.mxu0 0.0
        %1713 = vmatprep.subr.mxu0 0.0
        %1714 = vmatpush1.msra.mxu0 0.0
        %1715 = vmatprep.subr.mxu0 0.0
        %1716 = vmatpush1.msra.mxu0 0.0
        %1717 = vmatprep.subr.mxu0 0.0
        %1718 = vmatpush1.msra.mxu0 0.0
        %1719 = vmatprep.subr.mxu0 0.0
        %1720 = vmatpush1.msra.mxu0 0.0
        %1721 = vmatprep.subr.mxu0 0.0
        %1722 = vmatpush1.msra.mxu0 0.0
        %1723 = vmatprep.subr.mxu0 0.0
        %1724 = vmatpush1.msra.mxu0 0.0
        %1725 = vmatprep.mubr.f32.mxu0 0.0
        %1726 = vmatmul.mubr.f32.gmra.mrb[0].mxu0 %v1659
        %v1727 = vpop.f32.mrb[0].mxu0
        %v1728 = vadd.f32 %v1655, %v1727
        %v1729 = vpop.f32.mrb[0].mxu0
        %v1730 = vadd.f32 %v1655, %v1729
        %1731 = vdwg.mxu0
        %1732 = vmatprep.subr.mxu0 %v1366
        %1733 = vmatpush1.msra.mxu0 %v1365
        %1734 = vmatprep.subr.mxu0 %v1398
        %1735 = vmatpush1.msra.mxu0 %v1397
        %1736 = vmatprep.subr.mxu0 %v1430
        %1737 = vmatpush1.msra.mxu0 %v1429
        %1738 = vmatprep.subr.mxu0 %v1462
        %1739 = vmatpush1.msra.mxu0 %v1461
        %1740 = vmatprep.subr.mxu0 %v1494
        %1741 = vmatpush1.msra.mxu0 %v1493
        %1742 = vmatprep.subr.mxu0 %v1526
        %1743 = vmatpush1.msra.mxu0 %v1525
        %1744 = vmatprep.subr.mxu0 %v1558
        %1745 = vmatpush1.msra.mxu0 %v1557
        %1746 = vmatprep.subr.mxu0 %v1590
        %1747 = vmatpush1.msra.mxu0 %v1589
        %1748 = vmatprep.subr.mxu0 %v1622
        %1749 = vmatpush1.msra.mxu0 %v1621
        %1750 = vmatprep.subr.mxu0 0.0
        %1751 = vmatpush1.msra.mxu0 0.0
        %1752 = vmatprep.subr.mxu0 0.0
        %1753 = vmatpush1.msra.mxu0 0.0
        %1754 = vmatprep.subr.mxu0 0.0
        %1755 = vmatpush1.msra.mxu0 0.0
        %1756 = vmatprep.subr.mxu0 0.0
        %1757 = vmatpush1.msra.mxu0 0.0
        %1758 = vmatprep.subr.mxu0 0.0
        %1759 = vmatpush1.msra.mxu0 0.0
        %1760 = vmatprep.subr.mxu0 0.0
        %1761 = vmatpush1.msra.mxu0 0.0
        %1762 = vmatprep.subr.mxu0 0.0
        %1763 = vmatpush1.msra.mxu0 0.0
        %1764 = vmatprep.subr.mxu0 0.0
        %1765 = vmatpush1.msra.mxu0 0.0
        %1766 = vmatprep.subr.mxu0 0.0
        %1767 = vmatpush1.msra.mxu0 0.0
        %1768 = vmatprep.subr.mxu0 0.0
        %1769 = vmatpush1.msra.mxu0 0.0
        %1770 = vmatprep.subr.mxu0 0.0
        %1771 = vmatpush1.msra.mxu0 0.0
        %1772 = vmatprep.subr.mxu0 0.0
        %1773 = vmatpush1.msra.mxu0 0.0
        %1774 = vmatprep.subr.mxu0 0.0
        %1775 = vmatpush1.msra.mxu0 0.0
        %1776 = vmatprep.subr.mxu0 0.0
        %1777 = vmatpush1.msra.mxu0 0.0
        %1778 = vmatprep.subr.mxu0 0.0
        %1779 = vmatpush1.msra.mxu0 0.0
        %1780 = vmatprep.subr.mxu0 0.0
        %1781 = vmatpush1.msra.mxu0 0.0
        %1782 = vmatprep.subr.mxu0 0.0
        %1783 = vmatpush1.msra.mxu0 0.0
        %1784 = vmatprep.subr.mxu0 0.0
        %1785 = vmatpush1.msra.mxu0 0.0
        %1786 = vmatprep.subr.mxu0 0.0
        %1787 = vmatpush1.msra.mxu0 0.0
        %1788 = vmatprep.subr.mxu0 0.0
        %1789 = vmatpush1.msra.mxu0 0.0
        %1790 = vmatprep.subr.mxu0 0.0
        %1791 = vmatpush1.msra.mxu0 0.0
        %1792 = vmatprep.subr.mxu0 0.0
        %1793 = vmatpush1.msra.mxu0 0.0
        %1794 = vmatprep.subr.mxu0 0.0
        %1795 = vmatpush1.msra.mxu0 0.0
        %1796 = vmatprep.mubr.f32.mxu0 0.0
        %1797 = vmatmul.mubr.f32.gmra.mrb[0].mxu0 %v1659
        %v1798 = vpop.f32.mrb[0].mxu0
        %v1799 = vadd.f32 %v1655, %v1798
        %v1800 = vpop.f32.mrb[0].mxu0
        %v1801 = vadd.f32 %v1655, %v1800
        %1802 = vdwg.mxu0
        %1803 = vmatprep.subr.mxu0 %v1368
        %1804 = vmatpush1.msra.mxu0 %v1367
        %1805 = vmatprep.subr.mxu0 %v1400
        %1806 = vmatpush1.msra.mxu0 %v1399
        %1807 = vmatprep.subr.mxu0 %v1432
        %1808 = vmatpush1.msra.mxu0 %v1431
        %1809 = vmatprep.subr.mxu0 %v1464
        %1810 = vmatpush1.msra.mxu0 %v1463
        %1811 = vmatprep.subr.mxu0 %v1496
        %1812 = vmatpush1.msra.mxu0 %v1495
        %1813 = vmatprep.subr.mxu0 %v1528
        %1814 = vmatpush1.msra.mxu0 %v1527
        %1815 = vmatprep.subr.mxu0 %v1560
        %1816 = vmatpush1.msra.mxu0 %v1559
        %1817 = vmatprep.subr.mxu0 %v1592
        %1818 = vmatpush1.msra.mxu0 %v1591
        %1819 = vmatprep.subr.mxu0 %v1624
        %1820 = vmatpush1.msra.mxu0 %v1623
        %1821 = vmatprep.subr.mxu0 0.0
        %1822 = vmatpush1.msra.mxu0 0.0
        %1823 = vmatprep.subr.mxu0 0.0
        %1824 = vmatpush1.msra.mxu0 0.0
        %1825 = vmatprep.subr.mxu0 0.0
        %1826 = vmatpush1.msra.mxu0 0.0
        %1827 = vmatprep.subr.mxu0 0.0
        %1828 = vmatpush1.msra.mxu0 0.0
        %1829 = vmatprep.subr.mxu0 0.0
        %1830 = vmatpush1.msra.mxu0 0.0
        %1831 = vmatprep.subr.mxu0 0.0
        %1832 = vmatpush1.msra.mxu0 0.0
        %1833 = vmatprep.subr.mxu0 0.0
        %1834 = vmatpush1.msra.mxu0 0.0
        %1835 = vmatprep.subr.mxu0 0.0
        %1836 = vmatpush1.msra.mxu0 0.0
        %1837 = vmatprep.subr.mxu0 0.0
        %1838 = vmatpush1.msra.mxu0 0.0
        %1839 = vmatprep.subr.mxu0 0.0
        %1840 = vmatpush1.msra.mxu0 0.0
        %1841 = vmatprep.subr.mxu0 0.0
        %1842 = vmatpush1.msra.mxu0 0.0
        %1843 = vmatprep.subr.mxu0 0.0
        %1844 = vmatpush1.msra.mxu0 0.0
        %1845 = vmatprep.subr.mxu0 0.0
        %1846 = vmatpush1.msra.mxu0 0.0
        %1847 = vmatprep.subr.mxu0 0.0
        %1848 = vmatpush1.msra.mxu0 0.0
        %1849 = vmatprep.subr.mxu0 0.0
        %1850 = vmatpush1.msra.mxu0 0.0
        %1851 = vmatprep.subr.mxu0 0.0
        %1852 = vmatpush1.msra.mxu0 0.0
        %1853 = vmatprep.subr.mxu0 0.0
        %1854 = vmatpush1.msra.mxu0 0.0
        %1855 = vmatprep.subr.mxu0 0.0
        %1856 = vmatpush1.msra.mxu0 0.0
        %1857 = vmatprep.subr.mxu0 0.0
        %1858 = vmatpush1.msra.mxu0 0.0
        %1859 = vmatprep.subr.mxu0 0.0
        %1860 = vmatpush1.msra.mxu0 0.0
        %1861 = vmatprep.subr.mxu0 0.0
        %1862 = vmatpush1.msra.mxu0 0.0
        %1863 = vmatprep.subr.mxu0 0.0
        %1864 = vmatpush1.msra.mxu0 0.0
        %1865 = vmatprep.subr.mxu0 0.0
        %1866 = vmatpush1.msra.mxu0 0.0
        %1867 = vmatprep.mubr.f32.mxu0 0.0
        %1868 = vmatmul.mubr.f32.gmra.mrb[0].mxu0 %v1659
        %v1869 = vpop.f32.mrb[0].mxu0
        %v1870 = vadd.f32 %v1655, %v1869
        %v1871 = vpop.f32.mrb[0].mxu0
        %v1872 = vadd.f32 %v1655, %v1871
        %1873 = vdwg.mxu0
        %1874 = vmatprep.subr.mxu0 %v1370
        %1875 = vmatpush1.msra.mxu0 %v1369
        %1876 = vmatprep.subr.mxu0 %v1402
        %1877 = vmatpush1.msra.mxu0 %v1401
        %1878 = vmatprep.subr.mxu0 %v1434
        %1879 = vmatpush1.msra.mxu0 %v1433
        %1880 = vmatprep.subr.mxu0 %v1466
        %1881 = vmatpush1.msra.mxu0 %v1465
        %1882 = vmatprep.subr.mxu0 %v1498
        %1883 = vmatpush1.msra.mxu0 %v1497
        %1884 = vmatprep.subr.mxu0 %v1530
        %1885 = vmatpush1.msra.mxu0 %v1529
        %1886 = vmatprep.subr.mxu0 %v1562
        %1887 = vmatpush1.msra.mxu0 %v1561
        %1888 = vmatprep.subr.mxu0 %v1594
        %1889 = vmatpush1.msra.mxu0 %v1593
        %1890 = vmatprep.subr.mxu0 %v1626
        %1891 = vmatpush1.msra.mxu0 %v1625
        %1892 = vmatprep.subr.mxu0 0.0
        %1893 = vmatpush1.msra.mxu0 0.0
        %1894 = vmatprep.subr.mxu0 0.0
        %1895 = vmatpush1.msra.mxu0 0.0
        %1896 = vmatprep.subr.mxu0 0.0
        %1897 = vmatpush1.msra.mxu0 0.0
        %1898 = vmatprep.subr.mxu0 0.0
        %1899 = vmatpush1.msra.mxu0 0.0
        %1900 = vmatprep.subr.mxu0 0.0
        %1901 = vmatpush1.msra.mxu0 0.0
        %1902 = vmatprep.subr.mxu0 0.0
        %1903 = vmatpush1.msra.mxu0 0.0
        %1904 = vmatprep.subr.mxu0 0.0
        %1905 = vmatpush1.msra.mxu0 0.0
        %1906 = vmatprep.subr.mxu0 0.0
        %1907 = vmatpush1.msra.mxu0 0.0
        %1908 = vmatprep.subr.mxu0 0.0
        %1909 = vmatpush1.msra.mxu0 0.0
        %1910 = vmatprep.subr.mxu0 0.0
        %1911 = vmatpush1.msra.mxu0 0.0
        %1912 = vmatprep.subr.mxu0 0.0
        %1913 = vmatpush1.msra.mxu0 0.0
        %1914 = vmatprep.subr.mxu0 0.0
        %1915 = vmatpush1.msra.mxu0 0.0
        %1916 = vmatprep.subr.mxu0 0.0
        %1917 = vmatpush1.msra.mxu0 0.0
        %1918 = vmatprep.subr.mxu0 0.0
        %1919 = vmatpush1.msra.mxu0 0.0
        %1920 = vmatprep.subr.mxu0 0.0
        %1921 = vmatpush1.msra.mxu0 0.0
        %1922 = vmatprep.subr.mxu0 0.0
        %1923 = vmatpush1.msra.mxu0 0.0
        %1924 = vmatprep.subr.mxu0 0.0
        %1925 = vmatpush1.msra.mxu0 0.0
        %1926 = vmatprep.subr.mxu0 0.0
        %1927 = vmatpush1.msra.mxu0 0.0
        %1928 = vmatprep.subr.mxu0 0.0
        %1929 = vmatpush1.msra.mxu0 0.0
        %1930 = vmatprep.subr.mxu0 0.0
        %1931 = vmatpush1.msra.mxu0 0.0
        %1932 = vmatprep.subr.mxu0 0.0
        %1933 = vmatpush1.msra.mxu0 0.0
        %1934 = vmatprep.subr.mxu0 0.0
        %1935 = vmatpush1.msra.mxu0 0.0
        %1936 = vmatprep.subr.mxu0 0.0
        %1937 = vmatpush1.msra.mxu0 0.0
        %1938 = vmatprep.mubr.f32.mxu0 0.0
        %1939 = vmatmul.mubr.f32.gmra.mrb[0].mxu0 %v1659
        %v1940 = vpop.f32.mrb[0].mxu0
        %v1941 = vadd.f32 %v1655, %v1940
        %v1942 = vpop.f32.mrb[0].mxu0
        %v1943 = vadd.f32 %v1655, %v1942
        %1944 = vdwg.mxu0
        %1945 = vmatprep.subr.mxu0 %v1372
        %1946 = vmatpush1.msra.mxu0 %v1371
        %1947 = vmatprep.subr.mxu0 %v1404
        %1948 = vmatpush1.msra.mxu0 %v1403
        %1949 = vmatprep.subr.mxu0 %v1436
        %1950 = vmatpush1.msra.mxu0 %v1435
        %1951 = vmatprep.subr.mxu0 %v1468
        %1952 = vmatpush1.msra.mxu0 %v1467
        %1953 = vmatprep.subr.mxu0 %v1500
        %1954 = vmatpush1.msra.mxu0 %v1499
        %1955 = vmatprep.subr.mxu0 %v1532
        %1956 = vmatpush1.msra.mxu0 %v1531
        %1957 = vmatprep.subr.mxu0 %v1564
        %1958 = vmatpush1.msra.mxu0 %v1563
        %1959 = vmatprep.subr.mxu0 %v1596
        %1960 = vmatpush1.msra.mxu0 %v1595
        %1961 = vmatprep.subr.mxu0 %v1628
        %1962 = vmatpush1.msra.mxu0 %v1627
        %1963 = vmatprep.subr.mxu0 0.0
        %1964 = vmatpush1.msra.mxu0 0.0
        %1965 = vmatprep.subr.mxu0 0.0
        %1966 = vmatpush1.msra.mxu0 0.0
        %1967 = vmatprep.subr.mxu0 0.0
        %1968 = vmatpush1.msra.mxu0 0.0
        %1969 = vmatprep.subr.mxu0 0.0
        %1970 = vmatpush1.msra.mxu0 0.0
        %1971 = vmatprep.subr.mxu0 0.0
        %1972 = vmatpush1.msra.mxu0 0.0
        %1973 = vmatprep.subr.mxu0 0.0
        %1974 = vmatpush1.msra.mxu0 0.0
        %1975 = vmatprep.subr.mxu0 0.0
        %1976 = vmatpush1.msra.mxu0 0.0
        %1977 = vmatprep.subr.mxu0 0.0
        %1978 = vmatpush1.msra.mxu0 0.0
        %1979 = vmatprep.subr.mxu0 0.0
        %1980 = vmatpush1.msra.mxu0 0.0
        %1981 = vmatprep.subr.mxu0 0.0
        %1982 = vmatpush1.msra.mxu0 0.0
        %1983 = vmatprep.subr.mxu0 0.0
        %1984 = vmatpush1.msra.mxu0 0.0
        %1985 = vmatprep.subr.mxu0 0.0
        %1986 = vmatpush1.msra.mxu0 0.0
        %1987 = vmatprep.subr.mxu0 0.0
        %1988 = vmatpush1.msra.mxu0 0.0
        %1989 = vmatprep.subr.mxu0 0.0
        %1990 = vmatpush1.msra.mxu0 0.0
        %1991 = vmatprep.subr.mxu0 0.0
        %1992 = vmatpush1.msra.mxu0 0.0
        %1993 = vmatprep.subr.mxu0 0.0
        %1994 = vmatpush1.msra.mxu0 0.0
        %1995 = vmatprep.subr.mxu0 0.0
        %1996 = vmatpush1.msra.mxu0 0.0
        %1997 = vmatprep.subr.mxu0 0.0
        %1998 = vmatpush1.msra.mxu0 0.0
        %1999 = vmatprep.subr.mxu0 0.0
        %2000 = vmatpush1.msra.mxu0 0.0
        %2001 = vmatprep.subr.mxu0 0.0
        %2002 = vmatpush1.msra.mxu0 0.0
        %2003 = vmatprep.subr.mxu0 0.0
        %2004 = vmatpush1.msra.mxu0 0.0
        %2005 = vmatprep.subr.mxu0 0.0
        %2006 = vmatpush1.msra.mxu0 0.0
        %2007 = vmatprep.subr.mxu0 0.0
        %2008 = vmatpush1.msra.mxu0 0.0
        %2009 = vmatprep.mubr.f32.mxu0 0.0
        %2010 = vmatmul.mubr.f32.gmra.mrb[0].mxu0 %v1659
        %v2011 = vpop.f32.mrb[0].mxu0
        %v2012 = vadd.f32 %v1655, %v2011
        %v2013 = vpop.f32.mrb[0].mxu0
        %v2014 = vadd.f32 %v1655, %v2013
        %2015 = vdwg.mxu0
        %2016 = vmatprep.subr.mxu0 %v1374
        %2017 = vmatpush1.msra.mxu0 %v1373
        %2018 = vmatprep.subr.mxu0 %v1406
        %2019 = vmatpush1.msra.mxu0 %v1405
        %2020 = vmatprep.subr.mxu0 %v1438
        %2021 = vmatpush1.msra.mxu0 %v1437
        %2022 = vmatprep.subr.mxu0 %v1470
        %2023 = vmatpush1.msra.mxu0 %v1469
        %2024 = vmatprep.subr.mxu0 %v1502
        %2025 = vmatpush1.msra.mxu0 %v1501
        %2026 = vmatprep.subr.mxu0 %v1534
        %2027 = vmatpush1.msra.mxu0 %v1533
        %2028 = vmatprep.subr.mxu0 %v1566
        %2029 = vmatpush1.msra.mxu0 %v1565
        %2030 = vmatprep.subr.mxu0 %v1598
        %2031 = vmatpush1.msra.mxu0 %v1597
        %2032 = vmatprep.subr.mxu0 %v1630
        %2033 = vmatpush1.msra.mxu0 %v1629
        %2034 = vmatprep.subr.mxu0 0.0
        %2035 = vmatpush1.msra.mxu0 0.0
        %2036 = vmatprep.subr.mxu0 0.0
        %2037 = vmatpush1.msra.mxu0 0.0
        %2038 = vmatprep.subr.mxu0 0.0
        %2039 = vmatpush1.msra.mxu0 0.0
        %2040 = vmatprep.subr.mxu0 0.0
        %2041 = vmatpush1.msra.mxu0 0.0
        %2042 = vmatprep.subr.mxu0 0.0
        %2043 = vmatpush1.msra.mxu0 0.0
        %2044 = vmatprep.subr.mxu0 0.0
        %2045 = vmatpush1.msra.mxu0 0.0
        %2046 = vmatprep.subr.mxu0 0.0
        %2047 = vmatpush1.msra.mxu0 0.0
        %2048 = vmatprep.subr.mxu0 0.0
        %2049 = vmatpush1.msra.mxu0 0.0
        %2050 = vmatprep.subr.mxu0 0.0
        %2051 = vmatpush1.msra.mxu0 0.0
        %2052 = vmatprep.subr.mxu0 0.0
        %2053 = vmatpush1.msra.mxu0 0.0
        %2054 = vmatprep.subr.mxu0 0.0
        %2055 = vmatpush1.msra.mxu0 0.0
        %2056 = vmatprep.subr.mxu0 0.0
        %2057 = vmatpush1.msra.mxu0 0.0
        %2058 = vmatprep.subr.mxu0 0.0
        %2059 = vmatpush1.msra.mxu0 0.0
        %2060 = vmatprep.subr.mxu0 0.0
        %2061 = vmatpush1.msra.mxu0 0.0
        %2062 = vmatprep.subr.mxu0 0.0
        %2063 = vmatpush1.msra.mxu0 0.0
        %2064 = vmatprep.subr.mxu0 0.0
        %2065 = vmatpush1.msra.mxu0 0.0
        %2066 = vmatprep.subr.mxu0 0.0
        %2067 = vmatpush1.msra.mxu0 0.0
        %2068 = vmatprep.subr.mxu0 0.0
        %2069 = vmatpush1.msra.mxu0 0.0
        %2070 = vmatprep.subr.mxu0 0.0
        %2071 = vmatpush1.msra.mxu0 0.0
        %2072 = vmatprep.subr.mxu0 0.0
        %2073 = vmatpush1.msra.mxu0 0.0
        %2074 = vmatprep.subr.mxu0 0.0
        %2075 = vmatpush1.msra.mxu0 0.0
        %2076 = vmatprep.subr.mxu0 0.0
        %2077 = vmatpush1.msra.mxu0 0.0
        %2078 = vmatprep.subr.mxu0 0.0
        %2079 = vmatpush1.msra.mxu0 0.0
        %2080 = vmatprep.mubr.f32.mxu0 0.0
        %2081 = vmatmul.mubr.f32.gmra.mrb[0].mxu0 %v1659
        %v2082 = vpop.f32.mrb[0].mxu0
        %v2083 = vadd.f32 %v1655, %v2082
        %v2084 = vpop.f32.mrb[0].mxu0
        %v2085 = vadd.f32 %v1655, %v2084
        %2086 = vdwg.mxu0
        %2087 = vmatprep.subr.mxu0 %v1376
        %2088 = vmatpush1.msra.mxu0 %v1375
        %2089 = vmatprep.subr.mxu0 %v1408
        %2090 = vmatpush1.msra.mxu0 %v1407
        %2091 = vmatprep.subr.mxu0 %v1440
        %2092 = vmatpush1.msra.mxu0 %v1439
        %2093 = vmatprep.subr.mxu0 %v1472
        %2094 = vmatpush1.msra.mxu0 %v1471
        %2095 = vmatprep.subr.mxu0 %v1504
        %2096 = vmatpush1.msra.mxu0 %v1503
        %2097 = vmatprep.subr.mxu0 %v1536
        %2098 = vmatpush1.msra.mxu0 %v1535
        %2099 = vmatprep.subr.mxu0 %v1568
        %2100 = vmatpush1.msra.mxu0 %v1567
        %2101 = vmatprep.subr.mxu0 %v1600
        %2102 = vmatpush1.msra.mxu0 %v1599
        %2103 = vmatprep.subr.mxu0 %v1632
        %2104 = vmatpush1.msra.mxu0 %v1631
        %2105 = vmatprep.subr.mxu0 0.0
        %2106 = vmatpush1.msra.mxu0 0.0
        %2107 = vmatprep.subr.mxu0 0.0
        %2108 = vmatpush1.msra.mxu0 0.0
        %2109 = vmatprep.subr.mxu0 0.0
        %2110 = vmatpush1.msra.mxu0 0.0
        %2111 = vmatprep.subr.mxu0 0.0
        %2112 = vmatpush1.msra.mxu0 0.0
        %2113 = vmatprep.subr.mxu0 0.0
        %2114 = vmatpush1.msra.mxu0 0.0
        %2115 = vmatprep.subr.mxu0 0.0
        %2116 = vmatpush1.msra.mxu0 0.0
        %2117 = vmatprep.subr.mxu0 0.0
        %2118 = vmatpush1.msra.mxu0 0.0
        %2119 = vmatprep.subr.mxu0 0.0
        %2120 = vmatpush1.msra.mxu0 0.0
        %2121 = vmatprep.subr.mxu0 0.0
        %2122 = vmatpush1.msra.mxu0 0.0
        %2123 = vmatprep.subr.mxu0 0.0
        %2124 = vmatpush1.msra.mxu0 0.0
        %2125 = vmatprep.subr.mxu0 0.0
        %2126 = vmatpush1.msra.mxu0 0.0
        %2127 = vmatprep.subr.mxu0 0.0
        %2128 = vmatpush1.msra.mxu0 0.0
        %2129 = vmatprep.subr.mxu0 0.0
        %2130 = vmatpush1.msra.mxu0 0.0
        %2131 = vmatprep.subr.mxu0 0.0
        %2132 = vmatpush1.msra.mxu0 0.0
        %2133 = vmatprep.subr.mxu0 0.0
        %2134 = vmatpush1.msra.mxu0 0.0
        %2135 = vmatprep.subr.mxu0 0.0
        %2136 = vmatpush1.msra.mxu0 0.0
        %2137 = vmatprep.subr.mxu0 0.0
        %2138 = vmatpush1.msra.mxu0 0.0
        %2139 = vmatprep.subr.mxu0 0.0
        %2140 = vmatpush1.msra.mxu0 0.0
        %2141 = vmatprep.subr.mxu0 0.0
        %2142 = vmatpush1.msra.mxu0 0.0
        %2143 = vmatprep.subr.mxu0 0.0
        %2144 = vmatpush1.msra.mxu0 0.0
        %2145 = vmatprep.subr.mxu0 0.0
        %2146 = vmatpush1.msra.mxu0 0.0
        %2147 = vmatprep.subr.mxu0 0.0
        %2148 = vmatpush1.msra.mxu0 0.0
        %2149 = vmatprep.subr.mxu0 0.0
        %2150 = vmatpush1.msra.mxu0 0.0
        %2151 = vmatprep.mubr.f32.mxu0 0.0
        %2152 = vmatmul.mubr.f32.gmra.mrb[0].mxu0 %v1659
        %v2153 = vpop.f32.mrb[0].mxu0
        %v2154 = vadd.f32 %v1655, %v2153
        %v2155 = vpop.f32.mrb[0].mxu0
        %v2156 = vadd.f32 %v1655, %v2155
        %2157 = vdwg.mxu0
        %2158 = vmatprep.subr.mxu0 %v1378
        %2159 = vmatpush1.msra.mxu0 %v1377
        %2160 = vmatprep.subr.mxu0 %v1410
        %2161 = vmatpush1.msra.mxu0 %v1409
        %2162 = vmatprep.subr.mxu0 %v1442
        %2163 = vmatpush1.msra.mxu0 %v1441
        %2164 = vmatprep.subr.mxu0 %v1474
        %2165 = vmatpush1.msra.mxu0 %v1473
        %2166 = vmatprep.subr.mxu0 %v1506
        %2167 = vmatpush1.msra.mxu0 %v1505
        %2168 = vmatprep.subr.mxu0 %v1538
        %2169 = vmatpush1.msra.mxu0 %v1537
        %2170 = vmatprep.subr.mxu0 %v1570
        %2171 = vmatpush1.msra.mxu0 %v1569
        %2172 = vmatprep.subr.mxu0 %v1602
        %2173 = vmatpush1.msra.mxu0 %v1601
        %2174 = vmatprep.subr.mxu0 %v1634
        %2175 = vmatpush1.msra.mxu0 %v1633
        %2176 = vmatprep.subr.mxu0 0.0
        %2177 = vmatpush1.msra.mxu0 0.0
        %2178 = vmatprep.subr.mxu0 0.0
        %2179 = vmatpush1.msra.mxu0 0.0
        %2180 = vmatprep.subr.mxu0 0.0
        %2181 = vmatpush1.msra.mxu0 0.0
        %2182 = vmatprep.subr.mxu0 0.0
        %2183 = vmatpush1.msra.mxu0 0.0
        %2184 = vmatprep.subr.mxu0 0.0
        %2185 = vmatpush1.msra.mxu0 0.0
        %2186 = vmatprep.subr.mxu0 0.0
        %2187 = vmatpush1.msra.mxu0 0.0
        %2188 = vmatprep.subr.mxu0 0.0
        %2189 = vmatpush1.msra.mxu0 0.0
        %2190 = vmatprep.subr.mxu0 0.0
        %2191 = vmatpush1.msra.mxu0 0.0
        %2192 = vmatprep.subr.mxu0 0.0
        %2193 = vmatpush1.msra.mxu0 0.0
        %2194 = vmatprep.subr.mxu0 0.0
        %2195 = vmatpush1.msra.mxu0 0.0
        %2196 = vmatprep.subr.mxu0 0.0
        %2197 = vmatpush1.msra.mxu0 0.0
        %2198 = vmatprep.subr.mxu0 0.0
        %2199 = vmatpush1.msra.mxu0 0.0
        %2200 = vmatprep.subr.mxu0 0.0
        %2201 = vmatpush1.msra.mxu0 0.0
        %2202 = vmatprep.subr.mxu0 0.0
        %2203 = vmatpush1.msra.mxu0 0.0
        %2204 = vmatprep.subr.mxu0 0.0
        %2205 = vmatpush1.msra.mxu0 0.0
        %2206 = vmatprep.subr.mxu0 0.0
        %2207 = vmatpush1.msra.mxu0 0.0
        %2208 = vmatprep.subr.mxu0 0.0
        %2209 = vmatpush1.msra.mxu0 0.0
        %2210 = vmatprep.subr.mxu0 0.0
        %2211 = vmatpush1.msra.mxu0 0.0
        %2212 = vmatprep.subr.mxu0 0.0
        %2213 = vmatpush1.msra.mxu0 0.0
        %2214 = vmatprep.subr.mxu0 0.0
        %2215 = vmatpush1.msra.mxu0 0.0
        %2216 = vmatprep.subr.mxu0 0.0
        %2217 = vmatpush1.msra.mxu0 0.0
        %2218 = vmatprep.subr.mxu0 0.0
        %2219 = vmatpush1.msra.mxu0 0.0
        %2220 = vmatprep.subr.mxu0 0.0
        %2221 = vmatpush1.msra.mxu0 0.0
        %2222 = vmatprep.mubr.f32.mxu0 0.0
        %2223 = vmatmul.mubr.f32.gmra.mrb[0].mxu0 %v1659
        %v2224 = vpop.f32.mrb[0].mxu0
        %v2225 = vadd.f32 %v1655, %v2224
        %v2226 = vpop.f32.mrb[0].mxu0
        %v2227 = vadd.f32 %v1655, %v2226
        %2228 = vdwg.mxu0
        %2229 = vmatprep.subr.mxu0 %v1380
        %2230 = vmatpush1.msra.mxu0 %v1379
        %2231 = vmatprep.subr.mxu0 %v1412
        %2232 = vmatpush1.msra.mxu0 %v1411
        %2233 = vmatprep.subr.mxu0 %v1444
        %2234 = vmatpush1.msra.mxu0 %v1443
        %2235 = vmatprep.subr.mxu0 %v1476
        %2236 = vmatpush1.msra.mxu0 %v1475
        %2237 = vmatprep.subr.mxu0 %v1508
        %2238 = vmatpush1.msra.mxu0 %v1507
        %2239 = vmatprep.subr.mxu0 %v1540
        %2240 = vmatpush1.msra.mxu0 %v1539
        %2241 = vmatprep.subr.mxu0 %v1572
        %2242 = vmatpush1.msra.mxu0 %v1571
        %2243 = vmatprep.subr.mxu0 %v1604
        %2244 = vmatpush1.msra.mxu0 %v1603
        %2245 = vmatprep.subr.mxu0 %v1636
        %2246 = vmatpush1.msra.mxu0 %v1635
        %2247 = vmatprep.subr.mxu0 0.0
        %2248 = vmatpush1.msra.mxu0 0.0
        %2249 = vmatprep.subr.mxu0 0.0
        %2250 = vmatpush1.msra.mxu0 0.0
        %2251 = vmatprep.subr.mxu0 0.0
        %2252 = vmatpush1.msra.mxu0 0.0
        %2253 = vmatprep.subr.mxu0 0.0
        %2254 = vmatpush1.msra.mxu0 0.0
        %2255 = vmatprep.subr.mxu0 0.0
        %2256 = vmatpush1.msra.mxu0 0.0
        %2257 = vmatprep.subr.mxu0 0.0
        %2258 = vmatpush1.msra.mxu0 0.0
        %2259 = vmatprep.subr.mxu0 0.0
        %2260 = vmatpush1.msra.mxu0 0.0
        %2261 = vmatprep.subr.mxu0 0.0
        %2262 = vmatpush1.msra.mxu0 0.0
        %2263 = vmatprep.subr.mxu0 0.0
        %2264 = vmatpush1.msra.mxu0 0.0
        %2265 = vmatprep.subr.mxu0 0.0
        %2266 = vmatpush1.msra.mxu0 0.0
        %2267 = vmatprep.subr.mxu0 0.0
        %2268 = vmatpush1.msra.mxu0 0.0
        %2269 = vmatprep.subr.mxu0 0.0
        %2270 = vmatpush1.msra.mxu0 0.0
        %2271 = vmatprep.subr.mxu0 0.0
        %2272 = vmatpush1.msra.mxu0 0.0
        %2273 = vmatprep.subr.mxu0 0.0
        %2274 = vmatpush1.msra.mxu0 0.0
        %2275 = vmatprep.subr.mxu0 0.0
        %2276 = vmatpush1.msra.mxu0 0.0
        %2277 = vmatprep.subr.mxu0 0.0
        %2278 = vmatpush1.msra.mxu0 0.0
        %2279 = vmatprep.subr.mxu0 0.0
        %2280 = vmatpush1.msra.mxu0 0.0
        %2281 = vmatprep.subr.mxu0 0.0
        %2282 = vmatpush1.msra.mxu0 0.0
        %2283 = vmatprep.subr.mxu0 0.0
        %2284 = vmatpush1.msra.mxu0 0.0
        %2285 = vmatprep.subr.mxu0 0.0
        %2286 = vmatpush1.msra.mxu0 0.0
        %2287 = vmatprep.subr.mxu0 0.0
        %2288 = vmatpush1.msra.mxu0 0.0
        %2289 = vmatprep.subr.mxu0 0.0
        %2290 = vmatpush1.msra.mxu0 0.0
        %2291 = vmatprep.subr.mxu0 0.0
        %2292 = vmatpush1.msra.mxu0 0.0
        %2293 = vmatprep.mubr.f32.mxu0 0.0
        %2294 = vmatmul.mubr.f32.gmra.mrb[0].mxu0 %v1659
        %v2295 = vpop.f32.mrb[0].mxu0
        %v2296 = vadd.f32 %v1655, %v2295
        %v2297 = vpop.f32.mrb[0].mxu0
        %v2298 = vadd.f32 %v1655, %v2297
        %2299 = vdwg.mxu0
        %2300 = vmatprep.subr.mxu0 %v1382
        %2301 = vmatpush1.msra.mxu0 %v1381
        %2302 = vmatprep.subr.mxu0 %v1414
        %2303 = vmatpush1.msra.mxu0 %v1413
        %2304 = vmatprep.subr.mxu0 %v1446
        %2305 = vmatpush1.msra.mxu0 %v1445
        %2306 = vmatprep.subr.mxu0 %v1478
        %2307 = vmatpush1.msra.mxu0 %v1477
        %2308 = vmatprep.subr.mxu0 %v1510
        %2309 = vmatpush1.msra.mxu0 %v1509
        %2310 = vmatprep.subr.mxu0 %v1542
        %2311 = vmatpush1.msra.mxu0 %v1541
        %2312 = vmatprep.subr.mxu0 %v1574
        %2313 = vmatpush1.msra.mxu0 %v1573
        %2314 = vmatprep.subr.mxu0 %v1606
        %2315 = vmatpush1.msra.mxu0 %v1605
        %2316 = vmatprep.subr.mxu0 %v1638
        %2317 = vmatpush1.msra.mxu0 %v1637
        %2318 = vmatprep.subr.mxu0 0.0
        %2319 = vmatpush1.msra.mxu0 0.0
        %2320 = vmatprep.subr.mxu0 0.0
        %2321 = vmatpush1.msra.mxu0 0.0
        %2322 = vmatprep.subr.mxu0 0.0
        %2323 = vmatpush1.msra.mxu0 0.0
        %2324 = vmatprep.subr.mxu0 0.0
        %2325 = vmatpush1.msra.mxu0 0.0
        %2326 = vmatprep.subr.mxu0 0.0
        %2327 = vmatpush1.msra.mxu0 0.0
        %2328 = vmatprep.subr.mxu0 0.0
        %2329 = vmatpush1.msra.mxu0 0.0
        %2330 = vmatprep.subr.mxu0 0.0
        %2331 = vmatpush1.msra.mxu0 0.0
        %2332 = vmatprep.subr.mxu0 0.0
        %2333 = vmatpush1.msra.mxu0 0.0
        %2334 = vmatprep.subr.mxu0 0.0
        %2335 = vmatpush1.msra.mxu0 0.0
        %2336 = vmatprep.subr.mxu0 0.0
        %2337 = vmatpush1.msra.mxu0 0.0
        %2338 = vmatprep.subr.mxu0 0.0
        %2339 = vmatpush1.msra.mxu0 0.0
        %2340 = vmatprep.subr.mxu0 0.0
        %2341 = vmatpush1.msra.mxu0 0.0
        %2342 = vmatprep.subr.mxu0 0.0
        %2343 = vmatpush1.msra.mxu0 0.0
        %2344 = vmatprep.subr.mxu0 0.0
        %2345 = vmatpush1.msra.mxu0 0.0
        %2346 = vmatprep.subr.mxu0 0.0
        %2347 = vmatpush1.msra.mxu0 0.0
        %2348 = vmatprep.subr.mxu0 0.0
        %2349 = vmatpush1.msra.mxu0 0.0
        %2350 = vmatprep.subr.mxu0 0.0
        %2351 = vmatpush1.msra.mxu0 0.0
        %2352 = vmatprep.subr.mxu0 0.0
        %2353 = vmatpush1.msra.mxu0 0.0
        %2354 = vmatprep.subr.mxu0 0.0
        %2355 = vmatpush1.msra.mxu0 0.0
        %2356 = vmatprep.subr.mxu0 0.0
        %2357 = vmatpush1.msra.mxu0 0.0
        %2358 = vmatprep.subr.mxu0 0.0
        %2359 = vmatpush1.msra.mxu0 0.0
        %2360 = vmatprep.subr.mxu0 0.0
        %2361 = vmatpush1.msra.mxu0 0.0
        %2362 = vmatprep.subr.mxu0 0.0
        %2363 = vmatpush1.msra.mxu0 0.0
        %2364 = vmatprep.mubr.f32.mxu0 0.0
        %2365 = vmatmul.mubr.f32.gmra.mrb[0].mxu0 %v1659
        %v2366 = vpop.f32.mrb[0].mxu0
        %v2367 = vadd.f32 %v1655, %v2366
        %v2368 = vpop.f32.mrb[0].mxu0
        %v2369 = vadd.f32 %v1655, %v2368
        %2370 = vdwg.mxu0
        %2371 = vmatprep.subr.mxu0 %v1384
        %2372 = vmatpush1.msra.mxu0 %v1383
        %2373 = vmatprep.subr.mxu0 %v1416
        %2374 = vmatpush1.msra.mxu0 %v1415
        %2375 = vmatprep.subr.mxu0 %v1448
        %2376 = vmatpush1.msra.mxu0 %v1447
        %2377 = vmatprep.subr.mxu0 %v1480
        %2378 = vmatpush1.msra.mxu0 %v1479
        %2379 = vmatprep.subr.mxu0 %v1512
        %2380 = vmatpush1.msra.mxu0 %v1511
        %2381 = vmatprep.subr.mxu0 %v1544
        %2382 = vmatpush1.msra.mxu0 %v1543
        %2383 = vmatprep.subr.mxu0 %v1576
        %2384 = vmatpush1.msra.mxu0 %v1575
        %2385 = vmatprep.subr.mxu0 %v1608
        %2386 = vmatpush1.msra.mxu0 %v1607
        %2387 = vmatprep.subr.mxu0 %v1640
        %2388 = vmatpush1.msra.mxu0 %v1639
        %2389 = vmatprep.subr.mxu0 0.0
        %2390 = vmatpush1.msra.mxu0 0.0
        %2391 = vmatprep.subr.mxu0 0.0
        %2392 = vmatpush1.msra.mxu0 0.0
        %2393 = vmatprep.subr.mxu0 0.0
        %2394 = vmatpush1.msra.mxu0 0.0
        %2395 = vmatprep.subr.mxu0 0.0
        %2396 = vmatpush1.msra.mxu0 0.0
        %2397 = vmatprep.subr.mxu0 0.0
        %2398 = vmatpush1.msra.mxu0 0.0
        %2399 = vmatprep.subr.mxu0 0.0
        %2400 = vmatpush1.msra.mxu0 0.0
        %2401 = vmatprep.subr.mxu0 0.0
        %2402 = vmatpush1.msra.mxu0 0.0
        %2403 = vmatprep.subr.mxu0 0.0
        %2404 = vmatpush1.msra.mxu0 0.0
        %2405 = vmatprep.subr.mxu0 0.0
        %2406 = vmatpush1.msra.mxu0 0.0
        %2407 = vmatprep.subr.mxu0 0.0
        %2408 = vmatpush1.msra.mxu0 0.0
        %2409 = vmatprep.subr.mxu0 0.0
        %2410 = vmatpush1.msra.mxu0 0.0
        %2411 = vmatprep.subr.mxu0 0.0
        %2412 = vmatpush1.msra.mxu0 0.0
        %2413 = vmatprep.subr.mxu0 0.0
        %2414 = vmatpush1.msra.mxu0 0.0
        %2415 = vmatprep.subr.mxu0 0.0
        %2416 = vmatpush1.msra.mxu0 0.0
        %2417 = vmatprep.subr.mxu0 0.0
        %2418 = vmatpush1.msra.mxu0 0.0
        %2419 = vmatprep.subr.mxu0 0.0
        %2420 = vmatpush1.msra.mxu0 0.0
        %2421 = vmatprep.subr.mxu0 0.0
        %2422 = vmatpush1.msra.mxu0 0.0
        %2423 = vmatprep.subr.mxu0 0.0
        %2424 = vmatpush1.msra.mxu0 0.0
        %2425 = vmatprep.subr.mxu0 0.0
        %2426 = vmatpush1.msra.mxu0 0.0
        %2427 = vmatprep.subr.mxu0 0.0
        %2428 = vmatpush1.msra.mxu0 0.0
        %2429 = vmatprep.subr.mxu0 0.0
        %2430 = vmatpush1.msra.mxu0 0.0
        %2431 = vmatprep.subr.mxu0 0.0
        %2432 = vmatpush1.msra.mxu0 0.0
        %2433 = vmatprep.subr.mxu0 0.0
        %2434 = vmatpush1.msra.mxu0 0.0
        %2435 = vmatprep.mubr.f32.mxu0 0.0
        %2436 = vmatmul.mubr.f32.gmra.mrb[0].mxu0 %v1659
        %v2437 = vpop.f32.mrb[0].mxu0
        %v2438 = vadd.f32 %v1655, %v2437
        %v2439 = vpop.f32.mrb[0].mxu0
        %v2440 = vadd.f32 %v1655, %v2439
        %2441 = vdwg.mxu0
        %2442 = vmatprep.subr.mxu0 %v1386
        %2443 = vmatpush1.msra.mxu0 %v1385
        %2444 = vmatprep.subr.mxu0 %v1418
        %2445 = vmatpush1.msra.mxu0 %v1417
        %2446 = vmatprep.subr.mxu0 %v1450
        %2447 = vmatpush1.msra.mxu0 %v1449
        %2448 = vmatprep.subr.mxu0 %v1482
        %2449 = vmatpush1.msra.mxu0 %v1481
        %2450 = vmatprep.subr.mxu0 %v1514
        %2451 = vmatpush1.msra.mxu0 %v1513
        %2452 = vmatprep.subr.mxu0 %v1546
        %2453 = vmatpush1.msra.mxu0 %v1545
        %2454 = vmatprep.subr.mxu0 %v1578
        %2455 = vmatpush1.msra.mxu0 %v1577
        %2456 = vmatprep.subr.mxu0 %v1610
        %2457 = vmatpush1.msra.mxu0 %v1609
        %2458 = vmatprep.subr.mxu0 %v1642
        %2459 = vmatpush1.msra.mxu0 %v1641
        %2460 = vmatprep.subr.mxu0 0.0
        %2461 = vmatpush1.msra.mxu0 0.0
        %2462 = vmatprep.subr.mxu0 0.0
        %2463 = vmatpush1.msra.mxu0 0.0
        %2464 = vmatprep.subr.mxu0 0.0
        %2465 = vmatpush1.msra.mxu0 0.0
        %2466 = vmatprep.subr.mxu0 0.0
        %2467 = vmatpush1.msra.mxu0 0.0
        %2468 = vmatprep.subr.mxu0 0.0
        %2469 = vmatpush1.msra.mxu0 0.0
        %2470 = vmatprep.subr.mxu0 0.0
        %2471 = vmatpush1.msra.mxu0 0.0
        %2472 = vmatprep.subr.mxu0 0.0
        %2473 = vmatpush1.msra.mxu0 0.0
        %2474 = vmatprep.subr.mxu0 0.0
        %2475 = vmatpush1.msra.mxu0 0.0
        %2476 = vmatprep.subr.mxu0 0.0
        %2477 = vmatpush1.msra.mxu0 0.0
        %2478 = vmatprep.subr.mxu0 0.0
        %2479 = vmatpush1.msra.mxu0 0.0
        %2480 = vmatprep.subr.mxu0 0.0
        %2481 = vmatpush1.msra.mxu0 0.0
        %2482 = vmatprep.subr.mxu0 0.0
        %2483 = vmatpush1.msra.mxu0 0.0
        %2484 = vmatprep.subr.mxu0 0.0
        %2485 = vmatpush1.msra.mxu0 0.0
        %2486 = vmatprep.subr.mxu0 0.0
        %2487 = vmatpush1.msra.mxu0 0.0
        %2488 = vmatprep.subr.mxu0 0.0
        %2489 = vmatpush1.msra.mxu0 0.0
        %2490 = vmatprep.subr.mxu0 0.0
        %2491 = vmatpush1.msra.mxu0 0.0
        %2492 = vmatprep.subr.mxu0 0.0
        %2493 = vmatpush1.msra.mxu0 0.0
        %2494 = vmatprep.subr.mxu0 0.0
        %2495 = vmatpush1.msra.mxu0 0.0
        %2496 = vmatprep.subr.mxu0 0.0
        %2497 = vmatpush1.msra.mxu0 0.0
        %2498 = vmatprep.subr.mxu0 0.0
        %2499 = vmatpush1.msra.mxu0 0.0
        %2500 = vmatprep.subr.mxu0 0.0
        %2501 = vmatpush1.msra.mxu0 0.0
        %2502 = vmatprep.subr.mxu0 0.0
        %2503 = vmatpush1.msra.mxu0 0.0
        %2504 = vmatprep.subr.mxu0 0.0
        %2505 = vmatpush1.msra.mxu0 0.0
        %2506 = vmatprep.mubr.f32.mxu0 0.0
        %2507 = vmatmul.mubr.f32.gmra.mrb[0].mxu0 %v1659
        %v2508 = vpop.f32.mrb[0].mxu0
        %v2509 = vadd.f32 %v1655, %v2508
        %v2510 = vpop.f32.mrb[0].mxu0
        %v2511 = vadd.f32 %v1655, %v2510
        %2512 = vdwg.mxu0
        %2513 = vmatprep.subr.mxu0 %v1388
        %2514 = vmatpush1.msra.mxu0 %v1387
        %2515 = vmatprep.subr.mxu0 %v1420
        %2516 = vmatpush1.msra.mxu0 %v1419
        %2517 = vmatprep.subr.mxu0 %v1452
        %2518 = vmatpush1.msra.mxu0 %v1451
        %2519 = vmatprep.subr.mxu0 %v1484
        %2520 = vmatpush1.msra.mxu0 %v1483
        %2521 = vmatprep.subr.mxu0 %v1516
        %2522 = vmatpush1.msra.mxu0 %v1515
        %2523 = vmatprep.subr.mxu0 %v1548
        %2524 = vmatpush1.msra.mxu0 %v1547
        %2525 = vmatprep.subr.mxu0 %v1580
        %2526 = vmatpush1.msra.mxu0 %v1579
        %2527 = vmatprep.subr.mxu0 %v1612
        %2528 = vmatpush1.msra.mxu0 %v1611
        %2529 = vmatprep.subr.mxu0 %v1644
        %2530 = vmatpush1.msra.mxu0 %v1643
        %2531 = vmatprep.subr.mxu0 0.0
        %2532 = vmatpush1.msra.mxu0 0.0
        %2533 = vmatprep.subr.mxu0 0.0
        %2534 = vmatpush1.msra.mxu0 0.0
        %2535 = vmatprep.subr.mxu0 0.0
        %2536 = vmatpush1.msra.mxu0 0.0
        %2537 = vmatprep.subr.mxu0 0.0
        %2538 = vmatpush1.msra.mxu0 0.0
        %2539 = vmatprep.subr.mxu0 0.0
        %2540 = vmatpush1.msra.mxu0 0.0
        %2541 = vmatprep.subr.mxu0 0.0
        %2542 = vmatpush1.msra.mxu0 0.0
        %2543 = vmatprep.subr.mxu0 0.0
        %2544 = vmatpush1.msra.mxu0 0.0
        %2545 = vmatprep.subr.mxu0 0.0
        %2546 = vmatpush1.msra.mxu0 0.0
        %2547 = vmatprep.subr.mxu0 0.0
        %2548 = vmatpush1.msra.mxu0 0.0
        %2549 = vmatprep.subr.mxu0 0.0
        %2550 = vmatpush1.msra.mxu0 0.0
        %2551 = vmatprep.subr.mxu0 0.0
        %2552 = vmatpush1.msra.mxu0 0.0
        %2553 = vmatprep.subr.mxu0 0.0
        %2554 = vmatpush1.msra.mxu0 0.0
        %2555 = vmatprep.subr.mxu0 0.0
        %2556 = vmatpush1.msra.mxu0 0.0
        %2557 = vmatprep.subr.mxu0 0.0
        %2558 = vmatpush1.msra.mxu0 0.0
        %2559 = vmatprep.subr.mxu0 0.0
        %2560 = vmatpush1.msra.mxu0 0.0
        %2561 = vmatprep.subr.mxu0 0.0
        %2562 = vmatpush1.msra.mxu0 0.0
        %2563 = vmatprep.subr.mxu0 0.0
        %2564 = vmatpush1.msra.mxu0 0.0
        %2565 = vmatprep.subr.mxu0 0.0
        %2566 = vmatpush1.msra.mxu0 0.0
        %2567 = vmatprep.subr.mxu0 0.0
        %2568 = vmatpush1.msra.mxu0 0.0
        %2569 = vmatprep.subr.mxu0 0.0
        %2570 = vmatpush1.msra.mxu0 0.0
        %2571 = vmatprep.subr.mxu0 0.0
        %2572 = vmatpush1.msra.mxu0 0.0
        %2573 = vmatprep.subr.mxu0 0.0
        %2574 = vmatpush1.msra.mxu0 0.0
        %2575 = vmatprep.subr.mxu0 0.0
        %2576 = vmatpush1.msra.mxu0 0.0
        %2577 = vmatprep.mubr.f32.mxu0 0.0
        %2578 = vmatmul.mubr.f32.gmra.mrb[0].mxu0 %v1659
        %v2579 = vpop.f32.mrb[0].mxu0
        %v2580 = vadd.f32 %v1655, %v2579
        %v2581 = vpop.f32.mrb[0].mxu0
        %v2582 = vadd.f32 %v1655, %v2581
        %2583 = vdwg.mxu0
        %2584 = vmatprep.subr.mxu0 %v1390
        %2585 = vmatpush1.msra.mxu0 %v1389
        %2586 = vmatprep.subr.mxu0 %v1422
        %2587 = vmatpush1.msra.mxu0 %v1421
        %2588 = vmatprep.subr.mxu0 %v1454
        %2589 = vmatpush1.msra.mxu0 %v1453
        %2590 = vmatprep.subr.mxu0 %v1486
        %2591 = vmatpush1.msra.mxu0 %v1485
        %2592 = vmatprep.subr.mxu0 %v1518
        %2593 = vmatpush1.msra.mxu0 %v1517
        %2594 = vmatprep.subr.mxu0 %v1550
        %2595 = vmatpush1.msra.mxu0 %v1549
        %2596 = vmatprep.subr.mxu0 %v1582
        %2597 = vmatpush1.msra.mxu0 %v1581
        %2598 = vmatprep.subr.mxu0 %v1614
        %2599 = vmatpush1.msra.mxu0 %v1613
        %2600 = vmatprep.subr.mxu0 %v1646
        %2601 = vmatpush1.msra.mxu0 %v1645
        %2602 = vmatprep.subr.mxu0 0.0
        %2603 = vmatpush1.msra.mxu0 0.0
        %2604 = vmatprep.subr.mxu0 0.0
        %2605 = vmatpush1.msra.mxu0 0.0
        %2606 = vmatprep.subr.mxu0 0.0
        %2607 = vmatpush1.msra.mxu0 0.0
        %2608 = vmatprep.subr.mxu0 0.0
        %2609 = vmatpush1.msra.mxu0 0.0
        %2610 = vmatprep.subr.mxu0 0.0
        %2611 = vmatpush1.msra.mxu0 0.0
        %2612 = vmatprep.subr.mxu0 0.0
        %2613 = vmatpush1.msra.mxu0 0.0
        %2614 = vmatprep.subr.mxu0 0.0
        %2615 = vmatpush1.msra.mxu0 0.0
        %2616 = vmatprep.subr.mxu0 0.0
        %2617 = vmatpush1.msra.mxu0 0.0
        %2618 = vmatprep.subr.mxu0 0.0
        %2619 = vmatpush1.msra.mxu0 0.0
        %2620 = vmatprep.subr.mxu0 0.0
        %2621 = vmatpush1.msra.mxu0 0.0
        %2622 = vmatprep.subr.mxu0 0.0
        %2623 = vmatpush1.msra.mxu0 0.0
        %2624 = vmatprep.subr.mxu0 0.0
        %2625 = vmatpush1.msra.mxu0 0.0
        %2626 = vmatprep.subr.mxu0 0.0
        %2627 = vmatpush1.msra.mxu0 0.0
        %2628 = vmatprep.subr.mxu0 0.0
        %2629 = vmatpush1.msra.mxu0 0.0
        %2630 = vmatprep.subr.mxu0 0.0
        %2631 = vmatpush1.msra.mxu0 0.0
        %2632 = vmatprep.subr.mxu0 0.0
        %2633 = vmatpush1.msra.mxu0 0.0
        %2634 = vmatprep.subr.mxu0 0.0
        %2635 = vmatpush1.msra.mxu0 0.0
        %2636 = vmatprep.subr.mxu0 0.0
        %2637 = vmatpush1.msra.mxu0 0.0
        %2638 = vmatprep.subr.mxu0 0.0
        %2639 = vmatpush1.msra.mxu0 0.0
        %2640 = vmatprep.subr.mxu0 0.0
        %2641 = vmatpush1.msra.mxu0 0.0
        %2642 = vmatprep.subr.mxu0 0.0
        %2643 = vmatpush1.msra.mxu0 0.0
        %2644 = vmatprep.subr.mxu0 0.0
        %2645 = vmatpush1.msra.mxu0 0.0
        %2646 = vmatprep.subr.mxu0 0.0
        %2647 = vmatpush1.msra.mxu0 0.0
        %2648 = vmatprep.mubr.f32.mxu0 0.0
        %2649 = vmatmul.mubr.f32.gmra.mrb[0].mxu0 %v1659
        %v2650 = vpop.f32.mrb[0].mxu0
        %v2651 = vadd.f32 %v1655, %v2650
        %v2652 = vpop.f32.mrb[0].mxu0
        %v2653 = vadd.f32 %v1655, %v2652
        %2654 = vdwg.mxu0
        %2655 = vmatprep.subr.mxu0 %v1392
        %2656 = vmatpush1.msra.mxu0 %v1391
        %2657 = vmatprep.subr.mxu0 %v1424
        %2658 = vmatpush1.msra.mxu0 %v1423
        %2659 = vmatprep.subr.mxu0 %v1456
        %2660 = vmatpush1.msra.mxu0 %v1455
        %2661 = vmatprep.subr.mxu0 %v1488
        %2662 = vmatpush1.msra.mxu0 %v1487
        %2663 = vmatprep.subr.mxu0 %v1520
        %2664 = vmatpush1.msra.mxu0 %v1519
        %2665 = vmatprep.subr.mxu0 %v1552
        %2666 = vmatpush1.msra.mxu0 %v1551
        %2667 = vmatprep.subr.mxu0 %v1584
        %2668 = vmatpush1.msra.mxu0 %v1583
        %2669 = vmatprep.subr.mxu0 %v1616
        %2670 = vmatpush1.msra.mxu0 %v1615
        %2671 = vmatprep.subr.mxu0 %v1648
        %2672 = vmatpush1.msra.mxu0 %v1647
        %2673 = vmatprep.subr.mxu0 0.0
        %2674 = vmatpush1.msra.mxu0 0.0
        %2675 = vmatprep.subr.mxu0 0.0
        %2676 = vmatpush1.msra.mxu0 0.0
        %2677 = vmatprep.subr.mxu0 0.0
        %2678 = vmatpush1.msra.mxu0 0.0
        %2679 = vmatprep.subr.mxu0 0.0
        %2680 = vmatpush1.msra.mxu0 0.0
        %2681 = vmatprep.subr.mxu0 0.0
        %2682 = vmatpush1.msra.mxu0 0.0
        %2683 = vmatprep.subr.mxu0 0.0
        %2684 = vmatpush1.msra.mxu0 0.0
        %2685 = vmatprep.subr.mxu0 0.0
        %2686 = vmatpush1.msra.mxu0 0.0
        %2687 = vmatprep.subr.mxu0 0.0
        %2688 = vmatpush1.msra.mxu0 0.0
        %2689 = vmatprep.subr.mxu0 0.0
        %2690 = vmatpush1.msra.mxu0 0.0
        %2691 = vmatprep.subr.mxu0 0.0
        %2692 = vmatpush1.msra.mxu0 0.0
        %2693 = vmatprep.subr.mxu0 0.0
        %2694 = vmatpush1.msra.mxu0 0.0
        %2695 = vmatprep.subr.mxu0 0.0
        %2696 = vmatpush1.msra.mxu0 0.0
        %2697 = vmatprep.subr.mxu0 0.0
        %2698 = vmatpush1.msra.mxu0 0.0
        %2699 = vmatprep.subr.mxu0 0.0
        %2700 = vmatpush1.msra.mxu0 0.0
        %2701 = vmatprep.subr.mxu0 0.0
        %2702 = vmatpush1.msra.mxu0 0.0
        %2703 = vmatprep.subr.mxu0 0.0
        %2704 = vmatpush1.msra.mxu0 0.0
        %2705 = vmatprep.subr.mxu0 0.0
        %2706 = vmatpush1.msra.mxu0 0.0
        %2707 = vmatprep.subr.mxu0 0.0
        %2708 = vmatpush1.msra.mxu0 0.0
        %2709 = vmatprep.subr.mxu0 0.0
        %2710 = vmatpush1.msra.mxu0 0.0
        %2711 = vmatprep.subr.mxu0 0.0
        %2712 = vmatpush1.msra.mxu0 0.0
        %2713 = vmatprep.subr.mxu0 0.0
        %2714 = vmatpush1.msra.mxu0 0.0
        %2715 = vmatprep.subr.mxu0 0.0
        %2716 = vmatpush1.msra.mxu0 0.0
        %2717 = vmatprep.subr.mxu0 0.0
        %2718 = vmatpush1.msra.mxu0 0.0
        %2719 = vmatprep.mubr.f32.mxu0 0.0
        %2720 = vmatmul.mubr.f32.gmra.mrb[0].mxu0 %v1659
        %v2721 = vpop.f32.mrb[0].mxu0
        %v2722 = vadd.f32 %v1655, %v2721
        %v2723 = vpop.f32.mrb[0].mxu0
        %v2724 = vadd.f32 %v1655, %v2723
        %2725 = vdwg.mxu0
        %2726 = vmatprep.subr.mxu0 %v1394
        %2727 = vmatpush1.msra.mxu0 %v1393
        %2728 = vmatprep.subr.mxu0 %v1426
        %2729 = vmatpush1.msra.mxu0 %v1425
        %2730 = vmatprep.subr.mxu0 %v1458
        %2731 = vmatpush1.msra.mxu0 %v1457
        %2732 = vmatprep.subr.mxu0 %v1490
        %2733 = vmatpush1.msra.mxu0 %v1489
        %2734 = vmatprep.subr.mxu0 %v1522
        %2735 = vmatpush1.msra.mxu0 %v1521
        %2736 = vmatprep.subr.mxu0 %v1554
        %2737 = vmatpush1.msra.mxu0 %v1553
        %2738 = vmatprep.subr.mxu0 %v1586
        %2739 = vmatpush1.msra.mxu0 %v1585
        %2740 = vmatprep.subr.mxu0 %v1618
        %2741 = vmatpush1.msra.mxu0 %v1617
        %2742 = vmatprep.subr.mxu0 %v1650
        %2743 = vmatpush1.msra.mxu0 %v1649
        %2744 = vmatprep.subr.mxu0 0.0
        %2745 = vmatpush1.msra.mxu0 0.0
        %2746 = vmatprep.subr.mxu0 0.0
        %2747 = vmatpush1.msra.mxu0 0.0
        %2748 = vmatprep.subr.mxu0 0.0
        %2749 = vmatpush1.msra.mxu0 0.0
        %2750 = vmatprep.subr.mxu0 0.0
        %2751 = vmatpush1.msra.mxu0 0.0
        %2752 = vmatprep.subr.mxu0 0.0
        %2753 = vmatpush1.msra.mxu0 0.0
        %2754 = vmatprep.subr.mxu0 0.0
        %2755 = vmatpush1.msra.mxu0 0.0
        %2756 = vmatprep.subr.mxu0 0.0
        %2757 = vmatpush1.msra.mxu0 0.0
        %2758 = vmatprep.subr.mxu0 0.0
        %2759 = vmatpush1.msra.mxu0 0.0
        %2760 = vmatprep.subr.mxu0 0.0
        %2761 = vmatpush1.msra.mxu0 0.0
        %2762 = vmatprep.subr.mxu0 0.0
        %2763 = vmatpush1.msra.mxu0 0.0
        %2764 = vmatprep.subr.mxu0 0.0
        %2765 = vmatpush1.msra.mxu0 0.0
        %2766 = vmatprep.subr.mxu0 0.0
        %2767 = vmatpush1.msra.mxu0 0.0
        %2768 = vmatprep.subr.mxu0 0.0
        %2769 = vmatpush1.msra.mxu0 0.0
        %2770 = vmatprep.subr.mxu0 0.0
        %2771 = vmatpush1.msra.mxu0 0.0
        %2772 = vmatprep.subr.mxu0 0.0
        %2773 = vmatpush1.msra.mxu0 0.0
        %2774 = vmatprep.subr.mxu0 0.0
        %2775 = vmatpush1.msra.mxu0 0.0
        %2776 = vmatprep.subr.mxu0 0.0
        %2777 = vmatpush1.msra.mxu0 0.0
        %2778 = vmatprep.subr.mxu0 0.0
        %2779 = vmatpush1.msra.mxu0 0.0
        %2780 = vmatprep.subr.mxu0 0.0
        %2781 = vmatpush1.msra.mxu0 0.0
        %2782 = vmatprep.subr.mxu0 0.0
        %2783 = vmatpush1.msra.mxu0 0.0
        %2784 = vmatprep.subr.mxu0 0.0
        %2785 = vmatpush1.msra.mxu0 0.0
        %2786 = vmatprep.subr.mxu0 0.0
        %2787 = vmatpush1.msra.mxu0 0.0
        %2788 = vmatprep.subr.mxu0 0.0
        %2789 = vmatpush1.msra.mxu0 0.0
        %2790 = vmatprep.mubr.f32.mxu0 0.0
        %2791 = vmatmul.mubr.f32.gmra.mrb[0].mxu0 %v1659
        %v2792 = vpop.f32.mrb[0].mxu0
        %v2793 = vadd.f32 %v1655, %v2792
        %v2794 = vpop.f32.mrb[0].mxu0
        %v2795 = vadd.f32 %v1655, %v2794
        %2796 = vdwg.mxu0
        %2797 = vst [vmem:[%s204] sm:$0xff] %v1728
        %2798 = vst [vmem:[%s204 + $0x8] sm:$0xff] %v1730
        %2799 = vst [vmem:[%s204 + $0x10] sm:$0xff] %v1799
        %2800 = vst [vmem:[%s204 + $0x18] sm:$0xff] %v1801
        %2801 = vst [vmem:[%s204 + $0x20] sm:$0xff] %v1870
        %2802 = vst [vmem:[%s204 + $0x28] sm:$0xff] %v1872
        %2803 = vst [vmem:[%s204 + $0x30] sm:$0xff] %v1941
        %2804 = vst [vmem:[%s204 + $0x38] sm:$0xff] %v1943
        %2805 = vst [vmem:[%s204 + $0x40] sm:$0xff] %v2012
        %2806 = vst [vmem:[%s204 + $0x48] sm:$0xff] %v2014
        %2807 = vst [vmem:[%s204 + $0x50] sm:$0xff] %v2083
        %2808 = vst [vmem:[%s204 + $0x58] sm:$0xff] %v2085
        %2809 = vst [vmem:[%s204 + $0x60] sm:$0xff] %v2154
        %2810 = vst [vmem:[%s204 + $0x68] sm:$0xff] %v2156
        %2811 = vst [vmem:[%s204 + $0x70] sm:$0xff] %v2225
        %2812 = vst [vmem:[%s204 + $0x78] sm:$0xff] %v2227
        %2813 = vst [vmem:[%s204 + $0x80] sm:$0xff] %v2296
        %2814 = vst [vmem:[%s204 + $0x88] sm:$0xff] %v2298
        %2815 = vst [vmem:[%s204 + $0x90] sm:$0xff] %v2367
        %2816 = vst [vmem:[%s204 + $0x98] sm:$0xff] %v2369
        %2817 = vst [vmem:[%s204 + $0xa0] sm:$0xff] %v2438
        %2818 = vst [vmem:[%s204 + $0xa8] sm:$0xff] %v2440
        %2819 = vst [vmem:[%s204 + $0xb0] sm:$0xff] %v2509
        %2820 = vst [vmem:[%s204 + $0xb8] sm:$0xff] %v2511
        %2821 = vst [vmem:[%s204 + $0xc0] sm:$0xff] %v2580
        %2822 = vst [vmem:[%s204 + $0xc8] sm:$0xff] %v2582
        %2823 = vst [vmem:[%s204 + $0xd0] sm:$0xff] %v2651
        %2824 = vst [vmem:[%s204 + $0xd8] sm:$0xff] %v2653
        %2825 = vst [vmem:[%s204 + $0xe0] sm:$0xff] %v2722
        %2826 = vst [vmem:[%s204 + $0xe8] sm:$0xff] %v2724
        %2827 = vst [vmem:[%s204 + $0xf0] sm:$0xff] %v2793
        %2828 = vst [vmem:[%s204 + $0xf8] sm:$0xff] %v2795
        %s2829 = sand.u32 %s112, 1
        %s2830 = scalar_lea.sflag [#allocation5], %s2829
        %s2831 = sand.u32 %s112, 1
        %s2832 = smul.addr %s2831, 256
        %s2833 = scalar_lea.vmem [#allocation6], %s2832
        // Predicated region
        $region37: #{tpu_custom_call.1} parent=31 // pred_check
          %p2834 = pneg %p122
        $region38: #{tpu_custom_call.1} parent=31 // pred_check_branch
          %2836 = sbr.rel (%p2834) target = $region40
        $region39: #{tpu_custom_call.1} parent=31 // pred_region
          %s2837 = smul.u32 32, %s25
          %s2839 = ssub.s32 4096, 4096
          %2840 = vsyncadd %s2830, %s2839
          %s2841 = smul.addr %s24, 32
          %s2842 = sadd.s32 %s2837, %s2841
          %s2843 = smul.addr %s2842, 128
          %s2844 = scalar_lea.hbm %s3, %s2843
          %s2846 = sshll.u32 %s2833, 4
          %s2847 = int_to_ptr.vmem [resolvable:$true] %s2846
          %2849 = dma.vmem_to_hbm [thread:$0]  %s2847, 4096, %s2844, %s2830
        $region40: #{tpu_custom_call.1} parent=31 // pred_fallthru
          _
      $region32: #{tpu_custom_call.1} parent=5 // pred_fallthru
        _
      %p2850 = scmp.le.s32.totalorder 2, %s15
      // Predicated region
      $region41: #{tpu_custom_call.1} parent=5 // pred_check
        %p2851 = pneg %p2850
      $region42: #{tpu_custom_call.1} parent=5 // pred_check_branch
        %2853 = sbr.rel (%p2851) target = $region44
      $region43: #{tpu_custom_call.1} parent=5 // pred_region
        %s2854 = ssub.s32 %s15, 2
        // Predicated region
        $region45: #{tpu_custom_call.1} parent=43 // pred_check
          %p2855 = pneg %p128
        $region46: #{tpu_custom_call.1} parent=43 // pred_check_branch
          %2857 = sbr.rel (%p2855) target = $region48
        $region47: #{tpu_custom_call.1} parent=43 // pred_region
          %s2858 = sand.u32 %s113, 1
          %s2859 = scalar_lea.sflag [#allocation5], %s2858
          %s2860 = sand.u32 %s113, 1
          %s2861 = smul.addr %s2860, 256
          %s2862 = scalar_lea.vmem [#allocation6], %s2861
          %2863 = dma.done %s2859, 4096
        $region48: #{tpu_custom_call.1} parent=43 // pred_fallthru
          _
      $region44: #{tpu_custom_call.1} parent=5 // pred_fallthru
        _
    $region6: #{tpu_custom_call.1} parent=1 // loop_footer
      %s19 = sadd.s32 1, %s15
    $region7: #{tpu_custom_call.1} parent=1 // loop_footer_branch
      %14 = sbr.rel target = $region3
    $region8: #{tpu_custom_call.1} parent=1 // loop_exit
      _
    %2864 = vsyncpa [#allocation4], 1
    %s2865 = scalar_lea.sflag [#allocation4], 1
    %2866 = vsyncpa %s2865, 1
    %2867 = vsyncpa [#allocation5], 1
    %s2868 = scalar_lea.sflag [#allocation5], 1
    %2869 = vsyncpa %s2868, 1

</llo_original>
